<compile_context>
chip_gen: v5e
topology: v5e:2x2
jax: 0.10.0
libtpu: 0.0.40
codegen_flags: <defaults>
</compile_context>

<pallas_src>
import functools
import math

import jax
import jax.numpy as jnp
from jax.experimental import pallas as pl
from jax.experimental.pallas import tpu as pltpu


# --------------------------- fused forward kernel ---------------------------

def _fused_forward_kernel(x_ref,
                          w_in_ref, b_in_ref, w_out_ref, b_out_ref,
                          ln1_g_ref, ln1_b_ref,
                          w_ff1_ref, b_ff1_ref, w_ff2_ref, b_ff2_ref,
                          ln2_g_ref, ln2_b_ref,
                          cls_w1_ref, cls_b1_ref, cls_w2_ref, cls_b2_ref,
                          o_ref,
                          qkv_scratch, attn_scratch,
                          *, nlayers, nheads, eps=1e-5):
    S = x_ref.shape[1]
    D = x_ref.shape[2]
    Dh = D // nheads
    scale = 1.0 / math.sqrt(Dh)

    x = x_ref[0]                                           # (S, D) f32, one batch element

    for l in range(nlayers):                               # static layer loop
        # ---- self-attention: fused QKV projection into VMEM scratch ----
        qkv_scratch[...] = (
            jnp.dot(x.astype(jnp.bfloat16), w_in_ref[l],
                    preferred_element_type=jnp.float32)
            + b_in_ref[l])                                 # (S, 3D) f32

        for h in range(nheads):                            # static head loop
            q = qkv_scratch[:, h * Dh:(h + 1) * Dh]                  # (S, Dh)
            k = qkv_scratch[:, D + h * Dh:D + (h + 1) * Dh]
            v = qkv_scratch[:, 2 * D + h * Dh:2 * D + (h + 1) * Dh]
            s = jax.lax.dot_general(
                q.astype(jnp.bfloat16), k.astype(jnp.bfloat16),
                (((1,), (1,)), ((), ())),
                preferred_element_type=jnp.float32) * scale          # (S, S) f32
            m = jnp.max(s, axis=-1, keepdims=True)
            p = jnp.exp(s - m)
            denom = jnp.sum(p, axis=-1, keepdims=True)
            p = p * pl.reciprocal(denom, approx=True)                # EUP divide
            head_out = jnp.dot(p.astype(jnp.bfloat16), v.astype(jnp.bfloat16),
                               preferred_element_type=jnp.float32)   # (S, Dh)
            # direct sliced store -> no lane-assembly concatenate
            attn_scratch[:, h * Dh:(h + 1) * Dh] = head_out

        attn = attn_scratch[...]                           # (S, D) f32

        # ---- out projection + residual + LayerNorm1 (post-norm) ----
        y = (jnp.dot(attn.astype(jnp.bfloat16), w_out_ref[l],
                     preferred_element_type=jnp.float32)
             + b_out_ref[l] + x)
        mean = jnp.mean(y, axis=-1, keepdims=True)
        var = jnp.mean((y - mean) ** 2, axis=-1, keepdims=True)
        x1 = (y - mean) * jax.lax.rsqrt(var + eps) * ln1_g_ref[l] + ln1_b_ref[l]

        # ---- feed-forward (ReLU) + residual + LayerNorm2 ----
        ff = jnp.maximum(
            jnp.dot(x1.astype(jnp.bfloat16), w_ff1_ref[l],
                    preferred_element_type=jnp.float32) + b_ff1_ref[l], 0.0)
        y2 = (jnp.dot(ff.astype(jnp.bfloat16), w_ff2_ref[l],
                      preferred_element_type=jnp.float32)
              + b_ff2_ref[l] + x1)
        mean2 = jnp.mean(y2, axis=-1, keepdims=True)
        var2 = jnp.mean((y2 - mean2) ** 2, axis=-1, keepdims=True)
        x = (y2 - mean2) * jax.lax.rsqrt(var2 + eps) * ln2_g_ref[l] + ln2_b_ref[l]

    # ---- mean pool over sequence + classifier MLP (LeakyReLU 0.01) ----
    pooled = jnp.mean(x, axis=0, keepdims=True)            # (1, D)
    h1 = (jnp.dot(pooled.astype(jnp.bfloat16), cls_w1_ref[...],
                  preferred_element_type=jnp.float32) + cls_b1_ref[...])
    h1 = jnp.where(h1 >= 0.0, h1, 0.01 * h1)
    logits = (jnp.dot(h1.astype(jnp.bfloat16), cls_w2_ref[...],
                      preferred_element_type=jnp.float32)
              + cls_b2_ref[...])                           # (1, 128) lane-dense
    # broadcast across the 8-sublane output slab (avoids sub-(8,128) blocks)
    o_ref[0] = jnp.broadcast_to(logits, o_ref.shape[1:])


# ------------------------------ model wrapper --------------------------------

_WEIGHT_NAMES = ["w_in", "b_in", "w_out", "b_out", "ln1_g", "ln1_b",
                 "w_ff1", "b_ff1", "w_ff2", "b_ff2", "ln2_g", "ln2_b",
                 "cls_w1", "cls_b1", "cls_w2_pad", "cls_b2_pad"]


def transformer_model_forward(params, tokens, pe, nhead, n_classes=15):
    B, S = tokens.shape
    D = params["embed"].shape[1]
    L = params["w_in"].shape[0]

    # Embedding gather (data-dependent) + positional encoding: one XLA fusion.
    # Dropouts are identity (eval mode).
    x = jnp.take(params["embed"], tokens, axis=0) + pe[:S][None, :, :]   # (B,S,D) f32

    weights = [params[n] for n in _WEIGHT_NAMES]

    def const_spec(a):
        nd = a.ndim
        return pl.BlockSpec(a.shape, lambda b, _nd=nd: (0,) * _nd)

    kernel = functools.partial(_fused_forward_kernel, nlayers=L, nheads=nhead)

    out = pl.pallas_call(
        kernel,
        out_shape=jax.ShapeDtypeStruct((B, 8, 128), jnp.float32),
        grid=(B,),
        in_specs=[pl.BlockSpec((1, S, D), lambda b: (b, 0, 0))]
                 + [const_spec(a) for a in weights],
        out_specs=pl.BlockSpec((1, 8, 128), lambda b: (b, 0, 0)),
        scratch_shapes=[pltpu.VMEM((S, 3 * D), jnp.float32),   # qkv
                        pltpu.VMEM((S, D), jnp.float32)],      # per-head attn out
        compiler_params=pltpu.CompilerParams(
            dimension_semantics=("parallel",)),                # v7x: 1 TC per batch elem
    )(x, *weights)

    return out[:, 0, :n_classes]                               # (B, 15)


# ------------------------------- parameters ----------------------------------

def make_positional_encoding(max_len, d_model):
    pos = jnp.arange(max_len, dtype=jnp.float32)[:, None]
    div = jnp.exp(jnp.arange(0, d_model, 2, dtype=jnp.float32)
                  * (-math.log(10000.0) / d_model))
    pe = jnp.zeros((max_len, d_model), dtype=jnp.float32)
    pe = pe.at[:, 0::2].set(jnp.sin(pos * div))
    pe = pe.at[:, 1::2].set(jnp.cos(pos * div))
    return pe


def init_params(key, vocab_size, d_emb, d_hid, nlayers,
                n_classes=15, n_classes_pad=128):
    ks = jax.random.split(key, 8)

    def w(k, shape, fan_in):
        # bf16 storage: MXU-native operand, half the HBM/VMEM footprint.
        return (jax.random.normal(k, shape, jnp.float32)
                / math.sqrt(fan_in)).astype(jnp.bfloat16)

    cls_w2 = jax.random.normal(ks[6], (1024, n_classes), jnp.float32) / math.sqrt(1024.0)
    cls_w2_pad = jnp.zeros((1024, n_classes_pad), jnp.float32).at[:, :n_classes].set(cls_w2)

    return {
        "embed": jax.random.normal(ks[0], (vocab_size, d_emb), jnp.float32),
        # per-layer weights stacked on a leading L axis (single kernel argument each)
        "w_in":  w(ks[1], (nlayers, d_emb, 3 * d_emb), d_emb),
        "b_in":  jnp.zeros((nlayers, 1, 3 * d_emb), jnp.float32),
        "w_out": w(ks[2], (nlayers, d_emb, d_emb), d_emb),
        "b_out": jnp.zeros((nlayers, 1, d_emb), jnp.float32),
        "ln1_g": jnp.ones((nlayers, 1, d_emb), jnp.float32),
        "ln1_b": jnp.zeros((nlayers, 1, d_emb), jnp.float32),
        "w_ff1": w(ks[3], (nlayers, d_emb, d_hid), d_emb),
        "b_ff1": jnp.zeros((nlayers, 1, d_hid), jnp.float32),
        "w_ff2": w(ks[4], (nlayers, d_hid, d_emb), d_hid),
        "b_ff2": jnp.zeros((nlayers, 1, d_emb), jnp.float32),
        "ln2_g": jnp.ones((nlayers, 1, d_emb), jnp.float32),
        "ln2_b": jnp.zeros((nlayers, 1, d_emb), jnp.float32),
        # classifier: Linear(d_emb,1024) -> LeakyReLU -> Linear(1024,15) (padded to 128)
        "cls_w1": w(ks[5], (d_emb, 1024), d_emb),
        "cls_b1": jnp.zeros((1, 1024), jnp.float32),
        "cls_w2_pad": cls_w2_pad.astype(jnp.bfloat16),
        "cls_b2_pad": jnp.zeros((1, n_classes_pad), jnp.float32),
    }


# ---------------------------------- main --------------------------------------

if __name__ == "__main__":
    # Small shapes consistent with the module (nhead must divide d_emb; d_emb
    # lane-aligned so all blocks satisfy the (8,128) rule).
    VOCAB, NTOKEN = 50, 16
    D_EMB, D_HID, NHEAD, NLAYERS = 128, 256, 4, 2
    B, S = 2, 8

    key = jax.random.PRNGKey(0)
    k_tok, k_par = jax.random.split(key)
    tokens = jax.random.randint(k_tok, (B, S), 0, VOCAB, dtype=jnp.int32)

    params = init_params(k_par, VOCAB, D_EMB, D_HID, NLAYERS)
    pe = make_positional_encoding(NTOKEN, D_EMB)

    fwd = jax.jit(functools.partial(transformer_model_forward, pe=pe, nhead=NHEAD))
    y = fwd(params, tokens)
    y = jax.block_until_ready(y)
    assert y.shape == (B, 15)
    print("KERNEL_OK")
</pallas_src>

<mosaic_0001>
module attributes {stable_mosaic.version = 11 : i64} {
  func.func @_fused_forward_kernel(%arg0: i32, %arg1: memref<1x8x128xf32, #tpu.memory_space<vmem>>, %arg2: memref<2x128x384xbf16, #tpu.memory_space<vmem>>, %arg3: memref<2x1x384xf32, #tpu.memory_space<vmem>>, %arg4: memref<2x128x128xbf16, #tpu.memory_space<vmem>>, %arg5: memref<2x1x128xf32, #tpu.memory_space<vmem>>, %arg6: memref<2x1x128xf32, #tpu.memory_space<vmem>>, %arg7: memref<2x1x128xf32, #tpu.memory_space<vmem>>, %arg8: memref<2x128x256xbf16, #tpu.memory_space<vmem>>, %arg9: memref<2x1x256xf32, #tpu.memory_space<vmem>>, %arg10: memref<2x256x128xbf16, #tpu.memory_space<vmem>>, %arg11: memref<2x1x128xf32, #tpu.memory_space<vmem>>, %arg12: memref<2x1x128xf32, #tpu.memory_space<vmem>>, %arg13: memref<2x1x128xf32, #tpu.memory_space<vmem>>, %arg14: memref<128x1024xbf16, #tpu.memory_space<vmem>>, %arg15: memref<1x1024xf32, #tpu.memory_space<vmem>>, %arg16: memref<1024x128xbf16, #tpu.memory_space<vmem>>, %arg17: memref<1x128xf32, #tpu.memory_space<vmem>>, %arg18: memref<1x8x128xf32, #tpu.memory_space<vmem>>, %arg19: memref<8x384xf32, #tpu.memory_space<vmem>>, %arg20: memref<8x128xf32, #tpu.memory_space<vmem>>) attributes {dimension_semantics = [#tpu.dimension_semantics<parallel>], iteration_bounds = array<i64: 2>, scalar_prefetch = 0 : i64, scratch_operands = 2 : i64, tpu.core_type = #tpu.core_type<tc>, window_params = [{transform_indices = @transform_0, window_bounds = array<i64: 1, 8, 128>}, {pipeline_mode = #tpu.pipeline_mode<synchronous>, transform_indices = @transform_1, window_bounds = array<i64: 2, 128, 384>}, {pipeline_mode = #tpu.pipeline_mode<synchronous>, transform_indices = @transform_2, window_bounds = array<i64: 2, 1, 384>}, {pipeline_mode = #tpu.pipeline_mode<synchronous>, transform_indices = @transform_3, window_bounds = array<i64: 2, 128, 128>}, {pipeline_mode = #tpu.pipeline_mode<synchronous>, transform_indices = @transform_4, window_bounds = array<i64: 2, 1, 128>}, {pipeline_mode = #tpu.pipeline_mode<synchronous>, transform_indices = @transform_5, window_bounds = array<i64: 2, 1, 128>}, {pipeline_mode = #tpu.pipeline_mode<synchronous>, transform_indices = @transform_6, window_bounds = array<i64: 2, 1, 128>}, {pipeline_mode = #tpu.pipeline_mode<synchronous>, transform_indices = @transform_7, window_bounds = array<i64: 2, 128, 256>}, {pipeline_mode = #tpu.pipeline_mode<synchronous>, transform_indices = @transform_8, window_bounds = array<i64: 2, 1, 256>}, {pipeline_mode = #tpu.pipeline_mode<synchronous>, transform_indices = @transform_9, window_bounds = array<i64: 2, 256, 128>}, {pipeline_mode = #tpu.pipeline_mode<synchronous>, transform_indices = @transform_10, window_bounds = array<i64: 2, 1, 128>}, {pipeline_mode = #tpu.pipeline_mode<synchronous>, transform_indices = @transform_11, window_bounds = array<i64: 2, 1, 128>}, {pipeline_mode = #tpu.pipeline_mode<synchronous>, transform_indices = @transform_12, window_bounds = array<i64: 2, 1, 128>}, {pipeline_mode = #tpu.pipeline_mode<synchronous>, transform_indices = @transform_13, window_bounds = array<i64: 128, 1024>}, {pipeline_mode = #tpu.pipeline_mode<synchronous>, transform_indices = @transform_14, window_bounds = array<i64: 1, 1024>}, {pipeline_mode = #tpu.pipeline_mode<synchronous>, transform_indices = @transform_15, window_bounds = array<i64: 1024, 128>}, {pipeline_mode = #tpu.pipeline_mode<synchronous>, transform_indices = @transform_16, window_bounds = array<i64: 1, 128>}, {transform_indices = @transform_17, window_bounds = array<i64: 1, 8, 128>}]} {
    %c0 = arith.constant 0 : index
    %c0_0 = arith.constant 0 : index
    %c0_1 = arith.constant 0 : index
    %0 = vector.load %arg1[%c0, %c0_0, %c0_1] : memref<1x8x128xf32, #tpu.memory_space<vmem>>, vector<1x8x128xf32>
    %1 = vector.shape_cast %0 : vector<1x8x128xf32> to vector<8x128xf32>
    %2 = arith.truncf %1 : vector<8x128xf32> to vector<8x128xbf16>
    %c0_2 = arith.constant 0 : index
    %c0_3 = arith.constant 0 : index
    %c0_4 = arith.constant 0 : index
    %3 = vector.load %arg2[%c0_2, %c0_3, %c0_4] : memref<2x128x384xbf16, #tpu.memory_space<vmem>>, vector<1x128x384xbf16>
    %4 = vector.shape_cast %3 : vector<1x128x384xbf16> to vector<128x384xbf16>
    %cst = arith.constant dense<0.000000e+00> : vector<8x384xf32>
    %5 = tpu.matmul %2, %4, %cst {dimension_numbers = #tpu.dot_dimension_numbers<[1], [0], [0], [1], [0, 0, 1, 1], [], []>} : vector<8x128xbf16>, vector<128x384xbf16>, vector<8x384xf32> -> vector<8x384xf32>
    %c0_5 = arith.constant 0 : index
    %c0_6 = arith.constant 0 : index
    %c0_7 = arith.constant 0 : index
    %6 = vector.load %arg3[%c0_5, %c0_6, %c0_7] : memref<2x1x384xf32, #tpu.memory_space<vmem>>, vector<1x1x384xf32>
    %7 = vector.shape_cast %6 : vector<1x1x384xf32> to vector<1x384xf32>
    %8 = vector.broadcast %7 : vector<1x384xf32> to vector<8x384xf32>
    %9 = arith.addf %5, %8 : vector<8x384xf32>
    %c0_8 = arith.constant 0 : index
    %c0_9 = arith.constant 0 : index
    %10 = vector.load %arg19[%c0_8, %c0_9] : memref<8x384xf32, #tpu.memory_space<vmem>>, vector<8x384xf32>
    tpu.vector_store %arg19[%c0_8, %c0_9], %9 {strides = array<i32>} : memref<8x384xf32, #tpu.memory_space<vmem>>, vector<8x384xf32>,
    %c0_10 = arith.constant 0 : index
    %c0_11 = arith.constant 0 : index
    %11 = vector.load %arg19[%c0_10, %c0_11] : memref<8x384xf32, #tpu.memory_space<vmem>>, vector<8x32xf32>
    %c0_12 = arith.constant 0 : index
    %c128 = arith.constant 128 : index
    %12 = vector.load %arg19[%c0_12, %c128] : memref<8x384xf32, #tpu.memory_space<vmem>>, vector<8x32xf32>
    %c0_13 = arith.constant 0 : index
    %c256 = arith.constant 256 : index
    %13 = vector.load %arg19[%c0_13, %c256] : memref<8x384xf32, #tpu.memory_space<vmem>>, vector<8x32xf32>
    %14 = arith.truncf %11 : vector<8x32xf32> to vector<8x32xbf16>
    %15 = arith.truncf %12 : vector<8x32xf32> to vector<8x32xbf16>
    %cst_14 = arith.constant dense<0.000000e+00> : vector<8x8xf32>
    %16 = tpu.matmul %14, %15, %cst_14 {dimension_numbers = #tpu.dot_dimension_numbers<[1], [1], [0], [0], [0, 0, 1, 0], [], []>} : vector<8x32xbf16>, vector<8x32xbf16>, vector<8x8xf32> -> vector<8x8xf32>
    %cst_15 = arith.constant 0.176776692 : f32
    %17 = vector.broadcast %cst_15 : f32 to vector<8x8xf32>
    %18 = arith.mulf %16, %17 : vector<8x8xf32>
    %cst_16 = arith.constant dense<0xFF800000> : vector<8xf32>
    %19 = vector.multi_reduction <maximumf>, %18, %cst_16 [1] : vector<8x8xf32> to vector<8xf32>
    %20 = vector.shape_cast %19 : vector<8xf32> to vector<8x1xf32>
    %21 = vector.broadcast %20 : vector<8x1xf32> to vector<8x8xf32>
    %22 = arith.subf %18, %21 : vector<8x8xf32>
    %23 = math.exp %22 : vector<8x8xf32>
    %cst_17 = arith.constant dense<0.000000e+00> : vector<8xf32>
    %24 = vector.multi_reduction <add>, %23, %cst_17 [1] : vector<8x8xf32> to vector<8xf32>
    %25 = vector.shape_cast %24 : vector<8xf32> to vector<8x1xf32>
    %26 = tpu.reciprocal %25 {approx = true} : vector<8x1xf32> -> vector<8x1xf32>
    %27 = vector.broadcast %26 : vector<8x1xf32> to vector<8x8xf32>
    %28 = arith.mulf %23, %27 : vector<8x8xf32>
    %29 = arith.truncf %28 : vector<8x8xf32> to vector<8x8xbf16>
    %30 = arith.truncf %13 : vector<8x32xf32> to vector<8x32xbf16>
    %cst_18 = arith.constant dense<0.000000e+00> : vector<8x32xf32>
    %31 = tpu.matmul %29, %30, %cst_18 {dimension_numbers = #tpu.dot_dimension_numbers<[1], [0], [0], [1], [0, 0, 1, 1], [], []>} : vector<8x8xbf16>, vector<8x32xbf16>, vector<8x32xf32> -> vector<8x32xf32>
    %c0_19 = arith.constant 0 : index
    %c0_20 = arith.constant 0 : index
    %32 = vector.load %arg20[%c0_19, %c0_20] : memref<8x128xf32, #tpu.memory_space<vmem>>, vector<8x32xf32>
    tpu.vector_store %arg20[%c0_19, %c0_20], %31 {strides = array<i32>} : memref<8x128xf32, #tpu.memory_space<vmem>>, vector<8x32xf32>,
    %c0_21 = arith.constant 0 : index
    %c32 = arith.constant 32 : index
    %33 = vector.load %arg19[%c0_21, %c32] : memref<8x384xf32, #tpu.memory_space<vmem>>, vector<8x32xf32>
    %c0_22 = arith.constant 0 : index
    %c160 = arith.constant 160 : index
    %34 = vector.load %arg19[%c0_22, %c160] : memref<8x384xf32, #tpu.memory_space<vmem>>, vector<8x32xf32>
    %c0_23 = arith.constant 0 : index
    %c288 = arith.constant 288 : index
    %35 = vector.load %arg19[%c0_23, %c288] : memref<8x384xf32, #tpu.memory_space<vmem>>, vector<8x32xf32>
    %36 = arith.truncf %33 : vector<8x32xf32> to vector<8x32xbf16>
    %37 = arith.truncf %34 : vector<8x32xf32> to vector<8x32xbf16>
    %cst_24 = arith.constant dense<0.000000e+00> : vector<8x8xf32>
    %38 = tpu.matmul %36, %37, %cst_24 {dimension_numbers = #tpu.dot_dimension_numbers<[1], [1], [0], [0], [0, 0, 1, 0], [], []>} : vector<8x32xbf16>, vector<8x32xbf16>, vector<8x8xf32> -> vector<8x8xf32>
    %cst_25 = arith.constant 0.176776692 : f32
    %39 = vector.broadcast %cst_25 : f32 to vector<8x8xf32>
    %40 = arith.mulf %38, %39 : vector<8x8xf32>
    %cst_26 = arith.constant dense<0xFF800000> : vector<8xf32>
    %41 = vector.multi_reduction <maximumf>, %40, %cst_26 [1] : vector<8x8xf32> to vector<8xf32>
    %42 = vector.shape_cast %41 : vector<8xf32> to vector<8x1xf32>
    %43 = vector.broadcast %42 : vector<8x1xf32> to vector<8x8xf32>
    %44 = arith.subf %40, %43 : vector<8x8xf32>
    %45 = math.exp %44 : vector<8x8xf32>
    %cst_27 = arith.constant dense<0.000000e+00> : vector<8xf32>
    %46 = vector.multi_reduction <add>, %45, %cst_27 [1] : vector<8x8xf32> to vector<8xf32>
    %47 = vector.shape_cast %46 : vector<8xf32> to vector<8x1xf32>
    %48 = tpu.reciprocal %47 {approx = true} : vector<8x1xf32> -> vector<8x1xf32>
    %49 = vector.broadcast %48 : vector<8x1xf32> to vector<8x8xf32>
    %50 = arith.mulf %45, %49 : vector<8x8xf32>
    %51 = arith.truncf %50 : vector<8x8xf32> to vector<8x8xbf16>
    %52 = arith.truncf %35 : vector<8x32xf32> to vector<8x32xbf16>
    %cst_28 = arith.constant dense<0.000000e+00> : vector<8x32xf32>
    %53 = tpu.matmul %51, %52, %cst_28 {dimension_numbers = #tpu.dot_dimension_numbers<[1], [0], [0], [1], [0, 0, 1, 1], [], []>} : vector<8x8xbf16>, vector<8x32xbf16>, vector<8x32xf32> -> vector<8x32xf32>
    %c0_29 = arith.constant 0 : index
    %c32_30 = arith.constant 32 : index
    %54 = vector.load %arg20[%c0_29, %c32_30] : memref<8x128xf32, #tpu.memory_space<vmem>>, vector<8x32xf32>
    tpu.vector_store %arg20[%c0_29, %c32_30], %53 {strides = array<i32>} : memref<8x128xf32, #tpu.memory_space<vmem>>, vector<8x32xf32>,
    %c0_31 = arith.constant 0 : index
    %c64 = arith.constant 64 : index
    %55 = vector.load %arg19[%c0_31, %c64] : memref<8x384xf32, #tpu.memory_space<vmem>>, vector<8x32xf32>
    %c0_32 = arith.constant 0 : index
    %c192 = arith.constant 192 : index
    %56 = vector.load %arg19[%c0_32, %c192] : memref<8x384xf32, #tpu.memory_space<vmem>>, vector<8x32xf32>
    %c0_33 = arith.constant 0 : index
    %c320 = arith.constant 320 : index
    %57 = vector.load %arg19[%c0_33, %c320] : memref<8x384xf32, #tpu.memory_space<vmem>>, vector<8x32xf32>
    %58 = arith.truncf %55 : vector<8x32xf32> to vector<8x32xbf16>
    %59 = arith.truncf %56 : vector<8x32xf32> to vector<8x32xbf16>
    %cst_34 = arith.constant dense<0.000000e+00> : vector<8x8xf32>
    %60 = tpu.matmul %58, %59, %cst_34 {dimension_numbers = #tpu.dot_dimension_numbers<[1], [1], [0], [0], [0, 0, 1, 0], [], []>} : vector<8x32xbf16>, vector<8x32xbf16>, vector<8x8xf32> -> vector<8x8xf32>
    %cst_35 = arith.constant 0.176776692 : f32
    %61 = vector.broadcast %cst_35 : f32 to vector<8x8xf32>
    %62 = arith.mulf %60, %61 : vector<8x8xf32>
    %cst_36 = arith.constant dense<0xFF800000> : vector<8xf32>
    %63 = vector.multi_reduction <maximumf>, %62, %cst_36 [1] : vector<8x8xf32> to vector<8xf32>
    %64 = vector.shape_cast %63 : vector<8xf32> to vector<8x1xf32>
    %65 = vector.broadcast %64 : vector<8x1xf32> to vector<8x8xf32>
    %66 = arith.subf %62, %65 : vector<8x8xf32>
    %67 = math.exp %66 : vector<8x8xf32>
    %cst_37 = arith.constant dense<0.000000e+00> : vector<8xf32>
    %68 = vector.multi_reduction <add>, %67, %cst_37 [1] : vector<8x8xf32> to vector<8xf32>
    %69 = vector.shape_cast %68 : vector<8xf32> to vector<8x1xf32>
    %70 = tpu.reciprocal %69 {approx = true} : vector<8x1xf32> -> vector<8x1xf32>
    %71 = vector.broadcast %70 : vector<8x1xf32> to vector<8x8xf32>
    %72 = arith.mulf %67, %71 : vector<8x8xf32>
    %73 = arith.truncf %72 : vector<8x8xf32> to vector<8x8xbf16>
    %74 = arith.truncf %57 : vector<8x32xf32> to vector<8x32xbf16>
    %cst_38 = arith.constant dense<0.000000e+00> : vector<8x32xf32>
    %75 = tpu.matmul %73, %74, %cst_38 {dimension_numbers = #tpu.dot_dimension_numbers<[1], [0], [0], [1], [0, 0, 1, 1], [], []>} : vector<8x8xbf16>, vector<8x32xbf16>, vector<8x32xf32> -> vector<8x32xf32>
    %c0_39 = arith.constant 0 : index
    %c64_40 = arith.constant 64 : index
    %76 = vector.load %arg20[%c0_39, %c64_40] : memref<8x128xf32, #tpu.memory_space<vmem>>, vector<8x32xf32>
    tpu.vector_store %arg20[%c0_39, %c64_40], %75 {strides = array<i32>} : memref<8x128xf32, #tpu.memory_space<vmem>>, vector<8x32xf32>,
    %c0_41 = arith.constant 0 : index
    %c96 = arith.constant 96 : index
    %77 = vector.load %arg19[%c0_41, %c96] : memref<8x384xf32, #tpu.memory_space<vmem>>, vector<8x32xf32>
    %c0_42 = arith.constant 0 : index
    %c224 = arith.constant 224 : index
    %78 = vector.load %arg19[%c0_42, %c224] : memref<8x384xf32, #tpu.memory_space<vmem>>, vector<8x32xf32>
    %c0_43 = arith.constant 0 : index
    %c352 = arith.constant 352 : index
    %79 = vector.load %arg19[%c0_43, %c352] : memref<8x384xf32, #tpu.memory_space<vmem>>, vector<8x32xf32>
    %80 = arith.truncf %77 : vector<8x32xf32> to vector<8x32xbf16>
    %81 = arith.truncf %78 : vector<8x32xf32> to vector<8x32xbf16>
    %cst_44 = arith.constant dense<0.000000e+00> : vector<8x8xf32>
    %82 = tpu.matmul %80, %81, %cst_44 {dimension_numbers = #tpu.dot_dimension_numbers<[1], [1], [0], [0], [0, 0, 1, 0], [], []>} : vector<8x32xbf16>, vector<8x32xbf16>, vector<8x8xf32> -> vector<8x8xf32>
    %cst_45 = arith.constant 0.176776692 : f32
    %83 = vector.broadcast %cst_45 : f32 to vector<8x8xf32>
    %84 = arith.mulf %82, %83 : vector<8x8xf32>
    %cst_46 = arith.constant dense<0xFF800000> : vector<8xf32>
    %85 = vector.multi_reduction <maximumf>, %84, %cst_46 [1] : vector<8x8xf32> to vector<8xf32>
    %86 = vector.shape_cast %85 : vector<8xf32> to vector<8x1xf32>
    %87 = vector.broadcast %86 : vector<8x1xf32> to vector<8x8xf32>
    %88 = arith.subf %84, %87 : vector<8x8xf32>
    %89 = math.exp %88 : vector<8x8xf32>
    %cst_47 = arith.constant dense<0.000000e+00> : vector<8xf32>
    %90 = vector.multi_reduction <add>, %89, %cst_47 [1] : vector<8x8xf32> to vector<8xf32>
    %91 = vector.shape_cast %90 : vector<8xf32> to vector<8x1xf32>
    %92 = tpu.reciprocal %91 {approx = true} : vector<8x1xf32> -> vector<8x1xf32>
    %93 = vector.broadcast %92 : vector<8x1xf32> to vector<8x8xf32>
    %94 = arith.mulf %89, %93 : vector<8x8xf32>
    %95 = arith.truncf %94 : vector<8x8xf32> to vector<8x8xbf16>
    %96 = arith.truncf %79 : vector<8x32xf32> to vector<8x32xbf16>
    %cst_48 = arith.constant dense<0.000000e+00> : vector<8x32xf32>
    %97 = tpu.matmul %95, %96, %cst_48 {dimension_numbers = #tpu.dot_dimension_numbers<[1], [0], [0], [1], [0, 0, 1, 1], [], []>} : vector<8x8xbf16>, vector<8x32xbf16>, vector<8x32xf32> -> vector<8x32xf32>
    %c0_49 = arith.constant 0 : index
    %c96_50 = arith.constant 96 : index
    %98 = vector.load %arg20[%c0_49, %c96_50] : memref<8x128xf32, #tpu.memory_space<vmem>>, vector<8x32xf32>
    tpu.vector_store %arg20[%c0_49, %c96_50], %97 {strides = array<i32>} : memref<8x128xf32, #tpu.memory_space<vmem>>, vector<8x32xf32>,
    %c0_51 = arith.constant 0 : index
    %c0_52 = arith.constant 0 : index
    %99 = vector.load %arg20[%c0_51, %c0_52] : memref<8x128xf32, #tpu.memory_space<vmem>>, vector<8x128xf32>
    %100 = arith.truncf %99 : vector<8x128xf32> to vector<8x128xbf16>
    %c0_53 = arith.constant 0 : index
    %c0_54 = arith.constant 0 : index
    %c0_55 = arith.constant 0 : index
    %101 = vector.load %arg4[%c0_53, %c0_54, %c0_55] : memref<2x128x128xbf16, #tpu.memory_space<vmem>>, vector<1x128x128xbf16>
    %102 = vector.shape_cast %101 : vector<1x128x128xbf16> to vector<128x128xbf16>
    %cst_56 = arith.constant dense<0.000000e+00> : vector<8x128xf32>
    %103 = tpu.matmul %100, %102, %cst_56 {dimension_numbers = #tpu.dot_dimension_numbers<[1], [0], [0], [1], [0, 0, 1, 1], [], []>} : vector<8x128xbf16>, vector<128x128xbf16>, vector<8x128xf32> -> vector<8x128xf32>
    %c0_57 = arith.constant 0 : index
    %c0_58 = arith.constant 0 : index
    %c0_59 = arith.constant 0 : index
    %104 = vector.load %arg5[%c0_57, %c0_58, %c0_59] : memref<2x1x128xf32, #tpu.memory_space<vmem>>, vector<1x1x128xf32>
    %105 = vector.shape_cast %104 : vector<1x1x128xf32> to vector<1x128xf32>
    %106 = vector.broadcast %105 : vector<1x128xf32> to vector<8x128xf32>
    %107 = arith.addf %103, %106 : vector<8x128xf32>
    %108 = arith.addf %107, %1 : vector<8x128xf32>
    %cst_60 = arith.constant dense<0.000000e+00> : vector<8xf32>
    %109 = vector.multi_reduction <add>, %108, %cst_60 [1] : vector<8x128xf32> to vector<8xf32>
    %110 = vector.shape_cast %109 : vector<8xf32> to vector<8x1xf32>
    %cst_61 = arith.constant 1.280000e+02 : f32
    %111 = vector.broadcast %cst_61 : f32 to vector<8x1xf32>
    %112 = arith.divf %110, %111 : vector<8x1xf32>
    %113 = vector.broadcast %112 : vector<8x1xf32> to vector<8x128xf32>
    %114 = arith.subf %108, %113 : vector<8x128xf32>
    %115 = arith.mulf %114, %114 : vector<8x128xf32>
    %cst_62 = arith.constant dense<0.000000e+00> : vector<8xf32>
    %116 = vector.multi_reduction <add>, %115, %cst_62 [1] : vector<8x128xf32> to vector<8xf32>
    %117 = vector.shape_cast %116 : vector<8xf32> to vector<8x1xf32>
    %cst_63 = arith.constant 1.280000e+02 : f32
    %118 = vector.broadcast %cst_63 : f32 to vector<8x1xf32>
    %119 = arith.divf %117, %118 : vector<8x1xf32>
    %120 = vector.broadcast %112 : vector<8x1xf32> to vector<8x128xf32>
    %121 = arith.subf %108, %120 : vector<8x128xf32>
    %cst_64 = arith.constant 9.99999974E-6 : f32
    %122 = vector.broadcast %cst_64 : f32 to vector<8x1xf32>
    %123 = arith.addf %119, %122 : vector<8x1xf32>
    %124 = math.rsqrt %123 : vector<8x1xf32>
    %125 = vector.broadcast %124 : vector<8x1xf32> to vector<8x128xf32>
    %126 = arith.mulf %121, %125 : vector<8x128xf32>
    %c0_65 = arith.constant 0 : index
    %c0_66 = arith.constant 0 : index
    %c0_67 = arith.constant 0 : index
    %127 = vector.load %arg6[%c0_65, %c0_66, %c0_67] : memref<2x1x128xf32, #tpu.memory_space<vmem>>, vector<1x1x128xf32>
    %128 = vector.shape_cast %127 : vector<1x1x128xf32> to vector<1x128xf32>
    %129 = vector.broadcast %128 : vector<1x128xf32> to vector<8x128xf32>
    %130 = arith.mulf %126, %129 : vector<8x128xf32>
    %c0_68 = arith.constant 0 : index
    %c0_69 = arith.constant 0 : index
    %c0_70 = arith.constant 0 : index
    %131 = vector.load %arg7[%c0_68, %c0_69, %c0_70] : memref<2x1x128xf32, #tpu.memory_space<vmem>>, vector<1x1x128xf32>
    %132 = vector.shape_cast %131 : vector<1x1x128xf32> to vector<1x128xf32>
    %133 = vector.broadcast %132 : vector<1x128xf32> to vector<8x128xf32>
    %134 = arith.addf %130, %133 : vector<8x128xf32>
    %135 = arith.truncf %134 : vector<8x128xf32> to vector<8x128xbf16>
    %c0_71 = arith.constant 0 : index
    %c0_72 = arith.constant 0 : index
    %c0_73 = arith.constant 0 : index
    %136 = vector.load %arg8[%c0_71, %c0_72, %c0_73] : memref<2x128x256xbf16, #tpu.memory_space<vmem>>, vector<1x128x256xbf16>
    %137 = vector.shape_cast %136 : vector<1x128x256xbf16> to vector<128x256xbf16>
    %cst_74 = arith.constant dense<0.000000e+00> : vector<8x256xf32>
    %138 = tpu.matmul %135, %137, %cst_74 {dimension_numbers = #tpu.dot_dimension_numbers<[1], [0], [0], [1], [0, 0, 1, 1], [], []>} : vector<8x128xbf16>, vector<128x256xbf16>, vector<8x256xf32> -> vector<8x256xf32>
    %c0_75 = arith.constant 0 : index
    %c0_76 = arith.constant 0 : index
    %c0_77 = arith.constant 0 : index
    %139 = vector.load %arg9[%c0_75, %c0_76, %c0_77] : memref<2x1x256xf32, #tpu.memory_space<vmem>>, vector<1x1x256xf32>
    %140 = vector.shape_cast %139 : vector<1x1x256xf32> to vector<1x256xf32>
    %141 = vector.broadcast %140 : vector<1x256xf32> to vector<8x256xf32>
    %142 = arith.addf %138, %141 : vector<8x256xf32>
    %cst_78 = arith.constant 0.000000e+00 : f32
    %143 = vector.broadcast %cst_78 : f32 to vector<8x256xf32>
    %144 = arith.maximumf %142, %143 : vector<8x256xf32>
    %145 = arith.truncf %144 : vector<8x256xf32> to vector<8x256xbf16>
    %c0_79 = arith.constant 0 : index
    %c0_80 = arith.constant 0 : index
    %c0_81 = arith.constant 0 : index
    %146 = vector.load %arg10[%c0_79, %c0_80, %c0_81] : memref<2x256x128xbf16, #tpu.memory_space<vmem>>, vector<1x256x128xbf16>
    %147 = vector.shape_cast %146 : vector<1x256x128xbf16> to vector<256x128xbf16>
    %cst_82 = arith.constant dense<0.000000e+00> : vector<8x128xf32>
    %148 = tpu.matmul %145, %147, %cst_82 {dimension_numbers = #tpu.dot_dimension_numbers<[1], [0], [0], [1], [0, 0, 1, 1], [], []>} : vector<8x256xbf16>, vector<256x128xbf16>, vector<8x128xf32> -> vector<8x128xf32>
    %c0_83 = arith.constant 0 : index
    %c0_84 = arith.constant 0 : index
    %c0_85 = arith.constant 0 : index
    %149 = vector.load %arg11[%c0_83, %c0_84, %c0_85] : memref<2x1x128xf32, #tpu.memory_space<vmem>>, vector<1x1x128xf32>
    %150 = vector.shape_cast %149 : vector<1x1x128xf32> to vector<1x128xf32>
    %151 = vector.broadcast %150 : vector<1x128xf32> to vector<8x128xf32>
    %152 = arith.addf %148, %151 : vector<8x128xf32>
    %153 = arith.addf %152, %134 : vector<8x128xf32>
    %cst_86 = arith.constant dense<0.000000e+00> : vector<8xf32>
    %154 = vector.multi_reduction <add>, %153, %cst_86 [1] : vector<8x128xf32> to vector<8xf32>
    %155 = vector.shape_cast %154 : vector<8xf32> to vector<8x1xf32>
    %cst_87 = arith.constant 1.280000e+02 : f32
    %156 = vector.broadcast %cst_87 : f32 to vector<8x1xf32>
    %157 = arith.divf %155, %156 : vector<8x1xf32>
    %158 = vector.broadcast %157 : vector<8x1xf32> to vector<8x128xf32>
    %159 = arith.subf %153, %158 : vector<8x128xf32>
    %160 = arith.mulf %159, %159 : vector<8x128xf32>
    %cst_88 = arith.constant dense<0.000000e+00> : vector<8xf32>
    %161 = vector.multi_reduction <add>, %160, %cst_88 [1] : vector<8x128xf32> to vector<8xf32>
    %162 = vector.shape_cast %161 : vector<8xf32> to vector<8x1xf32>
    %cst_89 = arith.constant 1.280000e+02 : f32
    %163 = vector.broadcast %cst_89 : f32 to vector<8x1xf32>
    %164 = arith.divf %162, %163 : vector<8x1xf32>
    %165 = vector.broadcast %157 : vector<8x1xf32> to vector<8x128xf32>
    %166 = arith.subf %153, %165 : vector<8x128xf32>
    %cst_90 = arith.constant 9.99999974E-6 : f32
    %167 = vector.broadcast %cst_90 : f32 to vector<8x1xf32>
    %168 = arith.addf %164, %167 : vector<8x1xf32>
    %169 = math.rsqrt %168 : vector<8x1xf32>
    %170 = vector.broadcast %169 : vector<8x1xf32> to vector<8x128xf32>
    %171 = arith.mulf %166, %170 : vector<8x128xf32>
    %c0_91 = arith.constant 0 : index
    %c0_92 = arith.constant 0 : index
    %c0_93 = arith.constant 0 : index
    %172 = vector.load %arg12[%c0_91, %c0_92, %c0_93] : memref<2x1x128xf32, #tpu.memory_space<vmem>>, vector<1x1x128xf32>
    %173 = vector.shape_cast %172 : vector<1x1x128xf32> to vector<1x128xf32>
    %174 = vector.broadcast %173 : vector<1x128xf32> to vector<8x128xf32>
    %175 = arith.mulf %171, %174 : vector<8x128xf32>
    %c0_94 = arith.constant 0 : index
    %c0_95 = arith.constant 0 : index
    %c0_96 = arith.constant 0 : index
    %176 = vector.load %arg13[%c0_94, %c0_95, %c0_96] : memref<2x1x128xf32, #tpu.memory_space<vmem>>, vector<1x1x128xf32>
    %177 = vector.shape_cast %176 : vector<1x1x128xf32> to vector<1x128xf32>
    %178 = vector.broadcast %177 : vector<1x128xf32> to vector<8x128xf32>
    %179 = arith.addf %175, %178 : vector<8x128xf32>
    %180 = arith.truncf %179 : vector<8x128xf32> to vector<8x128xbf16>
    %c1 = arith.constant 1 : index
    %c0_97 = arith.constant 0 : index
    %c0_98 = arith.constant 0 : index
    %181 = vector.load %arg2[%c1, %c0_97, %c0_98] : memref<2x128x384xbf16, #tpu.memory_space<vmem>>, vector<1x128x384xbf16>
    %182 = vector.shape_cast %181 : vector<1x128x384xbf16> to vector<128x384xbf16>
    %cst_99 = arith.constant dense<0.000000e+00> : vector<8x384xf32>
    %183 = tpu.matmul %180, %182, %cst_99 {dimension_numbers = #tpu.dot_dimension_numbers<[1], [0], [0], [1], [0, 0, 1, 1], [], []>} : vector<8x128xbf16>, vector<128x384xbf16>, vector<8x384xf32> -> vector<8x384xf32>
    %c1_100 = arith.constant 1 : index
    %c0_101 = arith.constant 0 : index
    %c0_102 = arith.constant 0 : index
    %184 = vector.load %arg3[%c1_100, %c0_101, %c0_102] : memref<2x1x384xf32, #tpu.memory_space<vmem>>, vector<1x1x384xf32>
    %185 = vector.shape_cast %184 : vector<1x1x384xf32> to vector<1x384xf32>
    %186 = vector.broadcast %185 : vector<1x384xf32> to vector<8x384xf32>
    %187 = arith.addf %183, %186 : vector<8x384xf32>
    %c0_103 = arith.constant 0 : index
    %c0_104 = arith.constant 0 : index
    %188 = vector.load %arg19[%c0_103, %c0_104] : memref<8x384xf32, #tpu.memory_space<vmem>>, vector<8x384xf32>
    tpu.vector_store %arg19[%c0_103, %c0_104], %187 {strides = array<i32>} : memref<8x384xf32, #tpu.memory_space<vmem>>, vector<8x384xf32>,
    %c0_105 = arith.constant 0 : index
    %c0_106 = arith.constant 0 : index
    %189 = vector.load %arg19[%c0_105, %c0_106] : memref<8x384xf32, #tpu.memory_space<vmem>>, vector<8x32xf32>
    %c0_107 = arith.constant 0 : index
    %c128_108 = arith.constant 128 : index
    %190 = vector.load %arg19[%c0_107, %c128_108] : memref<8x384xf32, #tpu.memory_space<vmem>>, vector<8x32xf32>
    %c0_109 = arith.constant 0 : index
    %c256_110 = arith.constant 256 : index
    %191 = vector.load %arg19[%c0_109, %c256_110] : memref<8x384xf32, #tpu.memory_space<vmem>>, vector<8x32xf32>
    %192 = arith.truncf %189 : vector<8x32xf32> to vector<8x32xbf16>
    %193 = arith.truncf %190 : vector<8x32xf32> to vector<8x32xbf16>
    %cst_111 = arith.constant dense<0.000000e+00> : vector<8x8xf32>
    %194 = tpu.matmul %192, %193, %cst_111 {dimension_numbers = #tpu.dot_dimension_numbers<[1], [1], [0], [0], [0, 0, 1, 0], [], []>} : vector<8x32xbf16>, vector<8x32xbf16>, vector<8x8xf32> -> vector<8x8xf32>
    %cst_112 = arith.constant 0.176776692 : f32
    %195 = vector.broadcast %cst_112 : f32 to vector<8x8xf32>
    %196 = arith.mulf %194, %195 : vector<8x8xf32>
    %cst_113 = arith.constant dense<0xFF800000> : vector<8xf32>
    %197 = vector.multi_reduction <maximumf>, %196, %cst_113 [1] : vector<8x8xf32> to vector<8xf32>
    %198 = vector.shape_cast %197 : vector<8xf32> to vector<8x1xf32>
    %199 = vector.broadcast %198 : vector<8x1xf32> to vector<8x8xf32>
    %200 = arith.subf %196, %199 : vector<8x8xf32>
    %201 = math.exp %200 : vector<8x8xf32>
    %cst_114 = arith.constant dense<0.000000e+00> : vector<8xf32>
    %202 = vector.multi_reduction <add>, %201, %cst_114 [1] : vector<8x8xf32> to vector<8xf32>
    %203 = vector.shape_cast %202 : vector<8xf32> to vector<8x1xf32>
    %204 = tpu.reciprocal %203 {approx = true} : vector<8x1xf32> -> vector<8x1xf32>
    %205 = vector.broadcast %204 : vector<8x1xf32> to vector<8x8xf32>
    %206 = arith.mulf %201, %205 : vector<8x8xf32>
    %207 = arith.truncf %206 : vector<8x8xf32> to vector<8x8xbf16>
    %208 = arith.truncf %191 : vector<8x32xf32> to vector<8x32xbf16>
    %cst_115 = arith.constant dense<0.000000e+00> : vector<8x32xf32>
    %209 = tpu.matmul %207, %208, %cst_115 {dimension_numbers = #tpu.dot_dimension_numbers<[1], [0], [0], [1], [0, 0, 1, 1], [], []>} : vector<8x8xbf16>, vector<8x32xbf16>, vector<8x32xf32> -> vector<8x32xf32>
    %c0_116 = arith.constant 0 : index
    %c0_117 = arith.constant 0 : index
    %210 = vector.load %arg20[%c0_116, %c0_117] : memref<8x128xf32, #tpu.memory_space<vmem>>, vector<8x32xf32>
    tpu.vector_store %arg20[%c0_116, %c0_117], %209 {strides = array<i32>} : memref<8x128xf32, #tpu.memory_space<vmem>>, vector<8x32xf32>,
    %c0_118 = arith.constant 0 : index
    %c32_119 = arith.constant 32 : index
    %211 = vector.load %arg19[%c0_118, %c32_119] : memref<8x384xf32, #tpu.memory_space<vmem>>, vector<8x32xf32>
    %c0_120 = arith.constant 0 : index
    %c160_121 = arith.constant 160 : index
    %212 = vector.load %arg19[%c0_120, %c160_121] : memref<8x384xf32, #tpu.memory_space<vmem>>, vector<8x32xf32>
    %c0_122 = arith.constant 0 : index
    %c288_123 = arith.constant 288 : index
    %213 = vector.load %arg19[%c0_122, %c288_123] : memref<8x384xf32, #tpu.memory_space<vmem>>, vector<8x32xf32>
    %214 = arith.truncf %211 : vector<8x32xf32> to vector<8x32xbf16>
    %215 = arith.truncf %212 : vector<8x32xf32> to vector<8x32xbf16>
    %cst_124 = arith.constant dense<0.000000e+00> : vector<8x8xf32>
    %216 = tpu.matmul %214, %215, %cst_124 {dimension_numbers = #tpu.dot_dimension_numbers<[1], [1], [0], [0], [0, 0, 1, 0], [], []>} : vector<8x32xbf16>, vector<8x32xbf16>, vector<8x8xf32> -> vector<8x8xf32>
    %cst_125 = arith.constant 0.176776692 : f32
    %217 = vector.broadcast %cst_125 : f32 to vector<8x8xf32>
    %218 = arith.mulf %216, %217 : vector<8x8xf32>
    %cst_126 = arith.constant dense<0xFF800000> : vector<8xf32>
    %219 = vector.multi_reduction <maximumf>, %218, %cst_126 [1] : vector<8x8xf32> to vector<8xf32>
    %220 = vector.shape_cast %219 : vector<8xf32> to vector<8x1xf32>
    %221 = vector.broadcast %220 : vector<8x1xf32> to vector<8x8xf32>
    %222 = arith.subf %218, %221 : vector<8x8xf32>
    %223 = math.exp %222 : vector<8x8xf32>
    %cst_127 = arith.constant dense<0.000000e+00> : vector<8xf32>
    %224 = vector.multi_reduction <add>, %223, %cst_127 [1] : vector<8x8xf32> to vector<8xf32>
    %225 = vector.shape_cast %224 : vector<8xf32> to vector<8x1xf32>
    %226 = tpu.reciprocal %225 {approx = true} : vector<8x1xf32> -> vector<8x1xf32>
    %227 = vector.broadcast %226 : vector<8x1xf32> to vector<8x8xf32>
    %228 = arith.mulf %223, %227 : vector<8x8xf32>
    %229 = arith.truncf %228 : vector<8x8xf32> to vector<8x8xbf16>
    %230 = arith.truncf %213 : vector<8x32xf32> to vector<8x32xbf16>
    %cst_128 = arith.constant dense<0.000000e+00> : vector<8x32xf32>
    %231 = tpu.matmul %229, %230, %cst_128 {dimension_numbers = #tpu.dot_dimension_numbers<[1], [0], [0], [1], [0, 0, 1, 1], [], []>} : vector<8x8xbf16>, vector<8x32xbf16>, vector<8x32xf32> -> vector<8x32xf32>
    %c0_129 = arith.constant 0 : index
    %c32_130 = arith.constant 32 : index
    %232 = vector.load %arg20[%c0_129, %c32_130] : memref<8x128xf32, #tpu.memory_space<vmem>>, vector<8x32xf32>
    tpu.vector_store %arg20[%c0_129, %c32_130], %231 {strides = array<i32>} : memref<8x128xf32, #tpu.memory_space<vmem>>, vector<8x32xf32>,
    %c0_131 = arith.constant 0 : index
    %c64_132 = arith.constant 64 : index
    %233 = vector.load %arg19[%c0_131, %c64_132] : memref<8x384xf32, #tpu.memory_space<vmem>>, vector<8x32xf32>
    %c0_133 = arith.constant 0 : index
    %c192_134 = arith.constant 192 : index
    %234 = vector.load %arg19[%c0_133, %c192_134] : memref<8x384xf32, #tpu.memory_space<vmem>>, vector<8x32xf32>
    %c0_135 = arith.constant 0 : index
    %c320_136 = arith.constant 320 : index
    %235 = vector.load %arg19[%c0_135, %c320_136] : memref<8x384xf32, #tpu.memory_space<vmem>>, vector<8x32xf32>
    %236 = arith.truncf %233 : vector<8x32xf32> to vector<8x32xbf16>
    %237 = arith.truncf %234 : vector<8x32xf32> to vector<8x32xbf16>
    %cst_137 = arith.constant dense<0.000000e+00> : vector<8x8xf32>
    %238 = tpu.matmul %236, %237, %cst_137 {dimension_numbers = #tpu.dot_dimension_numbers<[1], [1], [0], [0], [0, 0, 1, 0], [], []>} : vector<8x32xbf16>, vector<8x32xbf16>, vector<8x8xf32> -> vector<8x8xf32>
    %cst_138 = arith.constant 0.176776692 : f32
    %239 = vector.broadcast %cst_138 : f32 to vector<8x8xf32>
    %240 = arith.mulf %238, %239 : vector<8x8xf32>
    %cst_139 = arith.constant dense<0xFF800000> : vector<8xf32>
    %241 = vector.multi_reduction <maximumf>, %240, %cst_139 [1] : vector<8x8xf32> to vector<8xf32>
    %242 = vector.shape_cast %241 : vector<8xf32> to vector<8x1xf32>
    %243 = vector.broadcast %242 : vector<8x1xf32> to vector<8x8xf32>
    %244 = arith.subf %240, %243 : vector<8x8xf32>
    %245 = math.exp %244 : vector<8x8xf32>
    %cst_140 = arith.constant dense<0.000000e+00> : vector<8xf32>
    %246 = vector.multi_reduction <add>, %245, %cst_140 [1] : vector<8x8xf32> to vector<8xf32>
    %247 = vector.shape_cast %246 : vector<8xf32> to vector<8x1xf32>
    %248 = tpu.reciprocal %247 {approx = true} : vector<8x1xf32> -> vector<8x1xf32>
    %249 = vector.broadcast %248 : vector<8x1xf32> to vector<8x8xf32>
    %250 = arith.mulf %245, %249 : vector<8x8xf32>
    %251 = arith.truncf %250 : vector<8x8xf32> to vector<8x8xbf16>
    %252 = arith.truncf %235 : vector<8x32xf32> to vector<8x32xbf16>
    %cst_141 = arith.constant dense<0.000000e+00> : vector<8x32xf32>
    %253 = tpu.matmul %251, %252, %cst_141 {dimension_numbers = #tpu.dot_dimension_numbers<[1], [0], [0], [1], [0, 0, 1, 1], [], []>} : vector<8x8xbf16>, vector<8x32xbf16>, vector<8x32xf32> -> vector<8x32xf32>
    %c0_142 = arith.constant 0 : index
    %c64_143 = arith.constant 64 : index
    %254 = vector.load %arg20[%c0_142, %c64_143] : memref<8x128xf32, #tpu.memory_space<vmem>>, vector<8x32xf32>
    tpu.vector_store %arg20[%c0_142, %c64_143], %253 {strides = array<i32>} : memref<8x128xf32, #tpu.memory_space<vmem>>, vector<8x32xf32>,
    %c0_144 = arith.constant 0 : index
    %c96_145 = arith.constant 96 : index
    %255 = vector.load %arg19[%c0_144, %c96_145] : memref<8x384xf32, #tpu.memory_space<vmem>>, vector<8x32xf32>
    %c0_146 = arith.constant 0 : index
    %c224_147 = arith.constant 224 : index
    %256 = vector.load %arg19[%c0_146, %c224_147] : memref<8x384xf32, #tpu.memory_space<vmem>>, vector<8x32xf32>
    %c0_148 = arith.constant 0 : index
    %c352_149 = arith.constant 352 : index
    %257 = vector.load %arg19[%c0_148, %c352_149] : memref<8x384xf32, #tpu.memory_space<vmem>>, vector<8x32xf32>
    %258 = arith.truncf %255 : vector<8x32xf32> to vector<8x32xbf16>
    %259 = arith.truncf %256 : vector<8x32xf32> to vector<8x32xbf16>
    %cst_150 = arith.constant dense<0.000000e+00> : vector<8x8xf32>
    %260 = tpu.matmul %258, %259, %cst_150 {dimension_numbers = #tpu.dot_dimension_numbers<[1], [1], [0], [0], [0, 0, 1, 0], [], []>} : vector<8x32xbf16>, vector<8x32xbf16>, vector<8x8xf32> -> vector<8x8xf32>
    %cst_151 = arith.constant 0.176776692 : f32
    %261 = vector.broadcast %cst_151 : f32 to vector<8x8xf32>
    %262 = arith.mulf %260, %261 : vector<8x8xf32>
    %cst_152 = arith.constant dense<0xFF800000> : vector<8xf32>
    %263 = vector.multi_reduction <maximumf>, %262, %cst_152 [1] : vector<8x8xf32> to vector<8xf32>
    %264 = vector.shape_cast %263 : vector<8xf32> to vector<8x1xf32>
    %265 = vector.broadcast %264 : vector<8x1xf32> to vector<8x8xf32>
    %266 = arith.subf %262, %265 : vector<8x8xf32>
    %267 = math.exp %266 : vector<8x8xf32>
    %cst_153 = arith.constant dense<0.000000e+00> : vector<8xf32>
    %268 = vector.multi_reduction <add>, %267, %cst_153 [1] : vector<8x8xf32> to vector<8xf32>
    %269 = vector.shape_cast %268 : vector<8xf32> to vector<8x1xf32>
    %270 = tpu.reciprocal %269 {approx = true} : vector<8x1xf32> -> vector<8x1xf32>
    %271 = vector.broadcast %270 : vector<8x1xf32> to vector<8x8xf32>
    %272 = arith.mulf %267, %271 : vector<8x8xf32>
    %273 = arith.truncf %272 : vector<8x8xf32> to vector<8x8xbf16>
    %274 = arith.truncf %257 : vector<8x32xf32> to vector<8x32xbf16>
    %cst_154 = arith.constant dense<0.000000e+00> : vector<8x32xf32>
    %275 = tpu.matmul %273, %274, %cst_154 {dimension_numbers = #tpu.dot_dimension_numbers<[1], [0], [0], [1], [0, 0, 1, 1], [], []>} : vector<8x8xbf16>, vector<8x32xbf16>, vector<8x32xf32> -> vector<8x32xf32>
    %c0_155 = arith.constant 0 : index
    %c96_156 = arith.constant 96 : index
    %276 = vector.load %arg20[%c0_155, %c96_156] : memref<8x128xf32, #tpu.memory_space<vmem>>, vector<8x32xf32>
    tpu.vector_store %arg20[%c0_155, %c96_156], %275 {strides = array<i32>} : memref<8x128xf32, #tpu.memory_space<vmem>>, vector<8x32xf32>,
    %c0_157 = arith.constant 0 : index
    %c0_158 = arith.constant 0 : index
    %277 = vector.load %arg20[%c0_157, %c0_158] : memref<8x128xf32, #tpu.memory_space<vmem>>, vector<8x128xf32>
    %278 = arith.truncf %277 : vector<8x128xf32> to vector<8x128xbf16>
    %c1_159 = arith.constant 1 : index
    %c0_160 = arith.constant 0 : index
    %c0_161 = arith.constant 0 : index
    %279 = vector.load %arg4[%c1_159, %c0_160, %c0_161] : memref<2x128x128xbf16, #tpu.memory_space<vmem>>, vector<1x128x128xbf16>
    %280 = vector.shape_cast %279 : vector<1x128x128xbf16> to vector<128x128xbf16>
    %cst_162 = arith.constant dense<0.000000e+00> : vector<8x128xf32>
    %281 = tpu.matmul %278, %280, %cst_162 {dimension_numbers = #tpu.dot_dimension_numbers<[1], [0], [0], [1], [0, 0, 1, 1], [], []>} : vector<8x128xbf16>, vector<128x128xbf16>, vector<8x128xf32> -> vector<8x128xf32>
    %c1_163 = arith.constant 1 : index
    %c0_164 = arith.constant 0 : index
    %c0_165 = arith.constant 0 : index
    %282 = vector.load %arg5[%c1_163, %c0_164, %c0_165] : memref<2x1x128xf32, #tpu.memory_space<vmem>>, vector<1x1x128xf32>
    %283 = vector.shape_cast %282 : vector<1x1x128xf32> to vector<1x128xf32>
    %284 = vector.broadcast %283 : vector<1x128xf32> to vector<8x128xf32>
    %285 = arith.addf %281, %284 : vector<8x128xf32>
    %286 = arith.addf %285, %179 : vector<8x128xf32>
    %cst_166 = arith.constant dense<0.000000e+00> : vector<8xf32>
    %287 = vector.multi_reduction <add>, %286, %cst_166 [1] : vector<8x128xf32> to vector<8xf32>
    %288 = vector.shape_cast %287 : vector<8xf32> to vector<8x1xf32>
    %cst_167 = arith.constant 1.280000e+02 : f32
    %289 = vector.broadcast %cst_167 : f32 to vector<8x1xf32>
    %290 = arith.divf %288, %289 : vector<8x1xf32>
    %291 = vector.broadcast %290 : vector<8x1xf32> to vector<8x128xf32>
    %292 = arith.subf %286, %291 : vector<8x128xf32>
    %293 = arith.mulf %292, %292 : vector<8x128xf32>
    %cst_168 = arith.constant dense<0.000000e+00> : vector<8xf32>
    %294 = vector.multi_reduction <add>, %293, %cst_168 [1] : vector<8x128xf32> to vector<8xf32>
    %295 = vector.shape_cast %294 : vector<8xf32> to vector<8x1xf32>
    %cst_169 = arith.constant 1.280000e+02 : f32
    %296 = vector.broadcast %cst_169 : f32 to vector<8x1xf32>
    %297 = arith.divf %295, %296 : vector<8x1xf32>
    %298 = vector.broadcast %290 : vector<8x1xf32> to vector<8x128xf32>
    %299 = arith.subf %286, %298 : vector<8x128xf32>
    %cst_170 = arith.constant 9.99999974E-6 : f32
    %300 = vector.broadcast %cst_170 : f32 to vector<8x1xf32>
    %301 = arith.addf %297, %300 : vector<8x1xf32>
    %302 = math.rsqrt %301 : vector<8x1xf32>
    %303 = vector.broadcast %302 : vector<8x1xf32> to vector<8x128xf32>
    %304 = arith.mulf %299, %303 : vector<8x128xf32>
    %c1_171 = arith.constant 1 : index
    %c0_172 = arith.constant 0 : index
    %c0_173 = arith.constant 0 : index
    %305 = vector.load %arg6[%c1_171, %c0_172, %c0_173] : memref<2x1x128xf32, #tpu.memory_space<vmem>>, vector<1x1x128xf32>
    %306 = vector.shape_cast %305 : vector<1x1x128xf32> to vector<1x128xf32>
    %307 = vector.broadcast %306 : vector<1x128xf32> to vector<8x128xf32>
    %308 = arith.mulf %304, %307 : vector<8x128xf32>
    %c1_174 = arith.constant 1 : index
    %c0_175 = arith.constant 0 : index
    %c0_176 = arith.constant 0 : index
    %309 = vector.load %arg7[%c1_174, %c0_175, %c0_176] : memref<2x1x128xf32, #tpu.memory_space<vmem>>, vector<1x1x128xf32>
    %310 = vector.shape_cast %309 : vector<1x1x128xf32> to vector<1x128xf32>
    %311 = vector.broadcast %310 : vector<1x128xf32> to vector<8x128xf32>
    %312 = arith.addf %308, %311 : vector<8x128xf32>
    %313 = arith.truncf %312 : vector<8x128xf32> to vector<8x128xbf16>
    %c1_177 = arith.constant 1 : index
    %c0_178 = arith.constant 0 : index
    %c0_179 = arith.constant 0 : index
    %314 = vector.load %arg8[%c1_177, %c0_178, %c0_179] : memref<2x128x256xbf16, #tpu.memory_space<vmem>>, vector<1x128x256xbf16>
    %315 = vector.shape_cast %314 : vector<1x128x256xbf16> to vector<128x256xbf16>
    %cst_180 = arith.constant dense<0.000000e+00> : vector<8x256xf32>
    %316 = tpu.matmul %313, %315, %cst_180 {dimension_numbers = #tpu.dot_dimension_numbers<[1], [0], [0], [1], [0, 0, 1, 1], [], []>} : vector<8x128xbf16>, vector<128x256xbf16>, vector<8x256xf32> -> vector<8x256xf32>
    %c1_181 = arith.constant 1 : index
    %c0_182 = arith.constant 0 : index
    %c0_183 = arith.constant 0 : index
    %317 = vector.load %arg9[%c1_181, %c0_182, %c0_183] : memref<2x1x256xf32, #tpu.memory_space<vmem>>, vector<1x1x256xf32>
    %318 = vector.shape_cast %317 : vector<1x1x256xf32> to vector<1x256xf32>
    %319 = vector.broadcast %318 : vector<1x256xf32> to vector<8x256xf32>
    %320 = arith.addf %316, %319 : vector<8x256xf32>
    %cst_184 = arith.constant 0.000000e+00 : f32
    %321 = vector.broadcast %cst_184 : f32 to vector<8x256xf32>
    %322 = arith.maximumf %320, %321 : vector<8x256xf32>
    %323 = arith.truncf %322 : vector<8x256xf32> to vector<8x256xbf16>
    %c1_185 = arith.constant 1 : index
    %c0_186 = arith.constant 0 : index
    %c0_187 = arith.constant 0 : index
    %324 = vector.load %arg10[%c1_185, %c0_186, %c0_187] : memref<2x256x128xbf16, #tpu.memory_space<vmem>>, vector<1x256x128xbf16>
    %325 = vector.shape_cast %324 : vector<1x256x128xbf16> to vector<256x128xbf16>
    %cst_188 = arith.constant dense<0.000000e+00> : vector<8x128xf32>
    %326 = tpu.matmul %323, %325, %cst_188 {dimension_numbers = #tpu.dot_dimension_numbers<[1], [0], [0], [1], [0, 0, 1, 1], [], []>} : vector<8x256xbf16>, vector<256x128xbf16>, vector<8x128xf32> -> vector<8x128xf32>
    %c1_189 = arith.constant 1 : index
    %c0_190 = arith.constant 0 : index
    %c0_191 = arith.constant 0 : index
    %327 = vector.load %arg11[%c1_189, %c0_190, %c0_191] : memref<2x1x128xf32, #tpu.memory_space<vmem>>, vector<1x1x128xf32>
    %328 = vector.shape_cast %327 : vector<1x1x128xf32> to vector<1x128xf32>
    %329 = vector.broadcast %328 : vector<1x128xf32> to vector<8x128xf32>
    %330 = arith.addf %326, %329 : vector<8x128xf32>
    %331 = arith.addf %330, %312 : vector<8x128xf32>
    %cst_192 = arith.constant dense<0.000000e+00> : vector<8xf32>
    %332 = vector.multi_reduction <add>, %331, %cst_192 [1] : vector<8x128xf32> to vector<8xf32>
    %333 = vector.shape_cast %332 : vector<8xf32> to vector<8x1xf32>
    %cst_193 = arith.constant 1.280000e+02 : f32
    %334 = vector.broadcast %cst_193 : f32 to vector<8x1xf32>
    %335 = arith.divf %333, %334 : vector<8x1xf32>
    %336 = vector.broadcast %335 : vector<8x1xf32> to vector<8x128xf32>
    %337 = arith.subf %331, %336 : vector<8x128xf32>
    %338 = arith.mulf %337, %337 : vector<8x128xf32>
    %cst_194 = arith.constant dense<0.000000e+00> : vector<8xf32>
    %339 = vector.multi_reduction <add>, %338, %cst_194 [1] : vector<8x128xf32> to vector<8xf32>
    %340 = vector.shape_cast %339 : vector<8xf32> to vector<8x1xf32>
    %cst_195 = arith.constant 1.280000e+02 : f32
    %341 = vector.broadcast %cst_195 : f32 to vector<8x1xf32>
    %342 = arith.divf %340, %341 : vector<8x1xf32>
    %343 = vector.broadcast %335 : vector<8x1xf32> to vector<8x128xf32>
    %344 = arith.subf %331, %343 : vector<8x128xf32>
    %cst_196 = arith.constant 9.99999974E-6 : f32
    %345 = vector.broadcast %cst_196 : f32 to vector<8x1xf32>
    %346 = arith.addf %342, %345 : vector<8x1xf32>
    %347 = math.rsqrt %346 : vector<8x1xf32>
    %348 = vector.broadcast %347 : vector<8x1xf32> to vector<8x128xf32>
    %349 = arith.mulf %344, %348 : vector<8x128xf32>
    %c1_197 = arith.constant 1 : index
    %c0_198 = arith.constant 0 : index
    %c0_199 = arith.constant 0 : index
    %350 = vector.load %arg12[%c1_197, %c0_198, %c0_199] : memref<2x1x128xf32, #tpu.memory_space<vmem>>, vector<1x1x128xf32>
    %351 = vector.shape_cast %350 : vector<1x1x128xf32> to vector<1x128xf32>
    %352 = vector.broadcast %351 : vector<1x128xf32> to vector<8x128xf32>
    %353 = arith.mulf %349, %352 : vector<8x128xf32>
    %c1_200 = arith.constant 1 : index
    %c0_201 = arith.constant 0 : index
    %c0_202 = arith.constant 0 : index
    %354 = vector.load %arg13[%c1_200, %c0_201, %c0_202] : memref<2x1x128xf32, #tpu.memory_space<vmem>>, vector<1x1x128xf32>
    %355 = vector.shape_cast %354 : vector<1x1x128xf32> to vector<1x128xf32>
    %356 = vector.broadcast %355 : vector<1x128xf32> to vector<8x128xf32>
    %357 = arith.addf %353, %356 : vector<8x128xf32>
    %cst_203 = arith.constant dense<0.000000e+00> : vector<128xf32>
    %358 = vector.multi_reduction <add>, %357, %cst_203 [0] : vector<8x128xf32> to vector<128xf32>
    %359 = vector.shape_cast %358 : vector<128xf32> to vector<1x128xf32>
    %cst_204 = arith.constant 8.000000e+00 : f32
    %360 = vector.broadcast %cst_204 : f32 to vector<1x128xf32>
    %361 = arith.divf %359, %360 : vector<1x128xf32>
    %362 = arith.truncf %361 : vector<1x128xf32> to vector<1x128xbf16>
    %c0_205 = arith.constant 0 : index
    %c0_206 = arith.constant 0 : index
    %363 = vector.load %arg14[%c0_205, %c0_206] : memref<128x1024xbf16, #tpu.memory_space<vmem>>, vector<128x1024xbf16>
    %cst_207 = arith.constant dense<0.000000e+00> : vector<1x1024xf32>
    %364 = tpu.matmul %362, %363, %cst_207 {dimension_numbers = #tpu.dot_dimension_numbers<[1], [0], [0], [1], [0, 0, 1, 1], [], []>} : vector<1x128xbf16>, vector<128x1024xbf16>, vector<1x1024xf32> -> vector<1x1024xf32>
    %c0_208 = arith.constant 0 : index
    %c0_209 = arith.constant 0 : index
    %365 = vector.load %arg15[%c0_208, %c0_209] : memref<1x1024xf32, #tpu.memory_space<vmem>>, vector<1x1024xf32>
    %366 = arith.addf %364, %365 : vector<1x1024xf32>
    %cst_210 = arith.constant 0.000000e+00 : f32
    %367 = vector.broadcast %cst_210 : f32 to vector<1x1024xf32>
    %368 = arith.cmpf oge, %366, %367 : vector<1x1024xf32>
    %cst_211 = arith.constant 0.00999999977 : f32
    %369 = vector.broadcast %cst_211 : f32 to vector<1x1024xf32>
    %370 = arith.mulf %369, %366 : vector<1x1024xf32>
    %371 = arith.select %368, %366, %370 : vector<1x1024xi1>, vector<1x1024xf32>
    %372 = arith.truncf %371 : vector<1x1024xf32> to vector<1x1024xbf16>
    %c0_212 = arith.constant 0 : index
    %c0_213 = arith.constant 0 : index
    %373 = vector.load %arg16[%c0_212, %c0_213] : memref<1024x128xbf16, #tpu.memory_space<vmem>>, vector<1024x128xbf16>
    %cst_214 = arith.constant dense<0.000000e+00> : vector<1x128xf32>
    %374 = tpu.matmul %372, %373, %cst_214 {dimension_numbers = #tpu.dot_dimension_numbers<[1], [0], [0], [1], [0, 0, 1, 1], [], []>} : vector<1x1024xbf16>, vector<1024x128xbf16>, vector<1x128xf32> -> vector<1x128xf32>
    %c0_215 = arith.constant 0 : index
    %c0_216 = arith.constant 0 : index
    %375 = vector.load %arg17[%c0_215, %c0_216] : memref<1x128xf32, #tpu.memory_space<vmem>>, vector<1x128xf32>
    %376 = arith.addf %374, %375 : vector<1x128xf32>
    %377 = vector.shape_cast %376 : vector<1x128xf32> to vector<1x128xf32>
    %378 = vector.broadcast %377 : vector<1x128xf32> to vector<8x128xf32>
    %c0_217 = arith.constant 0 : index
    %c0_218 = arith.constant 0 : index
    %c0_219 = arith.constant 0 : index
    %379 = vector.load %arg18[%c0_217, %c0_218, %c0_219] : memref<1x8x128xf32, #tpu.memory_space<vmem>>, vector<1x8x128xf32>
    %380 = vector.shape_cast %379 : vector<1x8x128xf32> to vector<8x128xf32>
    %381 = vector.shape_cast %378 : vector<8x128xf32> to vector<1x8x128xf32>
    tpu.vector_store %arg18[%c0_217, %c0_218, %c0_219], %381 {strides = array<i32>} : memref<1x8x128xf32, #tpu.memory_space<vmem>>, vector<1x8x128xf32>,
    return
  }
  func.func @transform_0(%arg0: i32) -> (i32, i32, i32) {
    %c0_i32 = arith.constant 0 : i32
    %c0_i32_0 = arith.constant 0 : i32
    %c0_i32_1 = arith.constant 0 : i32
    return %arg0, %c0_i32, %c0_i32_0 : i32, i32, i32
  }
  func.func @transform_1(%arg0: i32) -> (i32, i32, i32) {
    %c0_i32 = arith.constant 0 : i32
    %c0_i32_0 = arith.constant 0 : i32
    %c0_i32_1 = arith.constant 0 : i32
    %c0_i32_2 = arith.constant 0 : i32
    return %c0_i32, %c0_i32_0, %c0_i32_1 : i32, i32, i32
  }
  func.func @transform_2(%arg0: i32) -> (i32, i32, i32) {
    %c0_i32 = arith.constant 0 : i32
    %c0_i32_0 = arith.constant 0 : i32
    %c0_i32_1 = arith.constant 0 : i32
    %c0_i32_2 = arith.constant 0 : i32
    return %c0_i32, %c0_i32_0, %c0_i32_1 : i32, i32, i32
  }
  func.func @transform_3(%arg0: i32) -> (i32, i32, i32) {
    %c0_i32 = arith.constant 0 : i32
    %c0_i32_0 = arith.constant 0 : i32
    %c0_i32_1 = arith.constant 0 : i32
    %c0_i32_2 = arith.constant 0 : i32
    return %c0_i32, %c0_i32_0, %c0_i32_1 : i32, i32, i32
  }
  func.func @transform_4(%arg0: i32) -> (i32, i32, i32) {
    %c0_i32 = arith.constant 0 : i32
    %c0_i32_0 = arith.constant 0 : i32
    %c0_i32_1 = arith.constant 0 : i32
    %c0_i32_2 = arith.constant 0 : i32
    return %c0_i32, %c0_i32_0, %c0_i32_1 : i32, i32, i32
  }
  func.func @transform_5(%arg0: i32) -> (i32, i32, i32) {
    %c0_i32 = arith.constant 0 : i32
    %c0_i32_0 = arith.constant 0 : i32
    %c0_i32_1 = arith.constant 0 : i32
    %c0_i32_2 = arith.constant 0 : i32
    return %c0_i32, %c0_i32_0, %c0_i32_1 : i32, i32, i32
  }
  func.func @transform_6(%arg0: i32) -> (i32, i32, i32) {
    %c0_i32 = arith.constant 0 : i32
    %c0_i32_0 = arith.constant 0 : i32
    %c0_i32_1 = arith.constant 0 : i32
    %c0_i32_2 = arith.constant 0 : i32
    return %c0_i32, %c0_i32_0, %c0_i32_1 : i32, i32, i32
  }
  func.func @transform_7(%arg0: i32) -> (i32, i32, i32) {
    %c0_i32 = arith.constant 0 : i32
    %c0_i32_0 = arith.constant 0 : i32
    %c0_i32_1 = arith.constant 0 : i32
    %c0_i32_2 = arith.constant 0 : i32
    return %c0_i32, %c0_i32_0, %c0_i32_1 : i32, i32, i32
  }
  func.func @transform_8(%arg0: i32) -> (i32, i32, i32) {
    %c0_i32 = arith.constant 0 : i32
    %c0_i32_0 = arith.constant 0 : i32
    %c0_i32_1 = arith.constant 0 : i32
    %c0_i32_2 = arith.constant 0 : i32
    return %c0_i32, %c0_i32_0, %c0_i32_1 : i32, i32, i32
  }
  func.func @transform_9(%arg0: i32) -> (i32, i32, i32) {
    %c0_i32 = arith.constant 0 : i32
    %c0_i32_0 = arith.constant 0 : i32
    %c0_i32_1 = arith.constant 0 : i32
    %c0_i32_2 = arith.constant 0 : i32
    return %c0_i32, %c0_i32_0, %c0_i32_1 : i32, i32, i32
  }
  func.func @transform_10(%arg0: i32) -> (i32, i32, i32) {
    %c0_i32 = arith.constant 0 : i32
    %c0_i32_0 = arith.constant 0 : i32
    %c0_i32_1 = arith.constant 0 : i32
    %c0_i32_2 = arith.constant 0 : i32
    return %c0_i32, %c0_i32_0, %c0_i32_1 : i32, i32, i32
  }
  func.func @transform_11(%arg0: i32) -> (i32, i32, i32) {
    %c0_i32 = arith.constant 0 : i32
    %c0_i32_0 = arith.constant 0 : i32
    %c0_i32_1 = arith.constant 0 : i32
    %c0_i32_2 = arith.constant 0 : i32
    return %c0_i32, %c0_i32_0, %c0_i32_1 : i32, i32, i32
  }
  func.func @transform_12(%arg0: i32) -> (i32, i32, i32) {
    %c0_i32 = arith.constant 0 : i32
    %c0_i32_0 = arith.constant 0 : i32
    %c0_i32_1 = arith.constant 0 : i32
    %c0_i32_2 = arith.constant 0 : i32
    return %c0_i32, %c0_i32_0, %c0_i32_1 : i32, i32, i32
  }
  func.func @transform_13(%arg0: i32) -> (i32, i32) {
    %c0_i32 = arith.constant 0 : i32
    %c0_i32_0 = arith.constant 0 : i32
    %c0_i32_1 = arith.constant 0 : i32
    return %c0_i32, %c0_i32_0 : i32, i32
  }
  func.func @transform_14(%arg0: i32) -> (i32, i32) {
    %c0_i32 = arith.constant 0 : i32
    %c0_i32_0 = arith.constant 0 : i32
    %c0_i32_1 = arith.constant 0 : i32
    return %c0_i32, %c0_i32_0 : i32, i32
  }
  func.func @transform_15(%arg0: i32) -> (i32, i32) {
    %c0_i32 = arith.constant 0 : i32
    %c0_i32_0 = arith.constant 0 : i32
    %c0_i32_1 = arith.constant 0 : i32
    return %c0_i32, %c0_i32_0 : i32, i32
  }
  func.func @transform_16(%arg0: i32) -> (i32, i32) {
    %c0_i32 = arith.constant 0 : i32
    %c0_i32_0 = arith.constant 0 : i32
    %c0_i32_1 = arith.constant 0 : i32
    return %c0_i32, %c0_i32_0 : i32, i32
  }
  func.func @transform_17(%arg0: i32) -> (i32, i32, i32) {
    %c0_i32 = arith.constant 0 : i32
    %c0_i32_0 = arith.constant 0 : i32
    %c0_i32_1 = arith.constant 0 : i32
    return %arg0, %c0_i32, %c0_i32_0 : i32, i32, i32
  }
}

</mosaic_0001>

<llo_original>
// kernel: transformer_model_forward.1
$region0: #{transformer_model_forward.1}
  #allocation0 [shape = 'u32[]', space=smem, size = 0x4, offset = 0x4, fixed_abs, tag = 'smem constant byte address 0x4 - core index']
  #allocation1 [shape = 'u32[72,128]{1,0:T(1,128)}', space=vmem, size = 0x9000, scoped, tag = 'internal scratch']
  #allocation2 [shape = 'f32[8,384]{1,0:T(8,128)}', space=vmem, size = 0x3000, scoped, tag = 'scratch operand']
  #allocation3 [shape = 'f32[8,128]{1,0:T(8,128)}', space=vmem, size = 0x1000, scoped, tag = 'scratch operand']
  %s0 = inlined_call_operand.vmem [shape: f32[2,8,128], index: 0, kind: input, shape index: {}]
  %s1 = inlined_call_operand.hbm [shape: bf16[2,128,384], index: 1, kind: input, shape index: {}]
  %s2 = inlined_call_operand.vmem [shape: f32[2,1,384], index: 2, kind: input, shape index: {}]
  %s3 = inlined_call_operand.vmem [shape: bf16[2,128,128], index: 3, kind: input, shape index: {}]
  %s4 = inlined_call_operand.vmem [shape: f32[2,1,128], index: 4, kind: input, shape index: {}]
  %s5 = inlined_call_operand.vmem [shape: f32[2,1,128], index: 5, kind: input, shape index: {}]
  %s6 = inlined_call_operand.vmem [shape: f32[2,1,128], index: 6, kind: input, shape index: {}]
  %s7 = inlined_call_operand.hbm [shape: bf16[2,128,256], index: 7, kind: input, shape index: {}]
  %s8 = inlined_call_operand.vmem [shape: f32[2,1,256], index: 8, kind: input, shape index: {}]
  %s9 = inlined_call_operand.hbm [shape: bf16[2,256,128], index: 9, kind: input, shape index: {}]
  %s10 = inlined_call_operand.vmem [shape: f32[2,1,128], index: 10, kind: input, shape index: {}]
  %s11 = inlined_call_operand.vmem [shape: f32[2,1,128], index: 11, kind: input, shape index: {}]
  %s12 = inlined_call_operand.vmem [shape: f32[2,1,128], index: 12, kind: input, shape index: {}]
  %s13 = inlined_call_operand.hbm [shape: bf16[128,1024], index: 13, kind: input, shape index: {}]
  %s14 = inlined_call_operand.vmem [shape: f32[1,1024], index: 14, kind: input, shape index: {}]
  %s15 = inlined_call_operand.hbm [shape: bf16[1024,128], index: 15, kind: input, shape index: {}]
  %s16 = inlined_call_operand.vmem [shape: f32[1,128], index: 16, kind: input, shape index: {}]
  %s17 = inlined_call_operand.vmem [shape: f32[2,8,128], index: 17, kind: output, shape index: {}]
  %s18 = sld [smem:[#allocation0]]
  $region121: #{transformer_model_forward.1} parent=0
    _
  %s20 = ssub.s32 1, %s18
  %s21 = scalar_select 0, %s20, %s18
  $region1: #{transformer_model_forward.1} parent=0
    #allocation4 [shape = 'u8[196608]{0}', space=vmem, size = 0x30000, scoped, tag = 'input window, operand 1, single buffered']
    #allocation5 [shape = 's32[2]{0}', space=sflag, size = 0x8, scoped, tag = 'scoped memory for transformer_model_forward.1']
    #allocation6 [shape = 'u8[131072]{0}', space=vmem, size = 0x20000, scoped, tag = 'input window, operand 7, single buffered']
    #allocation7 [shape = 's32[1]{0}', space=sflag, size = 0x4, scoped, tag = 'scoped memory for transformer_model_forward.1']
    #allocation8 [shape = 'u8[131072]{0}', space=vmem, size = 0x20000, scoped, tag = 'input window, operand 9, single buffered']
    #allocation9 [shape = 'u8[262144]{0}', space=vmem, size = 0x40000, scoped, tag = 'input window, operand 13, single buffered']
    #allocation10 [shape = 's32[1]{0}', space=sflag, size = 0x4, scoped, tag = 'scoped memory for transformer_model_forward.1']
    #allocation11 [shape = 'u8[262144]{0}', space=vmem, size = 0x40000, scoped, tag = 'input window, operand 15, single buffered']
    %22 = vsyncpa [#allocation5], 0
    %23 = vsyncpa [#allocation7], 0
    %24 = vsyncpa [#allocation10], 0
    loop: start=0, step=1, limit=4
    $region2: #{transformer_model_forward.1} parent=1 // loop_pre_header
      _
    $region3: #{transformer_model_forward.1} parent=1 // loop_header
      %s26 = sphi 0, %s30
      %p27 = scmp.ge.s32.totalorder %s26, 4
      %s36 = sphi 0, %s38
      %s39 = sphi 0, %s36
      %s40 = sphi 0, %s39
      %s56 = sphi 0, %s40
      %s60 = sphi 0, %s60
      %s62 = sphi 0, %s60
      %s63 = sphi 0, %s62
      %s77 = sphi 0, %s63
      %s81 = sphi 0, %s81
      %s83 = sphi 0, %s81
      %s84 = sphi 0, %s83
      %s98 = sphi 0, %s84
      %s102 = sphi 0, %s102
      %s104 = sphi 0, %s102
      %s105 = sphi 0, %s104
      %s119 = sphi 0, %s105
      %s123 = sphi 0, %s123
      %s125 = sphi 0, %s123
      %s126 = sphi 0, %s125
      %s140 = sphi 0, %s126
      %s144 = sphi 0, %s144
      %s146 = sphi 0, %s144
      %s147 = sphi 0, %s146
      %s161 = sphi 0, %s147
      %s165 = sphi 0, %s165
      %s167 = sphi 0, %s165
      %s168 = sphi 0, %s167
      %s182 = sphi 0, %s168
      %s186 = sphi 0, %s186
      %s188 = sphi 0, %s186
      %s189 = sphi 0, %s188
      %s203 = sphi 0, %s189
      %s207 = sphi 0, %s207
      %s209 = sphi 0, %s207
      %s210 = sphi 0, %s209
      %s224 = sphi 0, %s210
      %s228 = sphi 0, %s228
      %s230 = sphi 0, %s228
      %s231 = sphi 0, %s230
      %s245 = sphi 0, %s231
      %s249 = sphi 0, %s249
      %s251 = sphi 0, %s249
      %s252 = sphi 0, %s251
      %s266 = sphi 0, %s252
      %s270 = sphi 0, %s270
      %s272 = sphi 0, %s270
      %s273 = sphi 0, %s272
      %s287 = sphi 0, %s273
      %s291 = sphi 0, %s291
      %s293 = sphi 0, %s291
      %s294 = sphi 0, %s293
      %s308 = sphi 0, %s294
      %s312 = sphi 0, %s312
      %s314 = sphi 0, %s312
      %s315 = sphi 0, %s314
      %s329 = sphi 0, %s315
      %s333 = sphi 0, %s333
      %s335 = sphi 0, %s333
      %s336 = sphi 0, %s335
      %s350 = sphi 0, %s336
      %s354 = sphi 0, %s354
      %s356 = sphi 0, %s354
      %s357 = sphi 0, %s356
      %s371 = sphi 0, %s357
      %s375 = sphi 0, %s375
      %s377 = sphi 0, %s375
      %s378 = sphi 0, %s377
      %s392 = sphi 0, %s378
      %s398 = sphi 0, %s400
      %s401 = sphi 0, %s398
      %s402 = sphi 0, %s401
      %s418 = sphi 0, %s402
    $region4: #{transformer_model_forward.1} parent=1 // loop_header_branch
      %29 = sbr.rel (%p27) target = $region8
    $region5: #{transformer_model_forward.1} parent=1 // loop_body
      %s31 = ssub.s32 %s26, 1
      %s32 = ssub.s32 %s26, 2
      %s33 = sadd.s32 %s26, 1
      %s34 = ssub.s32 %s26, %s33
      %p35 = scmp.eq.s32.totalorder %s34, 0
      %s37 = sadd.s32 %s36, 1
      %s38 = scalar_select %p35, %s36, %s37
      %p41 = pneg %p35
      %p42 = scmp.eq.s32.totalorder %s26, 1
      %p43 = por %p41, %p42
      %p44 = scmp.ne.s32.totalorder %s36, %s39
      %p45 = scmp.eq.s32.totalorder %s26, 0
      %p46 = por %p44, %p45
      %p47 = scmp.ne.s32.totalorder %s36, %s39
      %p48 = scmp.eq.s32.totalorder %s31, 1
      %p49 = por %p47, %p48
      %p50 = scmp.ne.s32.totalorder %s39, %s40
      %p51 = scmp.eq.s32.totalorder %s31, 0
      %p52 = por %p50, %p51
      %p53 = scmp.ne.s32.totalorder %s39, %s40
      %p54 = scmp.eq.s32.totalorder %s32, 1
      %p55 = por %p53, %p54
      %p57 = scmp.ne.s32.totalorder %s40, %s56
      %p58 = scmp.eq.s32.totalorder %s32, 0
      %p59 = por %p57, %p58
      %s61 = sadd.s32 %s60, 1
      %p64 = scmp.eq.s32.totalorder %s26, 1
      %p65 = scmp.ne.s32.totalorder %s60, %s62
      %p66 = scmp.eq.s32.totalorder %s26, 0
      %p67 = por %p65, %p66
      %p68 = scmp.ne.s32.totalorder %s60, %s62
      %p69 = scmp.eq.s32.totalorder %s31, 1
      %p70 = por %p68, %p69
      %p71 = scmp.ne.s32.totalorder %s62, %s63
      %p72 = scmp.eq.s32.totalorder %s31, 0
      %p73 = por %p71, %p72
      %p74 = scmp.ne.s32.totalorder %s62, %s63
      %p75 = scmp.eq.s32.totalorder %s32, 1
      %p76 = por %p74, %p75
      %p78 = scmp.ne.s32.totalorder %s63, %s77
      %p79 = scmp.eq.s32.totalorder %s32, 0
      %p80 = por %p78, %p79
      %s82 = sadd.s32 %s81, 1
      %p85 = scmp.eq.s32.totalorder %s26, 1
      %p86 = scmp.ne.s32.totalorder %s81, %s83
      %p87 = scmp.eq.s32.totalorder %s26, 0
      %p88 = por %p86, %p87
      %p89 = scmp.ne.s32.totalorder %s81, %s83
      %p90 = scmp.eq.s32.totalorder %s31, 1
      %p91 = por %p89, %p90
      %p92 = scmp.ne.s32.totalorder %s83, %s84
      %p93 = scmp.eq.s32.totalorder %s31, 0
      %p94 = por %p92, %p93
      %p95 = scmp.ne.s32.totalorder %s83, %s84
      %p96 = scmp.eq.s32.totalorder %s32, 1
      %p97 = por %p95, %p96
      %p99 = scmp.ne.s32.totalorder %s84, %s98
      %p100 = scmp.eq.s32.totalorder %s32, 0
      %p101 = por %p99, %p100
      %s103 = sadd.s32 %s102, 1
      %p106 = scmp.eq.s32.totalorder %s26, 1
      %p107 = scmp.ne.s32.totalorder %s102, %s104
      %p108 = scmp.eq.s32.totalorder %s26, 0
      %p109 = por %p107, %p108
      %p110 = scmp.ne.s32.totalorder %s102, %s104
      %p111 = scmp.eq.s32.totalorder %s31, 1
      %p112 = por %p110, %p111
      %p113 = scmp.ne.s32.totalorder %s104, %s105
      %p114 = scmp.eq.s32.totalorder %s31, 0
      %p115 = por %p113, %p114
      %p116 = scmp.ne.s32.totalorder %s104, %s105
      %p117 = scmp.eq.s32.totalorder %s32, 1
      %p118 = por %p116, %p117
      %p120 = scmp.ne.s32.totalorder %s105, %s119
      %p121 = scmp.eq.s32.totalorder %s32, 0
      %p122 = por %p120, %p121
      %s124 = sadd.s32 %s123, 1
      %p127 = scmp.eq.s32.totalorder %s26, 1
      %p128 = scmp.ne.s32.totalorder %s123, %s125
      %p129 = scmp.eq.s32.totalorder %s26, 0
      %p130 = por %p128, %p129
      %p131 = scmp.ne.s32.totalorder %s123, %s125
      %p132 = scmp.eq.s32.totalorder %s31, 1
      %p133 = por %p131, %p132
      %p134 = scmp.ne.s32.totalorder %s125, %s126
      %p135 = scmp.eq.s32.totalorder %s31, 0
      %p136 = por %p134, %p135
      %p137 = scmp.ne.s32.totalorder %s125, %s126
      %p138 = scmp.eq.s32.totalorder %s32, 1
      %p139 = por %p137, %p138
      %p141 = scmp.ne.s32.totalorder %s126, %s140
      %p142 = scmp.eq.s32.totalorder %s32, 0
      %p143 = por %p141, %p142
      %s145 = sadd.s32 %s144, 1
      %p148 = scmp.eq.s32.totalorder %s26, 1
      %p149 = scmp.ne.s32.totalorder %s144, %s146
      %p150 = scmp.eq.s32.totalorder %s26, 0
      %p151 = por %p149, %p150
      %p152 = scmp.ne.s32.totalorder %s144, %s146
      %p153 = scmp.eq.s32.totalorder %s31, 1
      %p154 = por %p152, %p153
      %p155 = scmp.ne.s32.totalorder %s146, %s147
      %p156 = scmp.eq.s32.totalorder %s31, 0
      %p157 = por %p155, %p156
      %p158 = scmp.ne.s32.totalorder %s146, %s147
      %p159 = scmp.eq.s32.totalorder %s32, 1
      %p160 = por %p158, %p159
      %p162 = scmp.ne.s32.totalorder %s147, %s161
      %p163 = scmp.eq.s32.totalorder %s32, 0
      %p164 = por %p162, %p163
      %s166 = sadd.s32 %s165, 1
      %p169 = scmp.eq.s32.totalorder %s26, 1
      %p170 = scmp.ne.s32.totalorder %s165, %s167
      %p171 = scmp.eq.s32.totalorder %s26, 0
      %p172 = por %p170, %p171
      %p173 = scmp.ne.s32.totalorder %s165, %s167
      %p174 = scmp.eq.s32.totalorder %s31, 1
      %p175 = por %p173, %p174
      %p176 = scmp.ne.s32.totalorder %s167, %s168
      %p177 = scmp.eq.s32.totalorder %s31, 0
      %p178 = por %p176, %p177
      %p179 = scmp.ne.s32.totalorder %s167, %s168
      %p180 = scmp.eq.s32.totalorder %s32, 1
      %p181 = por %p179, %p180
      %p183 = scmp.ne.s32.totalorder %s168, %s182
      %p184 = scmp.eq.s32.totalorder %s32, 0
      %p185 = por %p183, %p184
      %s187 = sadd.s32 %s186, 1
      %p190 = scmp.eq.s32.totalorder %s26, 1
      %p191 = scmp.ne.s32.totalorder %s186, %s188
      %p192 = scmp.eq.s32.totalorder %s26, 0
      %p193 = por %p191, %p192
      %p194 = scmp.ne.s32.totalorder %s186, %s188
      %p195 = scmp.eq.s32.totalorder %s31, 1
      %p196 = por %p194, %p195
      %p197 = scmp.ne.s32.totalorder %s188, %s189
      %p198 = scmp.eq.s32.totalorder %s31, 0
      %p199 = por %p197, %p198
      %p200 = scmp.ne.s32.totalorder %s188, %s189
      %p201 = scmp.eq.s32.totalorder %s32, 1
      %p202 = por %p200, %p201
      %p204 = scmp.ne.s32.totalorder %s189, %s203
      %p205 = scmp.eq.s32.totalorder %s32, 0
      %p206 = por %p204, %p205
      %s208 = sadd.s32 %s207, 1
      %p211 = scmp.eq.s32.totalorder %s26, 1
      %p212 = scmp.ne.s32.totalorder %s207, %s209
      %p213 = scmp.eq.s32.totalorder %s26, 0
      %p214 = por %p212, %p213
      %p215 = scmp.ne.s32.totalorder %s207, %s209
      %p216 = scmp.eq.s32.totalorder %s31, 1
      %p217 = por %p215, %p216
      %p218 = scmp.ne.s32.totalorder %s209, %s210
      %p219 = scmp.eq.s32.totalorder %s31, 0
      %p220 = por %p218, %p219
      %p221 = scmp.ne.s32.totalorder %s209, %s210
      %p222 = scmp.eq.s32.totalorder %s32, 1
      %p223 = por %p221, %p222
      %p225 = scmp.ne.s32.totalorder %s210, %s224
      %p226 = scmp.eq.s32.totalorder %s32, 0
      %p227 = por %p225, %p226
      %s229 = sadd.s32 %s228, 1
      %p232 = scmp.eq.s32.totalorder %s26, 1
      %p233 = scmp.ne.s32.totalorder %s228, %s230
      %p234 = scmp.eq.s32.totalorder %s26, 0
      %p235 = por %p233, %p234
      %p236 = scmp.ne.s32.totalorder %s228, %s230
      %p237 = scmp.eq.s32.totalorder %s31, 1
      %p238 = por %p236, %p237
      %p239 = scmp.ne.s32.totalorder %s230, %s231
      %p240 = scmp.eq.s32.totalorder %s31, 0
      %p241 = por %p239, %p240
      %p242 = scmp.ne.s32.totalorder %s230, %s231
      %p243 = scmp.eq.s32.totalorder %s32, 1
      %p244 = por %p242, %p243
      %p246 = scmp.ne.s32.totalorder %s231, %s245
      %p247 = scmp.eq.s32.totalorder %s32, 0
      %p248 = por %p246, %p247
      %s250 = sadd.s32 %s249, 1
      %p253 = scmp.eq.s32.totalorder %s26, 1
      %p254 = scmp.ne.s32.totalorder %s249, %s251
      %p255 = scmp.eq.s32.totalorder %s26, 0
      %p256 = por %p254, %p255
      %p257 = scmp.ne.s32.totalorder %s249, %s251
      %p258 = scmp.eq.s32.totalorder %s31, 1
      %p259 = por %p257, %p258
      %p260 = scmp.ne.s32.totalorder %s251, %s252
      %p261 = scmp.eq.s32.totalorder %s31, 0
      %p262 = por %p260, %p261
      %p263 = scmp.ne.s32.totalorder %s251, %s252
      %p264 = scmp.eq.s32.totalorder %s32, 1
      %p265 = por %p263, %p264
      %p267 = scmp.ne.s32.totalorder %s252, %s266
      %p268 = scmp.eq.s32.totalorder %s32, 0
      %p269 = por %p267, %p268
      %s271 = sadd.s32 %s270, 1
      %p274 = scmp.eq.s32.totalorder %s26, 1
      %p275 = scmp.ne.s32.totalorder %s270, %s272
      %p276 = scmp.eq.s32.totalorder %s26, 0
      %p277 = por %p275, %p276
      %p278 = scmp.ne.s32.totalorder %s270, %s272
      %p279 = scmp.eq.s32.totalorder %s31, 1
      %p280 = por %p278, %p279
      %p281 = scmp.ne.s32.totalorder %s272, %s273
      %p282 = scmp.eq.s32.totalorder %s31, 0
      %p283 = por %p281, %p282
      %p284 = scmp.ne.s32.totalorder %s272, %s273
      %p285 = scmp.eq.s32.totalorder %s32, 1
      %p286 = por %p284, %p285
      %p288 = scmp.ne.s32.totalorder %s273, %s287
      %p289 = scmp.eq.s32.totalorder %s32, 0
      %p290 = por %p288, %p289
      %s292 = sadd.s32 %s291, 1
      %p295 = scmp.eq.s32.totalorder %s26, 1
      %p296 = scmp.ne.s32.totalorder %s291, %s293
      %p297 = scmp.eq.s32.totalorder %s26, 0
      %p298 = por %p296, %p297
      %p299 = scmp.ne.s32.totalorder %s291, %s293
      %p300 = scmp.eq.s32.totalorder %s31, 1
      %p301 = por %p299, %p300
      %p302 = scmp.ne.s32.totalorder %s293, %s294
      %p303 = scmp.eq.s32.totalorder %s31, 0
      %p304 = por %p302, %p303
      %p305 = scmp.ne.s32.totalorder %s293, %s294
      %p306 = scmp.eq.s32.totalorder %s32, 1
      %p307 = por %p305, %p306
      %p309 = scmp.ne.s32.totalorder %s294, %s308
      %p310 = scmp.eq.s32.totalorder %s32, 0
      %p311 = por %p309, %p310
      %s313 = sadd.s32 %s312, 1
      %p316 = scmp.eq.s32.totalorder %s26, 1
      %p317 = scmp.ne.s32.totalorder %s312, %s314
      %p318 = scmp.eq.s32.totalorder %s26, 0
      %p319 = por %p317, %p318
      %p320 = scmp.ne.s32.totalorder %s312, %s314
      %p321 = scmp.eq.s32.totalorder %s31, 1
      %p322 = por %p320, %p321
      %p323 = scmp.ne.s32.totalorder %s314, %s315
      %p324 = scmp.eq.s32.totalorder %s31, 0
      %p325 = por %p323, %p324
      %p326 = scmp.ne.s32.totalorder %s314, %s315
      %p327 = scmp.eq.s32.totalorder %s32, 1
      %p328 = por %p326, %p327
      %p330 = scmp.ne.s32.totalorder %s315, %s329
      %p331 = scmp.eq.s32.totalorder %s32, 0
      %p332 = por %p330, %p331
      %s334 = sadd.s32 %s333, 1
      %p337 = scmp.eq.s32.totalorder %s26, 1
      %p338 = scmp.ne.s32.totalorder %s333, %s335
      %p339 = scmp.eq.s32.totalorder %s26, 0
      %p340 = por %p338, %p339
      %p341 = scmp.ne.s32.totalorder %s333, %s335
      %p342 = scmp.eq.s32.totalorder %s31, 1
      %p343 = por %p341, %p342
      %p344 = scmp.ne.s32.totalorder %s335, %s336
      %p345 = scmp.eq.s32.totalorder %s31, 0
      %p346 = por %p344, %p345
      %p347 = scmp.ne.s32.totalorder %s335, %s336
      %p348 = scmp.eq.s32.totalorder %s32, 1
      %p349 = por %p347, %p348
      %p351 = scmp.ne.s32.totalorder %s336, %s350
      %p352 = scmp.eq.s32.totalorder %s32, 0
      %p353 = por %p351, %p352
      %s355 = sadd.s32 %s354, 1
      %p358 = scmp.eq.s32.totalorder %s26, 1
      %p359 = scmp.ne.s32.totalorder %s354, %s356
      %p360 = scmp.eq.s32.totalorder %s26, 0
      %p361 = por %p359, %p360
      %p362 = scmp.ne.s32.totalorder %s354, %s356
      %p363 = scmp.eq.s32.totalorder %s31, 1
      %p364 = por %p362, %p363
      %p365 = scmp.ne.s32.totalorder %s356, %s357
      %p366 = scmp.eq.s32.totalorder %s31, 0
      %p367 = por %p365, %p366
      %p368 = scmp.ne.s32.totalorder %s356, %s357
      %p369 = scmp.eq.s32.totalorder %s32, 1
      %p370 = por %p368, %p369
      %p372 = scmp.ne.s32.totalorder %s357, %s371
      %p373 = scmp.eq.s32.totalorder %s32, 0
      %p374 = por %p372, %p373
      %s376 = sadd.s32 %s375, 1
      %p379 = scmp.eq.s32.totalorder %s26, 1
      %p380 = scmp.ne.s32.totalorder %s375, %s377
      %p381 = scmp.eq.s32.totalorder %s26, 0
      %p382 = por %p380, %p381
      %p383 = scmp.ne.s32.totalorder %s375, %s377
      %p384 = scmp.eq.s32.totalorder %s31, 1
      %p385 = por %p383, %p384
      %p386 = scmp.ne.s32.totalorder %s377, %s378
      %p387 = scmp.eq.s32.totalorder %s31, 0
      %p388 = por %p386, %p387
      %p389 = scmp.ne.s32.totalorder %s377, %s378
      %p390 = scmp.eq.s32.totalorder %s32, 1
      %p391 = por %p389, %p390
      %p393 = scmp.ne.s32.totalorder %s378, %s392
      %p394 = scmp.eq.s32.totalorder %s32, 0
      %p395 = por %p393, %p394
      %s396 = ssub.s32 %s26, %s33
      %p397 = scmp.eq.s32.totalorder %s396, 0
      %s399 = sadd.s32 %s398, 1
      %s400 = scalar_select %p397, %s398, %s399
      %p403 = pneg %p397
      %p404 = scmp.eq.s32.totalorder %s26, 1
      %p405 = por %p403, %p404
      %p406 = scmp.ne.s32.totalorder %s398, %s401
      %p407 = scmp.eq.s32.totalorder %s26, 0
      %p408 = por %p406, %p407
      %p409 = scmp.ne.s32.totalorder %s398, %s401
      %p410 = scmp.eq.s32.totalorder %s31, 1
      %p411 = por %p409, %p410
      %p412 = scmp.ne.s32.totalorder %s401, %s402
      %p413 = scmp.eq.s32.totalorder %s31, 0
      %p414 = por %p412, %p413
      %p415 = scmp.ne.s32.totalorder %s401, %s402
      %p416 = scmp.eq.s32.totalorder %s32, 1
      %p417 = por %p415, %p416
      %p419 = scmp.ne.s32.totalorder %s402, %s418
      %p420 = scmp.eq.s32.totalorder %s32, 0
      %p421 = por %p419, %p420
      %p422 = scmp.le.s32.totalorder 1, %s26
      %p423 = scmp.lt.s32.totalorder %s26, 3
      %p424 = pnand %p422, %p423
      %p425 = pneg %p424
      // Predicated region
      $region9: #{transformer_model_forward.1} parent=5 // pred_check
        _
      $region10: #{transformer_model_forward.1} parent=5 // pred_check_branch
        %427 = sbr.rel (%p424) target = $region12
      $region11: #{transformer_model_forward.1} parent=5 // pred_region
        %s428 = ssub.s32 %s26, 1
        // Predicated region
        $region13: #{transformer_model_forward.1} parent=11 // pred_check
          %p429 = pneg %p73
        $region14: #{transformer_model_forward.1} parent=11 // pred_check_branch
          %431 = sbr.rel (%p429) target = $region16
        $region15: #{transformer_model_forward.1} parent=11 // pred_region
          %433 = vsyncadd [#allocation5], 0
          %s434 = sshll.u32 %s1, 4
          %s435 = int_to_ptr.hbm [resolvable:$true] %s434
          %s436 = sshll.u32 [#allocation4], 4
          %s437 = int_to_ptr.vmem [resolvable:$true] %s436
          %442 = dma.hbm_to_vmem [thread:$0]  %s435, 6144, %s437, [#allocation5], 192, 192, 12
        $region16: #{transformer_model_forward.1} parent=11 // pred_fallthru
          _
        // Predicated region
        $region17: #{transformer_model_forward.1} parent=11 // pred_check
          %p443 = pneg %p94
        $region18: #{transformer_model_forward.1} parent=11 // pred_check_branch
          %445 = sbr.rel (%p443) target = $region20
        $region19: #{transformer_model_forward.1} parent=11 // pred_region
          _
        $region20: #{transformer_model_forward.1} parent=11 // pred_fallthru
          _
        // Predicated region
        $region21: #{transformer_model_forward.1} parent=11 // pred_check
          %p446 = pneg %p115
        $region22: #{transformer_model_forward.1} parent=11 // pred_check_branch
          %448 = sbr.rel (%p446) target = $region24
        $region23: #{transformer_model_forward.1} parent=11 // pred_region
          _
        $region24: #{transformer_model_forward.1} parent=11 // pred_fallthru
          _
        // Predicated region
        $region25: #{transformer_model_forward.1} parent=11 // pred_check
          %p449 = pneg %p136
        $region26: #{transformer_model_forward.1} parent=11 // pred_check_branch
          %451 = sbr.rel (%p449) target = $region28
        $region27: #{transformer_model_forward.1} parent=11 // pred_region
          _
        $region28: #{transformer_model_forward.1} parent=11 // pred_fallthru
          _
        // Predicated region
        $region29: #{transformer_model_forward.1} parent=11 // pred_check
          %p452 = pneg %p157
        $region30: #{transformer_model_forward.1} parent=11 // pred_check_branch
          %454 = sbr.rel (%p452) target = $region32
        $region31: #{transformer_model_forward.1} parent=11 // pred_region
          _
        $region32: #{transformer_model_forward.1} parent=11 // pred_fallthru
          _
        // Predicated region
        $region33: #{transformer_model_forward.1} parent=11 // pred_check
          %p455 = pneg %p178
        $region34: #{transformer_model_forward.1} parent=11 // pred_check_branch
          %457 = sbr.rel (%p455) target = $region36
        $region35: #{transformer_model_forward.1} parent=11 // pred_region
          _
        $region36: #{transformer_model_forward.1} parent=11 // pred_fallthru
          _
        // Predicated region
        $region37: #{transformer_model_forward.1} parent=11 // pred_check
          %p458 = pneg %p199
        $region38: #{transformer_model_forward.1} parent=11 // pred_check_branch
          %460 = sbr.rel (%p458) target = $region40
        $region39: #{transformer_model_forward.1} parent=11 // pred_region
          %462 = vsyncadd [#allocation7], 0
          %s463 = sshll.u32 %s7, 4
          %s464 = int_to_ptr.hbm [resolvable:$true] %s463
          %s465 = sshll.u32 [#allocation6], 4
          %s466 = int_to_ptr.vmem [resolvable:$true] %s465
          %471 = dma.hbm_to_vmem [thread:$0]  %s464, 4096, %s466, [#allocation7], 128, 128, 8
        $region40: #{transformer_model_forward.1} parent=11 // pred_fallthru
          _
        // Predicated region
        $region41: #{transformer_model_forward.1} parent=11 // pred_check
          %p472 = pneg %p220
        $region42: #{transformer_model_forward.1} parent=11 // pred_check_branch
          %474 = sbr.rel (%p472) target = $region44
        $region43: #{transformer_model_forward.1} parent=11 // pred_region
          _
        $region44: #{transformer_model_forward.1} parent=11 // pred_fallthru
          _
        // Predicated region
        $region45: #{transformer_model_forward.1} parent=11 // pred_check
          %p475 = pneg %p241
        $region46: #{transformer_model_forward.1} parent=11 // pred_check_branch
          %477 = sbr.rel (%p475) target = $region48
        $region47: #{transformer_model_forward.1} parent=11 // pred_region
          %479 = vsyncadd [#allocation7], 0
          %s480 = sshll.u32 %s9, 4
          %s481 = int_to_ptr.hbm [resolvable:$true] %s480
          %s482 = sshll.u32 [#allocation8], 4
          %s483 = int_to_ptr.vmem [resolvable:$true] %s482
          %488 = dma.hbm_to_vmem [thread:$0]  %s481, 4096, %s483, [#allocation7], 64, 64, 4
        $region48: #{transformer_model_forward.1} parent=11 // pred_fallthru
          _
        // Predicated region
        $region49: #{transformer_model_forward.1} parent=11 // pred_check
          %p489 = pneg %p262
        $region50: #{transformer_model_forward.1} parent=11 // pred_check_branch
          %491 = sbr.rel (%p489) target = $region52
        $region51: #{transformer_model_forward.1} parent=11 // pred_region
          _
        $region52: #{transformer_model_forward.1} parent=11 // pred_fallthru
          _
        // Predicated region
        $region53: #{transformer_model_forward.1} parent=11 // pred_check
          %p492 = pneg %p283
        $region54: #{transformer_model_forward.1} parent=11 // pred_check_branch
          %494 = sbr.rel (%p492) target = $region56
        $region55: #{transformer_model_forward.1} parent=11 // pred_region
          _
        $region56: #{transformer_model_forward.1} parent=11 // pred_fallthru
          _
        // Predicated region
        $region57: #{transformer_model_forward.1} parent=11 // pred_check
          %p495 = pneg %p304
        $region58: #{transformer_model_forward.1} parent=11 // pred_check_branch
          %497 = sbr.rel (%p495) target = $region60
        $region59: #{transformer_model_forward.1} parent=11 // pred_region
          _
        $region60: #{transformer_model_forward.1} parent=11 // pred_fallthru
          _
        // Predicated region
        $region61: #{transformer_model_forward.1} parent=11 // pred_check
          %p498 = pneg %p325
        $region62: #{transformer_model_forward.1} parent=11 // pred_check_branch
          %500 = sbr.rel (%p498) target = $region64
        $region63: #{transformer_model_forward.1} parent=11 // pred_region
          %502 = vsyncadd [#allocation10], 0
          %s503 = sshll.u32 %s13, 4
          %s504 = int_to_ptr.hbm [resolvable:$true] %s503
          %s505 = sshll.u32 [#allocation9], 4
          %s506 = int_to_ptr.vmem [resolvable:$true] %s505
          %511 = dma.hbm_to_vmem [thread:$0]  %s504, 8192, %s506, [#allocation10], 512, 512, 32
        $region64: #{transformer_model_forward.1} parent=11 // pred_fallthru
          _
        // Predicated region
        $region65: #{transformer_model_forward.1} parent=11 // pred_check
          %p512 = pneg %p346
        $region66: #{transformer_model_forward.1} parent=11 // pred_check_branch
          %514 = sbr.rel (%p512) target = $region68
        $region67: #{transformer_model_forward.1} parent=11 // pred_region
          _
        $region68: #{transformer_model_forward.1} parent=11 // pred_fallthru
          _
        // Predicated region
        $region69: #{transformer_model_forward.1} parent=11 // pred_check
          %p515 = pneg %p367
        $region70: #{transformer_model_forward.1} parent=11 // pred_check_branch
          %517 = sbr.rel (%p515) target = $region72
        $region71: #{transformer_model_forward.1} parent=11 // pred_region
          %519 = vsyncadd [#allocation10], 0
          %s520 = sshll.u32 %s15, 4
          %s521 = int_to_ptr.hbm [resolvable:$true] %s520
          %s522 = sshll.u32 [#allocation11], 4
          %s523 = int_to_ptr.vmem [resolvable:$true] %s522
          %528 = dma.hbm_to_vmem [thread:$0]  %s521, 8192, %s523, [#allocation10], 64, 64, 4
        $region72: #{transformer_model_forward.1} parent=11 // pred_fallthru
          _
        // Predicated region
        $region73: #{transformer_model_forward.1} parent=11 // pred_check
          %p529 = pneg %p388
        $region74: #{transformer_model_forward.1} parent=11 // pred_check_branch
          %531 = sbr.rel (%p529) target = $region76
        $region75: #{transformer_model_forward.1} parent=11 // pred_region
          _
        $region76: #{transformer_model_forward.1} parent=11 // pred_fallthru
          _
      $region12: #{transformer_model_forward.1} parent=5 // pred_fallthru
        _
      %p532 = scmp.lt.s32.totalorder %s26, 2
      // Predicated region
      $region77: #{transformer_model_forward.1} parent=5 // pred_check
        %p533 = pneg %p532
      $region78: #{transformer_model_forward.1} parent=5 // pred_check_branch
        %535 = sbr.rel (%p533) target = $region80
      $region79: #{transformer_model_forward.1} parent=5 // pred_region
        // Predicated region
        $region81: #{transformer_model_forward.1} parent=79 // pred_check
          %p536 = pneg %p46
        $region82: #{transformer_model_forward.1} parent=79 // pred_check_branch
          %538 = sbr.rel (%p536) target = $region84
        $region83: #{transformer_model_forward.1} parent=79 // pred_region
          %p539 = scmp.lt.s32.totalorder %s26, 1
          %s540 = scalar_select %p539, %s26, 1
          %s541 = smul.addr %s540, 8
          %s542 = scalar_lea.vmem %s0, %s541
        $region84: #{transformer_model_forward.1} parent=79 // pred_fallthru
          _
      $region80: #{transformer_model_forward.1} parent=5 // pred_fallthru
        _
      %p543 = scmp.le.s32.totalorder 1, %s26
      %p544 = scmp.lt.s32.totalorder %s26, 3
      %p545 = pnand %p543, %p544
      %p546 = pneg %p545
      // Predicated region
      $region85: #{transformer_model_forward.1} parent=5 // pred_check
        _
      $region86: #{transformer_model_forward.1} parent=5 // pred_check_branch
        %548 = sbr.rel (%p545) target = $region88
      $region87: #{transformer_model_forward.1} parent=5 // pred_region
        %s549 = ssub.s32 %s26, 1
        // Predicated region
        $region89: #{transformer_model_forward.1} parent=87 // pred_check
          %p550 = pneg %p73
        $region90: #{transformer_model_forward.1} parent=87 // pred_check_branch
          %552 = sbr.rel (%p550) target = $region92
        $region91: #{transformer_model_forward.1} parent=87 // pred_region
          %554 = dma.done [#allocation5], 6144
        $region92: #{transformer_model_forward.1} parent=87 // pred_fallthru
          _
        // Predicated region
        $region93: #{transformer_model_forward.1} parent=87 // pred_check
          %p555 = pneg %p199
        $region94: #{transformer_model_forward.1} parent=87 // pred_check_branch
          %557 = sbr.rel (%p555) target = $region96
        $region95: #{transformer_model_forward.1} parent=87 // pred_region
          %559 = dma.done [#allocation7], 4096
        $region96: #{transformer_model_forward.1} parent=87 // pred_fallthru
          _
        // Predicated region
        $region97: #{transformer_model_forward.1} parent=87 // pred_check
          %p560 = pneg %p241
        $region98: #{transformer_model_forward.1} parent=87 // pred_check_branch
          %562 = sbr.rel (%p560) target = $region100
        $region99: #{transformer_model_forward.1} parent=87 // pred_region
          %564 = dma.done [#allocation7], 4096
        $region100: #{transformer_model_forward.1} parent=87 // pred_fallthru
          _
        // Predicated region
        $region101: #{transformer_model_forward.1} parent=87 // pred_check
          %p565 = pneg %p325
        $region102: #{transformer_model_forward.1} parent=87 // pred_check_branch
          %567 = sbr.rel (%p565) target = $region104
        $region103: #{transformer_model_forward.1} parent=87 // pred_region
          %569 = dma.done [#allocation10], 8192
        $region104: #{transformer_model_forward.1} parent=87 // pred_fallthru
          _
        // Predicated region
        $region105: #{transformer_model_forward.1} parent=87 // pred_check
          %p570 = pneg %p367
        $region106: #{transformer_model_forward.1} parent=87 // pred_check_branch
          %572 = sbr.rel (%p570) target = $region108
        $region107: #{transformer_model_forward.1} parent=87 // pred_region
          %574 = dma.done [#allocation10], 8192
        $region108: #{transformer_model_forward.1} parent=87 // pred_fallthru
          _
        %p575 = scmp.lt.s32.totalorder %s31, 1
        %s576 = scalar_select %p575, %s31, 1
        %s577 = smul.addr %s576, 8
        %s578 = scalar_lea.vmem %s0, %s577
        %p579 = pneg %p52
        %p580 = pneg %p49
        %p581 = pneg %p73
        %p582 = pneg %p70
        %p583 = pneg %p94
        %p584 = pneg %p91
        %p585 = pneg %p115
        %p586 = pneg %p112
        %p587 = pneg %p136
        %p588 = pneg %p133
        %p589 = pneg %p157
        %p590 = pneg %p154
        %p591 = pneg %p178
        %p592 = pneg %p175
        %p593 = pneg %p199
        %p594 = pneg %p196
        %p595 = pneg %p220
        %p596 = pneg %p217
        %p597 = pneg %p241
        %p598 = pneg %p238
        %p599 = pneg %p262
        %p600 = pneg %p259
        %p601 = pneg %p283
        %p602 = pneg %p280
        %p603 = pneg %p304
        %p604 = pneg %p301
        %p605 = pneg %p325
        %p606 = pneg %p322
        %p607 = pneg %p346
        %p608 = pneg %p343
        %p609 = pneg %p367
        %p610 = pneg %p364
        %p611 = pneg %p388
        %p612 = pneg %p385
        %p613 = pneg %p414
        %p614 = pneg %p411
        %p615 = scmp.lt.s32.totalorder %s31, 1
        %s616 = scalar_select %p615, %s31, 1
        %s617 = smul.addr %s616, 8
        %s618 = scalar_lea.vmem %s17, %s617
        %p619 = scmp.lt.s32.totalorder %s31, 1
        %s620 = scalar_select %p619, %s31, 1
        %s621 = smul.addr %s620, 8
        %s622 = scalar_lea.vmem %s0, %s621
        %p623 = scmp.lt.s32.totalorder %s31, 1
        %s624 = scalar_select %p623, %s31, 1
        %s625 = smul.addr %s624, 8
        %s626 = scalar_lea.vmem %s17, %s625
        %v628 = vld [vmem:[%s622] sm:$0xff]
        %v629 = vpack.c.bf16 %v628, %v628
        %v630 = vld [vmem:[#allocation4] sm:$0xff]
        %v631 = vld [vmem:[#allocation4 + $0x8] sm:$0xf]
        %v632 = vld [vmem:[#allocation4 + $0xc] sm:$0xff]
        %v633 = vld [vmem:[#allocation4 + $0x14] sm:$0xf]
        %v634 = vld [vmem:[#allocation4 + $0x18] sm:$0xff]
        %v635 = vld [vmem:[#allocation4 + $0x20] sm:$0xf]
        %v636 = vld [vmem:[#allocation4 + $0x24] sm:$0xff]
        %v637 = vld [vmem:[#allocation4 + $0x2c] sm:$0xf]
        %v638 = vld [vmem:[#allocation4 + $0x30] sm:$0xff]
        %v639 = vld [vmem:[#allocation4 + $0x38] sm:$0xf]
        %v640 = vld [vmem:[#allocation4 + $0x3c] sm:$0xff]
        %v641 = vld [vmem:[#allocation4 + $0x44] sm:$0xf]
        %v642 = vld [vmem:[#allocation4 + $0x48] sm:$0xff]
        %v643 = vld [vmem:[#allocation4 + $0x50] sm:$0xf]
        %v644 = vld [vmem:[#allocation4 + $0x54] sm:$0xff]
        %v645 = vld [vmem:[#allocation4 + $0x5c] sm:$0xf]
        %v646 = vld [vmem:[#allocation4 + $0x60] sm:$0xff]
        %v647 = vld [vmem:[#allocation4 + $0x68] sm:$0xf]
        %v648 = vld [vmem:[#allocation4 + $0x6c] sm:$0xff]
        %v649 = vld [vmem:[#allocation4 + $0x74] sm:$0xf]
        %v650 = vld [vmem:[#allocation4 + $0x78] sm:$0xff]
        %v651 = vld [vmem:[#allocation4 + $0x80] sm:$0xf]
        %v652 = vld [vmem:[#allocation4 + $0x84] sm:$0xff]
        %v653 = vld [vmem:[#allocation4 + $0x8c] sm:$0xf]
        %v654 = vld [vmem:[#allocation4 + $0x90] sm:$0xff]
        %v655 = vld [vmem:[#allocation4 + $0x98] sm:$0xf]
        %v656 = vld [vmem:[#allocation4 + $0x9c] sm:$0xff]
        %v657 = vld [vmem:[#allocation4 + $0xa4] sm:$0xf]
        %v658 = vld [vmem:[#allocation4 + $0xa8] sm:$0xff]
        %v659 = vld [vmem:[#allocation4 + $0xb0] sm:$0xf]
        %v660 = vld [vmem:[#allocation4 + $0xb4] sm:$0xff]
        %v661 = vld [vmem:[#allocation4 + $0xbc] sm:$0xf]
        %v662 = vld [vmem:[%s2] sm:$0x7]
        %v664 = vperm.slane %v662, 0
        %v665 = vperm.slane %v662, 1
        %v666 = vperm.slane %v662, 2
        %v702 = vunpack.c.l.b16 %v630
        %v703 = vunpack.c.h.b16 %v630
        %v704 = vunpack.c.l.b16 %v631
        %v705 = vunpack.c.l.b16 %v632
        %v706 = vunpack.c.h.b16 %v632
        %v707 = vunpack.c.l.b16 %v633
        %v708 = vunpack.c.l.b16 %v634
        %v709 = vunpack.c.h.b16 %v634
        %v710 = vunpack.c.l.b16 %v635
        %v711 = vunpack.c.l.b16 %v636
        %v712 = vunpack.c.h.b16 %v636
        %v713 = vunpack.c.l.b16 %v637
        %v714 = vunpack.c.l.b16 %v638
        %v715 = vunpack.c.h.b16 %v638
        %v716 = vunpack.c.l.b16 %v639
        %v717 = vunpack.c.l.b16 %v640
        %v718 = vunpack.c.h.b16 %v640
        %v719 = vunpack.c.l.b16 %v641
        %v720 = vunpack.c.l.b16 %v642
        %v721 = vunpack.c.h.b16 %v642
        %v722 = vunpack.c.l.b16 %v643
        %v723 = vunpack.c.l.b16 %v644
        %v724 = vunpack.c.h.b16 %v644
        %v725 = vunpack.c.l.b16 %v645
        %v726 = vunpack.c.l.b16 %v646
        %v727 = vunpack.c.h.b16 %v646
        %v728 = vunpack.c.l.b16 %v647
        %v729 = vunpack.c.l.b16 %v648
        %v730 = vunpack.c.h.b16 %v648
        %v731 = vunpack.c.l.b16 %v649
        %v732 = vunpack.c.l.b16 %v650
        %v733 = vunpack.c.h.b16 %v650
        %v734 = vunpack.c.l.b16 %v651
        %v735 = vunpack.c.l.b16 %v652
        %v736 = vunpack.c.h.b16 %v652
        %v737 = vunpack.c.l.b16 %v653
        %v738 = vunpack.c.l.b16 %v654
        %v739 = vunpack.c.h.b16 %v654
        %v740 = vunpack.c.l.b16 %v655
        %v741 = vunpack.c.l.b16 %v656
        %v742 = vunpack.c.h.b16 %v656
        %v743 = vunpack.c.l.b16 %v657
        %v744 = vunpack.c.l.b16 %v658
        %v745 = vunpack.c.h.b16 %v658
        %v746 = vunpack.c.l.b16 %v659
        %v747 = vunpack.c.l.b16 %v660
        %v748 = vunpack.c.h.b16 %v660
        %v749 = vunpack.c.l.b16 %v661
        %v750 = vpack.c.b16 %v705, %v702
        %v751 = vpack.c.b16 %v706, %v703
        %v752 = vpack.c.b16 %v707, %v704
        %v753 = vpack.c.b16 %v711, %v708
        %v754 = vpack.c.b16 %v712, %v709
        %v755 = vpack.c.b16 %v713, %v710
        %v756 = vpack.c.b16 %v717, %v714
        %v757 = vpack.c.b16 %v718, %v715
        %v758 = vpack.c.b16 %v719, %v716
        %v759 = vpack.c.b16 %v723, %v720
        %v760 = vpack.c.b16 %v724, %v721
        %v761 = vpack.c.b16 %v725, %v722
        %v762 = vpack.c.b16 %v729, %v726
        %v763 = vpack.c.b16 %v730, %v727
        %v764 = vpack.c.b16 %v731, %v728
        %v765 = vpack.c.b16 %v735, %v732
        %v766 = vpack.c.b16 %v736, %v733
        %v767 = vpack.c.b16 %v737, %v734
        %v768 = vpack.c.b16 %v741, %v738
        %v769 = vpack.c.b16 %v742, %v739
        %v770 = vpack.c.b16 %v743, %v740
        %v771 = vpack.c.b16 %v747, %v744
        %v772 = vpack.c.b16 %v748, %v745
        %v773 = vpack.c.b16 %v749, %v746
        %798 = vmatpush.bf16.msra.mxu0 %v771
        %799 = vmatpush.bf16.msra.mxu0 %v768
        %800 = vmatpush.bf16.msra.mxu0 %v765
        %801 = vmatpush.bf16.msra.mxu0 %v762
        %802 = vmatpush.bf16.msra.mxu0 %v759
        %803 = vmatpush.bf16.msra.mxu0 %v756
        %804 = vmatpush.bf16.msra.mxu0 %v753
        %805 = vmatpush.bf16.msra.mxu0 %v750
        %806 = vmatmul.bf16.gmra.mxu0 %v629
        %v807 = vpop.f32.mrf.mxu0
        %v808 = vadd.f32 %v664, %v807
        %v809 = vpop.f32.mrf.mxu0
        %810 = vdwg.mxu0
        %811 = vmatpush.bf16.msra.mxu0 %v772
        %812 = vmatpush.bf16.msra.mxu0 %v769
        %813 = vmatpush.bf16.msra.mxu0 %v766
        %814 = vmatpush.bf16.msra.mxu0 %v763
        %815 = vmatpush.bf16.msra.mxu0 %v760
        %816 = vmatpush.bf16.msra.mxu0 %v757
        %817 = vmatpush.bf16.msra.mxu0 %v754
        %818 = vmatpush.bf16.msra.mxu0 %v751
        %819 = vmatmul.bf16.gmra.mxu0 %v629
        %v820 = vpop.f32.mrf.mxu0
        %v821 = vadd.f32 %v665, %v820
        %v822 = vpop.f32.mrf.mxu0
        %823 = vdwg.mxu0
        %824 = vmatpush.bf16.msra.mxu0 %v773
        %825 = vmatpush.bf16.msra.mxu0 %v770
        %826 = vmatpush.bf16.msra.mxu0 %v767
        %827 = vmatpush.bf16.msra.mxu0 %v764
        %828 = vmatpush.bf16.msra.mxu0 %v761
        %829 = vmatpush.bf16.msra.mxu0 %v758
        %830 = vmatpush.bf16.msra.mxu0 %v755
        %831 = vmatpush.bf16.msra.mxu0 %v752
        %832 = vmatmul.bf16.gmra.mxu0 %v629
        %v833 = vpop.f32.mrf.mxu0
        %v834 = vadd.f32 %v666, %v833
        %v835 = vpop.f32.mrf.mxu0
        %836 = vdwg.mxu0
        %837 = vst [vmem:[#allocation2] sm:$0xff] %v808
        %838 = vst [vmem:[#allocation2 + $0x8] sm:$0xff] %v821
        %839 = vst [vmem:[#allocation2 + $0x10] sm:$0xff] %v834
        %v840 = vld [vmem:[#allocation2] sm:$0xff]
        %v841 = vld [vmem:[#allocation2 + $0x8] sm:$0xff]
        %v842 = vld [vmem:[#allocation2 + $0x10] sm:$0xff]
        %v843 = vpack.c.bf16 %v840, %v840
        %v844 = vpack.c.bf16 %v841, %v841
        %vm845 = vcmask 261120
        %v847 = vsel %vm845, %v843, 0
        %v850 = vsel %vm845, %v844, 0
        %852 = vmatpush.bf16.xpose.msra.mxu0 0
        %853 = vmatpush.bf16.xpose.msra.mxu0 0
        %854 = vmatpush.bf16.xpose.msra.mxu0 0
        %855 = vmatpush.bf16.xpose.msra.mxu0 0
        %856 = vmatpush.bf16.xpose.msra.mxu0 0
        %857 = vmatpush.bf16.xpose.msra.mxu0 0
        %858 = vmatpush.bf16.xpose.msra.mxu0 0
        %859 = vmatpush.bf16.xpose.msra.mxu0 %v850
        %860 = vmatmul.bf16.gmra.mxu0 %v847
        %v861 = vpop.f32.mrf.mxu0
        %v862 = vadd.f32 0.0, %v861
        %v863 = vpop.f32.mrf.mxu0
        %864 = vdwg.mxu0
        %v865 = vmul.f32 %v862, 0.17677669
        %vm866 = vcmask 64512
        %v867 = vsel %vm866, %v865, -inf
        %868 = vmax.xlane.f32.xlu0 %v867
        %v869 = vpop.xlane.xlu0 %868
        %v870 = vsub.f32 %v865, %v869
        %v871 = vmul.f32 %v870, 1.442695
        %v872 = vpow.pop %v871
        %v873 = vsel %vm866, %v872, 0.0
        %874 = vadd.xlane.f32.xlu0 %v873
        %v875 = vpop.xlane.xlu0 %874
        %v876 = vrcp.pop %v875
        %v877 = vmul.f32 %v872, %v876
        %v878 = vpack.c.bf16 %v877, %v877
        %v879 = vpack.c.bf16 %v842, %v842
        %v881 = vsel %vm866, %v878, 0
        %vm883 = vcmask 1043456
        %v885 = vsel %vm883, %v879, 0
        %887 = vmatpush.bf16.msra.mxu0 0
        %888 = vmatpush.bf16.msra.mxu0 0
        %889 = vmatpush.bf16.msra.mxu0 0
        %890 = vmatpush.bf16.msra.mxu0 0
        %891 = vmatpush.bf16.msra.mxu0 0
        %892 = vmatpush.bf16.msra.mxu0 0
        %893 = vmatpush.bf16.msra.mxu0 0
        %894 = vmatpush.bf16.msra.mxu0 %v885
        %895 = vmatmul.bf16.gmra.mxu0 %v881
        %v896 = vpop.f32.mrf.mxu0
        %v897 = vadd.f32 0.0, %v896
        %v898 = vpop.f32.mrf.mxu0
        %899 = vdwg.mxu0
        %900 = vst.msk [vmem:[#allocation3] sm:$0xff] %vm845, %v897
        %v901 = vld [vmem:[#allocation2] sm:$0xff]
        %v902 = vld [vmem:[#allocation2 + $0x8] sm:$0xff]
        %v903 = vld [vmem:[#allocation2 + $0x10] sm:$0xff]
        %v904 = vpack.c.bf16 %v901, %v901
        %v905 = vpack.c.bf16 %v902, %v902
        %907 = vrot.lane.b32.xlu0 %v904, 96
        %v908 = vpop.permute.xlu0 %907
        %910 = vrot.lane.b32.xlu0 %v905, 96
        %v911 = vpop.permute.xlu0 %910
        %v913 = vsel %vm845, %v908, 0
        %v916 = vsel %vm845, %v911, 0
        %918 = vmatpush.bf16.xpose.msra.mxu0 0
        %919 = vmatpush.bf16.xpose.msra.mxu0 0
        %920 = vmatpush.bf16.xpose.msra.mxu0 0
        %921 = vmatpush.bf16.xpose.msra.mxu0 0
        %922 = vmatpush.bf16.xpose.msra.mxu0 0
        %923 = vmatpush.bf16.xpose.msra.mxu0 0
        %924 = vmatpush.bf16.xpose.msra.mxu0 0
        %925 = vmatpush.bf16.xpose.msra.mxu0 %v916
        %926 = vmatmul.bf16.gmra.mxu0 %v913
        %v927 = vpop.f32.mrf.mxu0
        %v928 = vadd.f32 0.0, %v927
        %v929 = vpop.f32.mrf.mxu0
        %930 = vdwg.mxu0
        %v931 = vmul.f32 %v928, 0.17677669
        %v932 = vsel %vm866, %v931, -inf
        %933 = vmax.xlane.f32.xlu0 %v932
        %v934 = vpop.xlane.xlu0 %933
        %v935 = vsub.f32 %v931, %v934
        %v936 = vmul.f32 %v935, 1.442695
        %v937 = vpow.pop %v936
        %v938 = vsel %vm866, %v937, 0.0
        %939 = vadd.xlane.f32.xlu0 %v938
        %v940 = vpop.xlane.xlu0 %939
        %v941 = vrcp.pop %v940
        %v942 = vmul.f32 %v937, %v941
        %v943 = vpack.c.bf16 %v942, %v942
        %v944 = vpack.c.bf16 %v903, %v903
        %946 = vrot.lane.b32.xlu0 %v944, 96
        %v947 = vpop.permute.xlu0 %946
        %v949 = vsel %vm866, %v943, 0
        %v952 = vsel %vm883, %v947, 0
        %954 = vmatpush.bf16.msra.mxu0 0
        %955 = vmatpush.bf16.msra.mxu0 0
        %956 = vmatpush.bf16.msra.mxu0 0
        %957 = vmatpush.bf16.msra.mxu0 0
        %958 = vmatpush.bf16.msra.mxu0 0
        %959 = vmatpush.bf16.msra.mxu0 0
        %960 = vmatpush.bf16.msra.mxu0 0
        %961 = vmatpush.bf16.msra.mxu0 %v952
        %962 = vmatmul.bf16.gmra.mxu0 %v949
        %v963 = vpop.f32.mrf.mxu0
        %v964 = vadd.f32 0.0, %v963
        %v965 = vpop.f32.mrf.mxu0
        %966 = vdwg.mxu0
        %968 = vrot.lane.b32.xlu0 %v964, 32
        %v969 = vpop.permute.xlu0 %968
        %vm971 = vcmask 523520
        %972 = vst.msk [vmem:[#allocation3] sm:$0xff] %vm971, %v969
        %v973 = vld [vmem:[#allocation2] sm:$0xff]
        %v974 = vld [vmem:[#allocation2 + $0x8] sm:$0xff]
        %v975 = vld [vmem:[#allocation2 + $0x10] sm:$0xff]
        %v976 = vpack.c.bf16 %v973, %v973
        %v977 = vpack.c.bf16 %v974, %v974
        %979 = vrot.lane.b32.xlu0 %v976, 64
        %v980 = vpop.permute.xlu0 %979
        %982 = vrot.lane.b32.xlu0 %v977, 64
        %v983 = vpop.permute.xlu0 %982
        %v985 = vsel %vm845, %v980, 0
        %v988 = vsel %vm845, %v983, 0
        %990 = vmatpush.bf16.xpose.msra.mxu0 0
        %991 = vmatpush.bf16.xpose.msra.mxu0 0
        %992 = vmatpush.bf16.xpose.msra.mxu0 0
        %993 = vmatpush.bf16.xpose.msra.mxu0 0
        %994 = vmatpush.bf16.xpose.msra.mxu0 0
        %995 = vmatpush.bf16.xpose.msra.mxu0 0
        %996 = vmatpush.bf16.xpose.msra.mxu0 0
        %997 = vmatpush.bf16.xpose.msra.mxu0 %v988
        %998 = vmatmul.bf16.gmra.mxu0 %v985
        %v999 = vpop.f32.mrf.mxu0
        %v1000 = vadd.f32 0.0, %v999
        %v1001 = vpop.f32.mrf.mxu0
        %1002 = vdwg.mxu0
        %v1003 = vmul.f32 %v1000, 0.17677669
        %v1004 = vsel %vm866, %v1003, -inf
        %1005 = vmax.xlane.f32.xlu0 %v1004
        %v1006 = vpop.xlane.xlu0 %1005
        %v1007 = vsub.f32 %v1003, %v1006
        %v1008 = vmul.f32 %v1007, 1.442695
        %v1009 = vpow.pop %v1008
        %v1010 = vsel %vm866, %v1009, 0.0
        %1011 = vadd.xlane.f32.xlu0 %v1010
        %v1012 = vpop.xlane.xlu0 %1011
        %v1013 = vrcp.pop %v1012
        %v1014 = vmul.f32 %v1009, %v1013
        %v1015 = vpack.c.bf16 %v1014, %v1014
        %v1016 = vpack.c.bf16 %v975, %v975
        %1018 = vrot.lane.b32.xlu0 %v1016, 64
        %v1019 = vpop.permute.xlu0 %1018
        %v1021 = vsel %vm866, %v1015, 0
        %v1024 = vsel %vm883, %v1019, 0
        %1026 = vmatpush.bf16.msra.mxu0 0
        %1027 = vmatpush.bf16.msra.mxu0 0
        %1028 = vmatpush.bf16.msra.mxu0 0
        %1029 = vmatpush.bf16.msra.mxu0 0
        %1030 = vmatpush.bf16.msra.mxu0 0
        %1031 = vmatpush.bf16.msra.mxu0 0
        %1032 = vmatpush.bf16.msra.mxu0 0
        %1033 = vmatpush.bf16.msra.mxu0 %v1024
        %1034 = vmatmul.bf16.gmra.mxu0 %v1021
        %v1035 = vpop.f32.mrf.mxu0
        %v1036 = vadd.f32 0.0, %v1035
        %v1037 = vpop.f32.mrf.mxu0
        %1038 = vdwg.mxu0
        %1040 = vrot.lane.b32.xlu0 %v1036, 64
        %v1041 = vpop.permute.xlu0 %1040
        %vm1043 = vcmask 785920
        %1044 = vst.msk [vmem:[#allocation3] sm:$0xff] %vm1043, %v1041
        %v1045 = vld [vmem:[#allocation2] sm:$0xff]
        %v1046 = vld [vmem:[#allocation2 + $0x8] sm:$0xff]
        %v1047 = vld [vmem:[#allocation2 + $0x10] sm:$0xff]
        %v1048 = vpack.c.bf16 %v1045, %v1045
        %v1049 = vpack.c.bf16 %v1046, %v1046
        %1051 = vrot.lane.b32.xlu0 %v1048, 32
        %v1052 = vpop.permute.xlu0 %1051
        %1054 = vrot.lane.b32.xlu0 %v1049, 32
        %v1055 = vpop.permute.xlu0 %1054
        %v1057 = vsel %vm845, %v1052, 0
        %v1060 = vsel %vm845, %v1055, 0
        %1062 = vmatpush.bf16.xpose.msra.mxu0 0
        %1063 = vmatpush.bf16.xpose.msra.mxu0 0
        %1064 = vmatpush.bf16.xpose.msra.mxu0 0
        %1065 = vmatpush.bf16.xpose.msra.mxu0 0
        %1066 = vmatpush.bf16.xpose.msra.mxu0 0
        %1067 = vmatpush.bf16.xpose.msra.mxu0 0
        %1068 = vmatpush.bf16.xpose.msra.mxu0 0
        %1069 = vmatpush.bf16.xpose.msra.mxu0 %v1060
        %1070 = vmatmul.bf16.gmra.mxu0 %v1057
        %v1071 = vpop.f32.mrf.mxu0
        %v1072 = vadd.f32 0.0, %v1071
        %v1073 = vpop.f32.mrf.mxu0
        %1074 = vdwg.mxu0
        %v1075 = vmul.f32 %v1072, 0.17677669
        %v1076 = vsel %vm866, %v1075, -inf
        %1077 = vmax.xlane.f32.xlu0 %v1076
        %v1078 = vpop.xlane.xlu0 %1077
        %v1079 = vsub.f32 %v1075, %v1078
        %v1080 = vmul.f32 %v1079, 1.442695
        %v1081 = vpow.pop %v1080
        %v1082 = vsel %vm866, %v1081, 0.0
        %1083 = vadd.xlane.f32.xlu0 %v1082
        %v1084 = vpop.xlane.xlu0 %1083
        %v1085 = vrcp.pop %v1084
        %v1086 = vmul.f32 %v1081, %v1085
        %v1087 = vpack.c.bf16 %v1086, %v1086
        %v1088 = vpack.c.bf16 %v1047, %v1047
        %1090 = vrot.lane.b32.xlu0 %v1088, 32
        %v1091 = vpop.permute.xlu0 %1090
        %v1093 = vsel %vm866, %v1087, 0
        %v1096 = vsel %vm883, %v1091, 0
        %1098 = vmatpush.bf16.msra.mxu0 0
        %1099 = vmatpush.bf16.msra.mxu0 0
        %1100 = vmatpush.bf16.msra.mxu0 0
        %1101 = vmatpush.bf16.msra.mxu0 0
        %1102 = vmatpush.bf16.msra.mxu0 0
        %1103 = vmatpush.bf16.msra.mxu0 0
        %1104 = vmatpush.bf16.msra.mxu0 0
        %1105 = vmatpush.bf16.msra.mxu0 %v1096
        %1106 = vmatmul.bf16.gmra.mxu0 %v1093
        %v1107 = vpop.f32.mrf.mxu0
        %v1108 = vadd.f32 0.0, %v1107
        %v1109 = vpop.f32.mrf.mxu0
        %1110 = vdwg.mxu0
        %1112 = vrot.lane.b32.xlu0 %v1108, 96
        %v1113 = vpop.permute.xlu0 %1112
        %vm1115 = vcmask 1048320
        %1116 = vst.msk [vmem:[#allocation3] sm:$0xff] %vm1115, %v1113
        %v1117 = vld [vmem:[#allocation3] sm:$0xff]
        %v1118 = vpack.c.bf16 %v1117, %v1117
        %v1119 = vld [vmem:[%s3] sm:$0xf]
        %v1120 = vld [vmem:[%s3 + $0x4] sm:$0xf]
        %v1121 = vld [vmem:[%s3 + $0x8] sm:$0xf]
        %v1122 = vld [vmem:[%s3 + $0xc] sm:$0xf]
        %v1123 = vld [vmem:[%s3 + $0x10] sm:$0xf]
        %v1124 = vld [vmem:[%s3 + $0x14] sm:$0xf]
        %v1125 = vld [vmem:[%s3 + $0x18] sm:$0xf]
        %v1126 = vld [vmem:[%s3 + $0x1c] sm:$0xf]
        %v1127 = vld [vmem:[%s3 + $0x20] sm:$0xf]
        %v1128 = vld [vmem:[%s3 + $0x24] sm:$0xf]
        %v1129 = vld [vmem:[%s3 + $0x28] sm:$0xf]
        %v1130 = vld [vmem:[%s3 + $0x2c] sm:$0xf]
        %v1131 = vld [vmem:[%s3 + $0x30] sm:$0xf]
        %v1132 = vld [vmem:[%s3 + $0x34] sm:$0xf]
        %v1133 = vld [vmem:[%s3 + $0x38] sm:$0xf]
        %v1134 = vld [vmem:[%s3 + $0x3c] sm:$0xf]
        %v1135 = vld [vmem:[%s4] sm:$0x1]
        %v1137 = vperm.slane %v1135, 0
        %v1155 = vunpack.c.l.b16 %v1119
        %v1156 = vunpack.c.l.b16 %v1120
        %v1157 = vunpack.c.l.b16 %v1121
        %v1158 = vunpack.c.l.b16 %v1122
        %v1159 = vunpack.c.l.b16 %v1123
        %v1160 = vunpack.c.l.b16 %v1124
        %v1161 = vunpack.c.l.b16 %v1125
        %v1162 = vunpack.c.l.b16 %v1126
        %v1163 = vunpack.c.l.b16 %v1127
        %v1164 = vunpack.c.l.b16 %v1128
        %v1165 = vunpack.c.l.b16 %v1129
        %v1166 = vunpack.c.l.b16 %v1130
        %v1167 = vunpack.c.l.b16 %v1131
        %v1168 = vunpack.c.l.b16 %v1132
        %v1169 = vunpack.c.l.b16 %v1133
        %v1170 = vunpack.c.l.b16 %v1134
        %v1171 = vpack.c.b16 %v1156, %v1155
        %v1172 = vpack.c.b16 %v1158, %v1157
        %v1173 = vpack.c.b16 %v1160, %v1159
        %v1174 = vpack.c.b16 %v1162, %v1161
        %v1175 = vpack.c.b16 %v1164, %v1163
        %v1176 = vpack.c.b16 %v1166, %v1165
        %v1177 = vpack.c.b16 %v1168, %v1167
        %v1178 = vpack.c.b16 %v1170, %v1169
        %1187 = vmatpush.bf16.msra.mxu0 %v1178
        %1188 = vmatpush.bf16.msra.mxu0 %v1177
        %1189 = vmatpush.bf16.msra.mxu0 %v1176
        %1190 = vmatpush.bf16.msra.mxu0 %v1175
        %1191 = vmatpush.bf16.msra.mxu0 %v1174
        %1192 = vmatpush.bf16.msra.mxu0 %v1173
        %1193 = vmatpush.bf16.msra.mxu0 %v1172
        %1194 = vmatpush.bf16.msra.mxu0 %v1171
        %1195 = vmatmul.bf16.gmra.mxu0 %v1118
        %v1196 = vpop.f32.mrf.mxu0
        %v1197 = vadd.f32 %v1137, %v1196
        %v1198 = vpop.f32.mrf.mxu0
        %1199 = vdwg.mxu0
        %v1200 = vadd.f32 %v1197, %v628
        %1201 = vadd.xlane.f32.xlu0 %v1200
        %v1202 = vpop.xlane.xlu0 %1201
        %v1203 = vrcp.pop 128.0
        %v1204 = vmul.f32 128.0, %v1203
        %v1205 = vsub.f32 1.0, %v1204
        %v1206 = vmul.f32 %v1203, %v1205
        %v1207 = vadd.f32 %v1203, %v1206
        %vm1208 = vweird.f32 %v1203
        %v1209 = vsel %vm1208, %v1203, %v1207
        %v1210 = vmul.f32 %v1202, %v1209
        %v1211 = vsub.f32 %v1200, %v1210
        %v1212 = vmul.f32 %v1211, %v1211
        %1213 = vadd.xlane.f32.xlu0 %v1212
        %v1214 = vpop.xlane.xlu0 %1213
        %v1215 = vmul.f32 %v1214, %v1209
        %v1216 = vadd.f32 %v1215, 1e-05
        %v1217 = vrsqrt.pop %v1216
        %v1218 = vmul.f32 %v1217, %v1216
        %v1219 = vmul.f32 %v1218, %v1217
        %v1220 = vmul.f32 0.5, %v1219
        %v1221 = vsub.f32 1.5, %v1220
        %v1222 = vmul.f32 %v1217, %v1221
        %vm1223 = vweird.f32 %v1216
        %vm1224 = vweird.f32 %v1217
        %vm1225 = vmor %vm1223, %vm1224
        %v1226 = vsel %vm1225, %v1217, %v1222
        %v1227 = vmul.f32 %v1211, %v1226
        %v1228 = vld [vmem:[%s5] sm:$0x1]
        %v1230 = vperm.slane %v1228, 0
        %v1232 = vmul.f32 %v1227, %v1230
        %v1233 = vld [vmem:[%s6] sm:$0x1]
        %v1235 = vperm.slane %v1233, 0
        %v1237 = vadd.f32 %v1232, %v1235
        %v1238 = vpack.c.bf16 %v1237, %v1237
        %v1239 = vld [vmem:[#allocation6] sm:$0xff]
        %v1240 = vld [vmem:[#allocation6 + $0x8] sm:$0xff]
        %v1241 = vld [vmem:[#allocation6 + $0x10] sm:$0xff]
        %v1242 = vld [vmem:[#allocation6 + $0x18] sm:$0xff]
        %v1243 = vld [vmem:[#allocation6 + $0x20] sm:$0xff]
        %v1244 = vld [vmem:[#allocation6 + $0x28] sm:$0xff]
        %v1245 = vld [vmem:[#allocation6 + $0x30] sm:$0xff]
        %v1246 = vld [vmem:[#allocation6 + $0x38] sm:$0xff]
        %v1247 = vld [vmem:[#allocation6 + $0x40] sm:$0xff]
        %v1248 = vld [vmem:[#allocation6 + $0x48] sm:$0xff]
        %v1249 = vld [vmem:[#allocation6 + $0x50] sm:$0xff]
        %v1250 = vld [vmem:[#allocation6 + $0x58] sm:$0xff]
        %v1251 = vld [vmem:[#allocation6 + $0x60] sm:$0xff]
        %v1252 = vld [vmem:[#allocation6 + $0x68] sm:$0xff]
        %v1253 = vld [vmem:[#allocation6 + $0x70] sm:$0xff]
        %v1254 = vld [vmem:[#allocation6 + $0x78] sm:$0xff]
        %v1255 = vld [vmem:[%s8] sm:$0x3]
        %v1257 = vperm.slane %v1255, 0
        %v1258 = vperm.slane %v1255, 1
        %v1277 = vunpack.c.l.b16 %v1239
        %v1278 = vunpack.c.h.b16 %v1239
        %v1279 = vunpack.c.l.b16 %v1240
        %v1280 = vunpack.c.h.b16 %v1240
        %v1281 = vunpack.c.l.b16 %v1241
        %v1282 = vunpack.c.h.b16 %v1241
        %v1283 = vunpack.c.l.b16 %v1242
        %v1284 = vunpack.c.h.b16 %v1242
        %v1285 = vunpack.c.l.b16 %v1243
        %v1286 = vunpack.c.h.b16 %v1243
        %v1287 = vunpack.c.l.b16 %v1244
        %v1288 = vunpack.c.h.b16 %v1244
        %v1289 = vunpack.c.l.b16 %v1245
        %v1290 = vunpack.c.h.b16 %v1245
        %v1291 = vunpack.c.l.b16 %v1246
        %v1292 = vunpack.c.h.b16 %v1246
        %v1293 = vunpack.c.l.b16 %v1247
        %v1294 = vunpack.c.h.b16 %v1247
        %v1295 = vunpack.c.l.b16 %v1248
        %v1296 = vunpack.c.h.b16 %v1248
        %v1297 = vunpack.c.l.b16 %v1249
        %v1298 = vunpack.c.h.b16 %v1249
        %v1299 = vunpack.c.l.b16 %v1250
        %v1300 = vunpack.c.h.b16 %v1250
        %v1301 = vunpack.c.l.b16 %v1251
        %v1302 = vunpack.c.h.b16 %v1251
        %v1303 = vunpack.c.l.b16 %v1252
        %v1304 = vunpack.c.h.b16 %v1252
        %v1305 = vunpack.c.l.b16 %v1253
        %v1306 = vunpack.c.h.b16 %v1253
        %v1307 = vunpack.c.l.b16 %v1254
        %v1308 = vunpack.c.h.b16 %v1254
        %v1309 = vpack.c.b16 %v1279, %v1277
        %v1310 = vpack.c.b16 %v1280, %v1278
        %v1311 = vpack.c.b16 %v1283, %v1281
        %v1312 = vpack.c.b16 %v1284, %v1282
        %v1313 = vpack.c.b16 %v1287, %v1285
        %v1314 = vpack.c.b16 %v1288, %v1286
        %v1315 = vpack.c.b16 %v1291, %v1289
        %v1316 = vpack.c.b16 %v1292, %v1290
        %v1317 = vpack.c.b16 %v1295, %v1293
        %v1318 = vpack.c.b16 %v1296, %v1294
        %v1319 = vpack.c.b16 %v1299, %v1297
        %v1320 = vpack.c.b16 %v1300, %v1298
        %v1321 = vpack.c.b16 %v1303, %v1301
        %v1322 = vpack.c.b16 %v1304, %v1302
        %v1323 = vpack.c.b16 %v1307, %v1305
        %v1324 = vpack.c.b16 %v1308, %v1306
        %1341 = vmatpush.bf16.msra.mxu0 %v1323
        %1342 = vmatpush.bf16.msra.mxu0 %v1321
        %1343 = vmatpush.bf16.msra.mxu0 %v1319
        %1344 = vmatpush.bf16.msra.mxu0 %v1317
        %1345 = vmatpush.bf16.msra.mxu0 %v1315
        %1346 = vmatpush.bf16.msra.mxu0 %v1313
        %1347 = vmatpush.bf16.msra.mxu0 %v1311
        %1348 = vmatpush.bf16.msra.mxu0 %v1309
        %1349 = vmatmul.bf16.gmra.mxu0 %v1238
        %v1350 = vpop.f32.mrf.mxu0
        %v1351 = vadd.f32 %v1257, %v1350
        %v1352 = vpop.f32.mrf.mxu0
        %1353 = vdwg.mxu0
        %1354 = vmatpush.bf16.msra.mxu0 %v1324
        %1355 = vmatpush.bf16.msra.mxu0 %v1322
        %1356 = vmatpush.bf16.msra.mxu0 %v1320
        %1357 = vmatpush.bf16.msra.mxu0 %v1318
        %1358 = vmatpush.bf16.msra.mxu0 %v1316
        %1359 = vmatpush.bf16.msra.mxu0 %v1314
        %1360 = vmatpush.bf16.msra.mxu0 %v1312
        %1361 = vmatpush.bf16.msra.mxu0 %v1310
        %1362 = vmatmul.bf16.gmra.mxu0 %v1238
        %v1363 = vpop.f32.mrf.mxu0
        %v1364 = vadd.f32 %v1258, %v1363
        %v1365 = vpop.f32.mrf.mxu0
        %1366 = vdwg.mxu0
        %v1367 = vmax.f32 %v1351, 0.0
        %v1368 = vmax.f32 %v1364, 0.0
        %v1369 = vpack.c.bf16 %v1367, %v1367
        %v1370 = vpack.c.bf16 %v1368, %v1368
        %v1371 = vld [vmem:[#allocation8] sm:$0xf]
        %v1372 = vld [vmem:[#allocation8 + $0x4] sm:$0xf]
        %v1373 = vld [vmem:[#allocation8 + $0x8] sm:$0xf]
        %v1374 = vld [vmem:[#allocation8 + $0xc] sm:$0xf]
        %v1375 = vld [vmem:[#allocation8 + $0x10] sm:$0xf]
        %v1376 = vld [vmem:[#allocation8 + $0x14] sm:$0xf]
        %v1377 = vld [vmem:[#allocation8 + $0x18] sm:$0xf]
        %v1378 = vld [vmem:[#allocation8 + $0x1c] sm:$0xf]
        %v1379 = vld [vmem:[#allocation8 + $0x20] sm:$0xf]
        %v1380 = vld [vmem:[#allocation8 + $0x24] sm:$0xf]
        %v1381 = vld [vmem:[#allocation8 + $0x28] sm:$0xf]
        %v1382 = vld [vmem:[#allocation8 + $0x2c] sm:$0xf]
        %v1383 = vld [vmem:[#allocation8 + $0x30] sm:$0xf]
        %v1384 = vld [vmem:[#allocation8 + $0x34] sm:$0xf]
        %v1385 = vld [vmem:[#allocation8 + $0x38] sm:$0xf]
        %v1386 = vld [vmem:[#allocation8 + $0x3c] sm:$0xf]
        %v1387 = vld [vmem:[#allocation8 + $0x40] sm:$0xf]
        %v1388 = vld [vmem:[#allocation8 + $0x44] sm:$0xf]
        %v1389 = vld [vmem:[#allocation8 + $0x48] sm:$0xf]
        %v1390 = vld [vmem:[#allocation8 + $0x4c] sm:$0xf]
        %v1391 = vld [vmem:[#allocation8 + $0x50] sm:$0xf]
        %v1392 = vld [vmem:[#allocation8 + $0x54] sm:$0xf]
        %v1393 = vld [vmem:[#allocation8 + $0x58] sm:$0xf]
        %v1394 = vld [vmem:[#allocation8 + $0x5c] sm:$0xf]
        %v1395 = vld [vmem:[#allocation8 + $0x60] sm:$0xf]
        %v1396 = vld [vmem:[#allocation8 + $0x64] sm:$0xf]
        %v1397 = vld [vmem:[#allocation8 + $0x68] sm:$0xf]
        %v1398 = vld [vmem:[#allocation8 + $0x6c] sm:$0xf]
        %v1399 = vld [vmem:[#allocation8 + $0x70] sm:$0xf]
        %v1400 = vld [vmem:[#allocation8 + $0x74] sm:$0xf]
        %v1401 = vld [vmem:[#allocation8 + $0x78] sm:$0xf]
        %v1402 = vld [vmem:[#allocation8 + $0x7c] sm:$0xf]
        %v1403 = vld [vmem:[%s10] sm:$0x1]
        %v1405 = vperm.slane %v1403, 0
        %v1439 = vunpack.c.l.b16 %v1371
        %v1440 = vunpack.c.l.b16 %v1372
        %v1441 = vunpack.c.l.b16 %v1373
        %v1442 = vunpack.c.l.b16 %v1374
        %v1443 = vunpack.c.l.b16 %v1375
        %v1444 = vunpack.c.l.b16 %v1376
        %v1445 = vunpack.c.l.b16 %v1377
        %v1446 = vunpack.c.l.b16 %v1378
        %v1447 = vunpack.c.l.b16 %v1379
        %v1448 = vunpack.c.l.b16 %v1380
        %v1449 = vunpack.c.l.b16 %v1381
        %v1450 = vunpack.c.l.b16 %v1382
        %v1451 = vunpack.c.l.b16 %v1383
        %v1452 = vunpack.c.l.b16 %v1384
        %v1453 = vunpack.c.l.b16 %v1385
        %v1454 = vunpack.c.l.b16 %v1386
        %v1455 = vunpack.c.l.b16 %v1387
        %v1456 = vunpack.c.l.b16 %v1388
        %v1457 = vunpack.c.l.b16 %v1389
        %v1458 = vunpack.c.l.b16 %v1390
        %v1459 = vunpack.c.l.b16 %v1391
        %v1460 = vunpack.c.l.b16 %v1392
        %v1461 = vunpack.c.l.b16 %v1393
        %v1462 = vunpack.c.l.b16 %v1394
        %v1463 = vunpack.c.l.b16 %v1395
        %v1464 = vunpack.c.l.b16 %v1396
        %v1465 = vunpack.c.l.b16 %v1397
        %v1466 = vunpack.c.l.b16 %v1398
        %v1467 = vunpack.c.l.b16 %v1399
        %v1468 = vunpack.c.l.b16 %v1400
        %v1469 = vunpack.c.l.b16 %v1401
        %v1470 = vunpack.c.l.b16 %v1402
        %v1471 = vpack.c.b16 %v1440, %v1439
        %v1472 = vpack.c.b16 %v1442, %v1441
        %v1473 = vpack.c.b16 %v1444, %v1443
        %v1474 = vpack.c.b16 %v1446, %v1445
        %v1475 = vpack.c.b16 %v1448, %v1447
        %v1476 = vpack.c.b16 %v1450, %v1449
        %v1477 = vpack.c.b16 %v1452, %v1451
        %v1478 = vpack.c.b16 %v1454, %v1453
        %v1479 = vpack.c.b16 %v1456, %v1455
        %v1480 = vpack.c.b16 %v1458, %v1457
        %v1481 = vpack.c.b16 %v1460, %v1459
        %v1482 = vpack.c.b16 %v1462, %v1461
        %v1483 = vpack.c.b16 %v1464, %v1463
        %v1484 = vpack.c.b16 %v1466, %v1465
        %v1485 = vpack.c.b16 %v1468, %v1467
        %v1486 = vpack.c.b16 %v1470, %v1469
        %1503 = vmatpush.bf16.msra.mxu0 %v1478
        %1504 = vmatpush.bf16.msra.mxu0 %v1477
        %1505 = vmatpush.bf16.msra.mxu0 %v1476
        %1506 = vmatpush.bf16.msra.mxu0 %v1475
        %1507 = vmatpush.bf16.msra.mxu0 %v1474
        %1508 = vmatpush.bf16.msra.mxu0 %v1473
        %1509 = vmatpush.bf16.msra.mxu0 %v1472
        %1510 = vmatpush.bf16.msra.mxu0 %v1471
        %1511 = vmatmul.bf16.gmra.mxu0 %v1369
        %v1512 = vpop.f32.mrf.mxu0
        %v1513 = vadd.f32 %v1405, %v1512
        %v1514 = vpop.f32.mrf.mxu0
        %1515 = vdwg.mxu0
        %1516 = vmatpush.bf16.msra.mxu0 %v1486
        %1517 = vmatpush.bf16.msra.mxu0 %v1485
        %1518 = vmatpush.bf16.msra.mxu0 %v1484
        %1519 = vmatpush.bf16.msra.mxu0 %v1483
        %1520 = vmatpush.bf16.msra.mxu0 %v1482
        %1521 = vmatpush.bf16.msra.mxu0 %v1481
        %1522 = vmatpush.bf16.msra.mxu0 %v1480
        %1523 = vmatpush.bf16.msra.mxu0 %v1479
        %1524 = vmatmul.bf16.gmra.mxu0 %v1370
        %v1525 = vpop.f32.mrf.mxu0
        %v1526 = vadd.f32 %v1513, %v1525
        %v1527 = vpop.f32.mrf.mxu0
        %1528 = vdwg.mxu0
        %v1529 = vadd.f32 %v1526, %v1237
        %1530 = vadd.xlane.f32.xlu0 %v1529
        %v1531 = vpop.xlane.xlu0 %1530
        %v1532 = vmul.f32 %v1531, %v1209
        %v1533 = vsub.f32 %v1529, %v1532
        %v1534 = vmul.f32 %v1533, %v1533
        %1535 = vadd.xlane.f32.xlu0 %v1534
        %v1536 = vpop.xlane.xlu0 %1535
        %v1537 = vmul.f32 %v1536, %v1209
        %v1538 = vadd.f32 %v1537, 1e-05
        %v1539 = vrsqrt.pop %v1538
        %v1540 = vmul.f32 %v1539, %v1538
        %v1541 = vmul.f32 %v1540, %v1539
        %v1542 = vmul.f32 0.5, %v1541
        %v1543 = vsub.f32 1.5, %v1542
        %v1544 = vmul.f32 %v1539, %v1543
        %vm1545 = vweird.f32 %v1538
        %vm1546 = vweird.f32 %v1539
        %vm1547 = vmor %vm1545, %vm1546
        %v1548 = vsel %vm1547, %v1539, %v1544
        %v1549 = vmul.f32 %v1533, %v1548
        %v1550 = vld [vmem:[%s11] sm:$0x1]
        %v1552 = vperm.slane %v1550, 0
        %v1554 = vmul.f32 %v1549, %v1552
        %v1555 = vld [vmem:[%s12] sm:$0x1]
        %v1557 = vperm.slane %v1555, 0
        %v1559 = vadd.f32 %v1554, %v1557
        %v1560 = vpack.c.bf16 %v1559, %v1559
        %s1561 = scalar_lea.vmem [#allocation4], 192
        %v1562 = vld [vmem:[%s1561] sm:$0xff]
        %v1563 = vld [vmem:[%s1561 + $0x8] sm:$0xf]
        %v1564 = vld [vmem:[%s1561 + $0xc] sm:$0xff]
        %v1565 = vld [vmem:[%s1561 + $0x14] sm:$0xf]
        %v1566 = vld [vmem:[%s1561 + $0x18] sm:$0xff]
        %v1567 = vld [vmem:[%s1561 + $0x20] sm:$0xf]
        %v1568 = vld [vmem:[%s1561 + $0x24] sm:$0xff]
        %v1569 = vld [vmem:[%s1561 + $0x2c] sm:$0xf]
        %v1570 = vld [vmem:[%s1561 + $0x30] sm:$0xff]
        %v1571 = vld [vmem:[%s1561 + $0x38] sm:$0xf]
        %v1572 = vld [vmem:[%s1561 + $0x3c] sm:$0xff]
        %v1573 = vld [vmem:[%s1561 + $0x44] sm:$0xf]
        %v1574 = vld [vmem:[%s1561 + $0x48] sm:$0xff]
        %v1575 = vld [vmem:[%s1561 + $0x50] sm:$0xf]
        %v1576 = vld [vmem:[%s1561 + $0x54] sm:$0xff]
        %v1577 = vld [vmem:[%s1561 + $0x5c] sm:$0xf]
        %v1578 = vld [vmem:[%s1561 + $0x60] sm:$0xff]
        %v1579 = vld [vmem:[%s1561 + $0x68] sm:$0xf]
        %v1580 = vld [vmem:[%s1561 + $0x6c] sm:$0xff]
        %v1581 = vld [vmem:[%s1561 + $0x74] sm:$0xf]
        %v1582 = vld [vmem:[%s1561 + $0x78] sm:$0xff]
        %v1583 = vld [vmem:[%s1561 + $0x80] sm:$0xf]
        %v1584 = vld [vmem:[%s1561 + $0x84] sm:$0xff]
        %v1585 = vld [vmem:[%s1561 + $0x8c] sm:$0xf]
        %v1586 = vld [vmem:[%s1561 + $0x90] sm:$0xff]
        %v1587 = vld [vmem:[%s1561 + $0x98] sm:$0xf]
        %v1588 = vld [vmem:[%s1561 + $0x9c] sm:$0xff]
        %v1589 = vld [vmem:[%s1561 + $0xa4] sm:$0xf]
        %v1590 = vld [vmem:[%s1561 + $0xa8] sm:$0xff]
        %v1591 = vld [vmem:[%s1561 + $0xb0] sm:$0xf]
        %v1592 = vld [vmem:[%s1561 + $0xb4] sm:$0xff]
        %v1593 = vld [vmem:[%s1561 + $0xbc] sm:$0xf]
        %s1594 = scalar_lea.vmem %s2, 3
        %v1595 = vld [vmem:[%s1594] sm:$0x7]
        %v1597 = vperm.slane %v1595, 0
        %v1598 = vperm.slane %v1595, 1
        %v1599 = vperm.slane %v1595, 2
        %v1635 = vunpack.c.l.b16 %v1562
        %v1636 = vunpack.c.h.b16 %v1562
        %v1637 = vunpack.c.l.b16 %v1563
        %v1638 = vunpack.c.l.b16 %v1564
        %v1639 = vunpack.c.h.b16 %v1564
        %v1640 = vunpack.c.l.b16 %v1565
        %v1641 = vunpack.c.l.b16 %v1566
        %v1642 = vunpack.c.h.b16 %v1566
        %v1643 = vunpack.c.l.b16 %v1567
        %v1644 = vunpack.c.l.b16 %v1568
        %v1645 = vunpack.c.h.b16 %v1568
        %v1646 = vunpack.c.l.b16 %v1569
        %v1647 = vunpack.c.l.b16 %v1570
        %v1648 = vunpack.c.h.b16 %v1570
        %v1649 = vunpack.c.l.b16 %v1571
        %v1650 = vunpack.c.l.b16 %v1572
        %v1651 = vunpack.c.h.b16 %v1572
        %v1652 = vunpack.c.l.b16 %v1573
        %v1653 = vunpack.c.l.b16 %v1574
        %v1654 = vunpack.c.h.b16 %v1574
        %v1655 = vunpack.c.l.b16 %v1575
        %v1656 = vunpack.c.l.b16 %v1576
        %v1657 = vunpack.c.h.b16 %v1576
        %v1658 = vunpack.c.l.b16 %v1577
        %v1659 = vunpack.c.l.b16 %v1578
        %v1660 = vunpack.c.h.b16 %v1578
        %v1661 = vunpack.c.l.b16 %v1579
        %v1662 = vunpack.c.l.b16 %v1580
        %v1663 = vunpack.c.h.b16 %v1580
        %v1664 = vunpack.c.l.b16 %v1581
        %v1665 = vunpack.c.l.b16 %v1582
        %v1666 = vunpack.c.h.b16 %v1582
        %v1667 = vunpack.c.l.b16 %v1583
        %v1668 = vunpack.c.l.b16 %v1584
        %v1669 = vunpack.c.h.b16 %v1584
        %v1670 = vunpack.c.l.b16 %v1585
        %v1671 = vunpack.c.l.b16 %v1586
        %v1672 = vunpack.c.h.b16 %v1586
        %v1673 = vunpack.c.l.b16 %v1587
        %v1674 = vunpack.c.l.b16 %v1588
        %v1675 = vunpack.c.h.b16 %v1588
        %v1676 = vunpack.c.l.b16 %v1589
        %v1677 = vunpack.c.l.b16 %v1590
        %v1678 = vunpack.c.h.b16 %v1590
        %v1679 = vunpack.c.l.b16 %v1591
        %v1680 = vunpack.c.l.b16 %v1592
        %v1681 = vunpack.c.h.b16 %v1592
        %v1682 = vunpack.c.l.b16 %v1593
        %v1683 = vpack.c.b16 %v1638, %v1635
        %v1684 = vpack.c.b16 %v1639, %v1636
        %v1685 = vpack.c.b16 %v1640, %v1637
        %v1686 = vpack.c.b16 %v1644, %v1641
        %v1687 = vpack.c.b16 %v1645, %v1642
        %v1688 = vpack.c.b16 %v1646, %v1643
        %v1689 = vpack.c.b16 %v1650, %v1647
        %v1690 = vpack.c.b16 %v1651, %v1648
        %v1691 = vpack.c.b16 %v1652, %v1649
        %v1692 = vpack.c.b16 %v1656, %v1653
        %v1693 = vpack.c.b16 %v1657, %v1654
        %v1694 = vpack.c.b16 %v1658, %v1655
        %v1695 = vpack.c.b16 %v1662, %v1659
        %v1696 = vpack.c.b16 %v1663, %v1660
        %v1697 = vpack.c.b16 %v1664, %v1661
        %v1698 = vpack.c.b16 %v1668, %v1665
        %v1699 = vpack.c.b16 %v1669, %v1666
        %v1700 = vpack.c.b16 %v1670, %v1667
        %v1701 = vpack.c.b16 %v1674, %v1671
        %v1702 = vpack.c.b16 %v1675, %v1672
        %v1703 = vpack.c.b16 %v1676, %v1673
        %v1704 = vpack.c.b16 %v1680, %v1677
        %v1705 = vpack.c.b16 %v1681, %v1678
        %v1706 = vpack.c.b16 %v1682, %v1679
        %1731 = vmatpush.bf16.msra.mxu0 %v1704
        %1732 = vmatpush.bf16.msra.mxu0 %v1701
        %1733 = vmatpush.bf16.msra.mxu0 %v1698
        %1734 = vmatpush.bf16.msra.mxu0 %v1695
        %1735 = vmatpush.bf16.msra.mxu0 %v1692
        %1736 = vmatpush.bf16.msra.mxu0 %v1689
        %1737 = vmatpush.bf16.msra.mxu0 %v1686
        %1738 = vmatpush.bf16.msra.mxu0 %v1683
        %1739 = vmatmul.bf16.gmra.mxu0 %v1560
        %v1740 = vpop.f32.mrf.mxu0
        %v1741 = vadd.f32 %v1597, %v1740
        %v1742 = vpop.f32.mrf.mxu0
        %1743 = vdwg.mxu0
        %1744 = vmatpush.bf16.msra.mxu0 %v1705
        %1745 = vmatpush.bf16.msra.mxu0 %v1702
        %1746 = vmatpush.bf16.msra.mxu0 %v1699
        %1747 = vmatpush.bf16.msra.mxu0 %v1696
        %1748 = vmatpush.bf16.msra.mxu0 %v1693
        %1749 = vmatpush.bf16.msra.mxu0 %v1690
        %1750 = vmatpush.bf16.msra.mxu0 %v1687
        %1751 = vmatpush.bf16.msra.mxu0 %v1684
        %1752 = vmatmul.bf16.gmra.mxu0 %v1560
        %v1753 = vpop.f32.mrf.mxu0
        %v1754 = vadd.f32 %v1598, %v1753
        %v1755 = vpop.f32.mrf.mxu0
        %1756 = vdwg.mxu0
        %1757 = vmatpush.bf16.msra.mxu0 %v1706
        %1758 = vmatpush.bf16.msra.mxu0 %v1703
        %1759 = vmatpush.bf16.msra.mxu0 %v1700
        %1760 = vmatpush.bf16.msra.mxu0 %v1697
        %1761 = vmatpush.bf16.msra.mxu0 %v1694
        %1762 = vmatpush.bf16.msra.mxu0 %v1691
        %1763 = vmatpush.bf16.msra.mxu0 %v1688
        %1764 = vmatpush.bf16.msra.mxu0 %v1685
        %1765 = vmatmul.bf16.gmra.mxu0 %v1560
        %v1766 = vpop.f32.mrf.mxu0
        %v1767 = vadd.f32 %v1599, %v1766
        %v1768 = vpop.f32.mrf.mxu0
        %1769 = vdwg.mxu0
        %1770 = vst [vmem:[#allocation2] sm:$0xff] %v1741
        %1771 = vst [vmem:[#allocation2 + $0x8] sm:$0xff] %v1754
        %1772 = vst [vmem:[#allocation2 + $0x10] sm:$0xff] %v1767
        %v1773 = vld [vmem:[#allocation2] sm:$0xff]
        %v1774 = vld [vmem:[#allocation2 + $0x8] sm:$0xff]
        %v1775 = vld [vmem:[#allocation2 + $0x10] sm:$0xff]
        %v1776 = vpack.c.bf16 %v1773, %v1773
        %v1777 = vpack.c.bf16 %v1774, %v1774
        %v1779 = vsel %vm845, %v1776, 0
        %v1782 = vsel %vm845, %v1777, 0
        %1784 = vmatpush.bf16.xpose.msra.mxu0 0
        %1785 = vmatpush.bf16.xpose.msra.mxu0 0
        %1786 = vmatpush.bf16.xpose.msra.mxu0 0
        %1787 = vmatpush.bf16.xpose.msra.mxu0 0
        %1788 = vmatpush.bf16.xpose.msra.mxu0 0
        %1789 = vmatpush.bf16.xpose.msra.mxu0 0
        %1790 = vmatpush.bf16.xpose.msra.mxu0 0
        %1791 = vmatpush.bf16.xpose.msra.mxu0 %v1782
        %1792 = vmatmul.bf16.gmra.mxu0 %v1779
        %v1793 = vpop.f32.mrf.mxu0
        %v1794 = vadd.f32 0.0, %v1793
        %v1795 = vpop.f32.mrf.mxu0
        %1796 = vdwg.mxu0
        %v1797 = vmul.f32 %v1794, 0.17677669
        %v1798 = vsel %vm866, %v1797, -inf
        %1799 = vmax.xlane.f32.xlu0 %v1798
        %v1800 = vpop.xlane.xlu0 %1799
        %v1801 = vsub.f32 %v1797, %v1800
        %v1802 = vmul.f32 %v1801, 1.442695
        %v1803 = vpow.pop %v1802
        %v1804 = vsel %vm866, %v1803, 0.0
        %1805 = vadd.xlane.f32.xlu0 %v1804
        %v1806 = vpop.xlane.xlu0 %1805
        %v1807 = vrcp.pop %v1806
        %v1808 = vmul.f32 %v1803, %v1807
        %v1809 = vpack.c.bf16 %v1808, %v1808
        %v1810 = vpack.c.bf16 %v1775, %v1775
        %v1812 = vsel %vm866, %v1809, 0
        %v1815 = vsel %vm883, %v1810, 0
        %1817 = vmatpush.bf16.msra.mxu0 0
        %1818 = vmatpush.bf16.msra.mxu0 0
        %1819 = vmatpush.bf16.msra.mxu0 0
        %1820 = vmatpush.bf16.msra.mxu0 0
        %1821 = vmatpush.bf16.msra.mxu0 0
        %1822 = vmatpush.bf16.msra.mxu0 0
        %1823 = vmatpush.bf16.msra.mxu0 0
        %1824 = vmatpush.bf16.msra.mxu0 %v1815
        %1825 = vmatmul.bf16.gmra.mxu0 %v1812
        %v1826 = vpop.f32.mrf.mxu0
        %v1827 = vadd.f32 0.0, %v1826
        %v1828 = vpop.f32.mrf.mxu0
        %1829 = vdwg.mxu0
        %1830 = vst.msk [vmem:[#allocation3] sm:$0xff] %vm845, %v1827
        %v1831 = vld [vmem:[#allocation2] sm:$0xff]
        %v1832 = vld [vmem:[#allocation2 + $0x8] sm:$0xff]
        %v1833 = vld [vmem:[#allocation2 + $0x10] sm:$0xff]
        %v1834 = vpack.c.bf16 %v1831, %v1831
        %v1835 = vpack.c.bf16 %v1832, %v1832
        %1837 = vrot.lane.b32.xlu0 %v1834, 96
        %v1838 = vpop.permute.xlu0 %1837
        %1840 = vrot.lane.b32.xlu0 %v1835, 96
        %v1841 = vpop.permute.xlu0 %1840
        %v1843 = vsel %vm845, %v1838, 0
        %v1846 = vsel %vm845, %v1841, 0
        %1848 = vmatpush.bf16.xpose.msra.mxu0 0
        %1849 = vmatpush.bf16.xpose.msra.mxu0 0
        %1850 = vmatpush.bf16.xpose.msra.mxu0 0
        %1851 = vmatpush.bf16.xpose.msra.mxu0 0
        %1852 = vmatpush.bf16.xpose.msra.mxu0 0
        %1853 = vmatpush.bf16.xpose.msra.mxu0 0
        %1854 = vmatpush.bf16.xpose.msra.mxu0 0
        %1855 = vmatpush.bf16.xpose.msra.mxu0 %v1846
        %1856 = vmatmul.bf16.gmra.mxu0 %v1843
        %v1857 = vpop.f32.mrf.mxu0
        %v1858 = vadd.f32 0.0, %v1857
        %v1859 = vpop.f32.mrf.mxu0
        %1860 = vdwg.mxu0
        %v1861 = vmul.f32 %v1858, 0.17677669
        %v1862 = vsel %vm866, %v1861, -inf
        %1863 = vmax.xlane.f32.xlu0 %v1862
        %v1864 = vpop.xlane.xlu0 %1863
        %v1865 = vsub.f32 %v1861, %v1864
        %v1866 = vmul.f32 %v1865, 1.442695
        %v1867 = vpow.pop %v1866
        %v1868 = vsel %vm866, %v1867, 0.0
        %1869 = vadd.xlane.f32.xlu0 %v1868
        %v1870 = vpop.xlane.xlu0 %1869
        %v1871 = vrcp.pop %v1870
        %v1872 = vmul.f32 %v1867, %v1871
        %v1873 = vpack.c.bf16 %v1872, %v1872
        %v1874 = vpack.c.bf16 %v1833, %v1833
        %1876 = vrot.lane.b32.xlu0 %v1874, 96
        %v1877 = vpop.permute.xlu0 %1876
        %v1879 = vsel %vm866, %v1873, 0
        %v1882 = vsel %vm883, %v1877, 0
        %1884 = vmatpush.bf16.msra.mxu0 0
        %1885 = vmatpush.bf16.msra.mxu0 0
        %1886 = vmatpush.bf16.msra.mxu0 0
        %1887 = vmatpush.bf16.msra.mxu0 0
        %1888 = vmatpush.bf16.msra.mxu0 0
        %1889 = vmatpush.bf16.msra.mxu0 0
        %1890 = vmatpush.bf16.msra.mxu0 0
        %1891 = vmatpush.bf16.msra.mxu0 %v1882
        %1892 = vmatmul.bf16.gmra.mxu0 %v1879
        %v1893 = vpop.f32.mrf.mxu0
        %v1894 = vadd.f32 0.0, %v1893
        %v1895 = vpop.f32.mrf.mxu0
        %1896 = vdwg.mxu0
        %1898 = vrot.lane.b32.xlu0 %v1894, 32
        %v1899 = vpop.permute.xlu0 %1898
        %1901 = vst.msk [vmem:[#allocation3] sm:$0xff] %vm971, %v1899
        %v1902 = vld [vmem:[#allocation2] sm:$0xff]
        %v1903 = vld [vmem:[#allocation2 + $0x8] sm:$0xff]
        %v1904 = vld [vmem:[#allocation2 + $0x10] sm:$0xff]
        %v1905 = vpack.c.bf16 %v1902, %v1902
        %v1906 = vpack.c.bf16 %v1903, %v1903
        %1908 = vrot.lane.b32.xlu0 %v1905, 64
        %v1909 = vpop.permute.xlu0 %1908
        %1911 = vrot.lane.b32.xlu0 %v1906, 64
        %v1912 = vpop.permute.xlu0 %1911
        %v1914 = vsel %vm845, %v1909, 0
        %v1917 = vsel %vm845, %v1912, 0
        %1919 = vmatpush.bf16.xpose.msra.mxu0 0
        %1920 = vmatpush.bf16.xpose.msra.mxu0 0
        %1921 = vmatpush.bf16.xpose.msra.mxu0 0
        %1922 = vmatpush.bf16.xpose.msra.mxu0 0
        %1923 = vmatpush.bf16.xpose.msra.mxu0 0
        %1924 = vmatpush.bf16.xpose.msra.mxu0 0
        %1925 = vmatpush.bf16.xpose.msra.mxu0 0
        %1926 = vmatpush.bf16.xpose.msra.mxu0 %v1917
        %1927 = vmatmul.bf16.gmra.mxu0 %v1914
        %v1928 = vpop.f32.mrf.mxu0
        %v1929 = vadd.f32 0.0, %v1928
        %v1930 = vpop.f32.mrf.mxu0
        %1931 = vdwg.mxu0
        %v1932 = vmul.f32 %v1929, 0.17677669
        %v1933 = vsel %vm866, %v1932, -inf
        %1934 = vmax.xlane.f32.xlu0 %v1933
        %v1935 = vpop.xlane.xlu0 %1934
        %v1936 = vsub.f32 %v1932, %v1935
        %v1937 = vmul.f32 %v1936, 1.442695
        %v1938 = vpow.pop %v1937
        %v1939 = vsel %vm866, %v1938, 0.0
        %1940 = vadd.xlane.f32.xlu0 %v1939
        %v1941 = vpop.xlane.xlu0 %1940
        %v1942 = vrcp.pop %v1941
        %v1943 = vmul.f32 %v1938, %v1942
        %v1944 = vpack.c.bf16 %v1943, %v1943
        %v1945 = vpack.c.bf16 %v1904, %v1904
        %1947 = vrot.lane.b32.xlu0 %v1945, 64
        %v1948 = vpop.permute.xlu0 %1947
        %v1950 = vsel %vm866, %v1944, 0
        %v1953 = vsel %vm883, %v1948, 0
        %1955 = vmatpush.bf16.msra.mxu0 0
        %1956 = vmatpush.bf16.msra.mxu0 0
        %1957 = vmatpush.bf16.msra.mxu0 0
        %1958 = vmatpush.bf16.msra.mxu0 0
        %1959 = vmatpush.bf16.msra.mxu0 0
        %1960 = vmatpush.bf16.msra.mxu0 0
        %1961 = vmatpush.bf16.msra.mxu0 0
        %1962 = vmatpush.bf16.msra.mxu0 %v1953
        %1963 = vmatmul.bf16.gmra.mxu0 %v1950
        %v1964 = vpop.f32.mrf.mxu0
        %v1965 = vadd.f32 0.0, %v1964
        %v1966 = vpop.f32.mrf.mxu0
        %1967 = vdwg.mxu0
        %1969 = vrot.lane.b32.xlu0 %v1965, 64
        %v1970 = vpop.permute.xlu0 %1969
        %1972 = vst.msk [vmem:[#allocation3] sm:$0xff] %vm1043, %v1970
        %v1973 = vld [vmem:[#allocation2] sm:$0xff]
        %v1974 = vld [vmem:[#allocation2 + $0x8] sm:$0xff]
        %v1975 = vld [vmem:[#allocation2 + $0x10] sm:$0xff]
        %v1976 = vpack.c.bf16 %v1973, %v1973
        %v1977 = vpack.c.bf16 %v1974, %v1974
        %1979 = vrot.lane.b32.xlu0 %v1976, 32
        %v1980 = vpop.permute.xlu0 %1979
        %1982 = vrot.lane.b32.xlu0 %v1977, 32
        %v1983 = vpop.permute.xlu0 %1982
        %v1985 = vsel %vm845, %v1980, 0
        %v1988 = vsel %vm845, %v1983, 0
        %1990 = vmatpush.bf16.xpose.msra.mxu0 0
        %1991 = vmatpush.bf16.xpose.msra.mxu0 0
        %1992 = vmatpush.bf16.xpose.msra.mxu0 0
        %1993 = vmatpush.bf16.xpose.msra.mxu0 0
        %1994 = vmatpush.bf16.xpose.msra.mxu0 0
        %1995 = vmatpush.bf16.xpose.msra.mxu0 0
        %1996 = vmatpush.bf16.xpose.msra.mxu0 0
        %1997 = vmatpush.bf16.xpose.msra.mxu0 %v1988
        %1998 = vmatmul.bf16.gmra.mxu0 %v1985
        %v1999 = vpop.f32.mrf.mxu0
        %v2000 = vadd.f32 0.0, %v1999
        %v2001 = vpop.f32.mrf.mxu0
        %2002 = vdwg.mxu0
        %v2003 = vmul.f32 %v2000, 0.17677669
        %v2004 = vsel %vm866, %v2003, -inf
        %2005 = vmax.xlane.f32.xlu0 %v2004
        %v2006 = vpop.xlane.xlu0 %2005
        %v2007 = vsub.f32 %v2003, %v2006
        %v2008 = vmul.f32 %v2007, 1.442695
        %v2009 = vpow.pop %v2008
        %v2010 = vsel %vm866, %v2009, 0.0
        %2011 = vadd.xlane.f32.xlu0 %v2010
        %v2012 = vpop.xlane.xlu0 %2011
        %v2013 = vrcp.pop %v2012
        %v2014 = vmul.f32 %v2009, %v2013
        %v2015 = vpack.c.bf16 %v2014, %v2014
        %v2016 = vpack.c.bf16 %v1975, %v1975
        %2018 = vrot.lane.b32.xlu0 %v2016, 32
        %v2019 = vpop.permute.xlu0 %2018
        %v2021 = vsel %vm866, %v2015, 0
        %v2024 = vsel %vm883, %v2019, 0
        %2026 = vmatpush.bf16.msra.mxu0 0
        %2027 = vmatpush.bf16.msra.mxu0 0
        %2028 = vmatpush.bf16.msra.mxu0 0
        %2029 = vmatpush.bf16.msra.mxu0 0
        %2030 = vmatpush.bf16.msra.mxu0 0
        %2031 = vmatpush.bf16.msra.mxu0 0
        %2032 = vmatpush.bf16.msra.mxu0 0
        %2033 = vmatpush.bf16.msra.mxu0 %v2024
        %2034 = vmatmul.bf16.gmra.mxu0 %v2021
        %v2035 = vpop.f32.mrf.mxu0
        %v2036 = vadd.f32 0.0, %v2035
        %v2037 = vpop.f32.mrf.mxu0
        %2038 = vdwg.mxu0
        %2040 = vrot.lane.b32.xlu0 %v2036, 96
        %v2041 = vpop.permute.xlu0 %2040
        %2043 = vst.msk [vmem:[#allocation3] sm:$0xff] %vm1115, %v2041
        %v2044 = vld [vmem:[#allocation3] sm:$0xff]
        %v2045 = vpack.c.bf16 %v2044, %v2044
        %s2046 = scalar_lea.vmem %s3, 64
        %v2047 = vld [vmem:[%s2046] sm:$0xf]
        %v2048 = vld [vmem:[%s2046 + $0x4] sm:$0xf]
        %v2049 = vld [vmem:[%s2046 + $0x8] sm:$0xf]
        %v2050 = vld [vmem:[%s2046 + $0xc] sm:$0xf]
        %v2051 = vld [vmem:[%s2046 + $0x10] sm:$0xf]
        %v2052 = vld [vmem:[%s2046 + $0x14] sm:$0xf]
        %v2053 = vld [vmem:[%s2046 + $0x18] sm:$0xf]
        %v2054 = vld [vmem:[%s2046 + $0x1c] sm:$0xf]
        %v2055 = vld [vmem:[%s2046 + $0x20] sm:$0xf]
        %v2056 = vld [vmem:[%s2046 + $0x24] sm:$0xf]
        %v2057 = vld [vmem:[%s2046 + $0x28] sm:$0xf]
        %v2058 = vld [vmem:[%s2046 + $0x2c] sm:$0xf]
        %v2059 = vld [vmem:[%s2046 + $0x30] sm:$0xf]
        %v2060 = vld [vmem:[%s2046 + $0x34] sm:$0xf]
        %v2061 = vld [vmem:[%s2046 + $0x38] sm:$0xf]
        %v2062 = vld [vmem:[%s2046 + $0x3c] sm:$0xf]
        %s2063 = scalar_lea.vmem %s4, 1
        %v2064 = vld [vmem:[%s2063] sm:$0x1]
        %v2066 = vperm.slane %v2064, 0
        %v2084 = vunpack.c.l.b16 %v2047
        %v2085 = vunpack.c.l.b16 %v2048
        %v2086 = vunpack.c.l.b16 %v2049
        %v2087 = vunpack.c.l.b16 %v2050
        %v2088 = vunpack.c.l.b16 %v2051
        %v2089 = vunpack.c.l.b16 %v2052
        %v2090 = vunpack.c.l.b16 %v2053
        %v2091 = vunpack.c.l.b16 %v2054
        %v2092 = vunpack.c.l.b16 %v2055
        %v2093 = vunpack.c.l.b16 %v2056
        %v2094 = vunpack.c.l.b16 %v2057
        %v2095 = vunpack.c.l.b16 %v2058
        %v2096 = vunpack.c.l.b16 %v2059
        %v2097 = vunpack.c.l.b16 %v2060
        %v2098 = vunpack.c.l.b16 %v2061
        %v2099 = vunpack.c.l.b16 %v2062
        %v2100 = vpack.c.b16 %v2085, %v2084
        %v2101 = vpack.c.b16 %v2087, %v2086
        %v2102 = vpack.c.b16 %v2089, %v2088
        %v2103 = vpack.c.b16 %v2091, %v2090
        %v2104 = vpack.c.b16 %v2093, %v2092
        %v2105 = vpack.c.b16 %v2095, %v2094
        %v2106 = vpack.c.b16 %v2097, %v2096
        %v2107 = vpack.c.b16 %v2099, %v2098
        %2116 = vmatpush.bf16.msra.mxu0 %v2107
        %2117 = vmatpush.bf16.msra.mxu0 %v2106
        %2118 = vmatpush.bf16.msra.mxu0 %v2105
        %2119 = vmatpush.bf16.msra.mxu0 %v2104
        %2120 = vmatpush.bf16.msra.mxu0 %v2103
        %2121 = vmatpush.bf16.msra.mxu0 %v2102
        %2122 = vmatpush.bf16.msra.mxu0 %v2101
        %2123 = vmatpush.bf16.msra.mxu0 %v2100
        %2124 = vmatmul.bf16.gmra.mxu0 %v2045
        %v2125 = vpop.f32.mrf.mxu0
        %v2126 = vadd.f32 %v2066, %v2125
        %v2127 = vpop.f32.mrf.mxu0
        %2128 = vdwg.mxu0
        %v2129 = vadd.f32 %v2126, %v1559
        %2130 = vadd.xlane.f32.xlu0 %v2129
        %v2131 = vpop.xlane.xlu0 %2130
        %v2132 = vmul.f32 %v2131, %v1209
        %v2133 = vsub.f32 %v2129, %v2132
        %v2134 = vmul.f32 %v2133, %v2133
        %2135 = vadd.xlane.f32.xlu0 %v2134
        %v2136 = vpop.xlane.xlu0 %2135
        %v2137 = vmul.f32 %v2136, %v1209
        %v2138 = vadd.f32 %v2137, 1e-05
        %v2139 = vrsqrt.pop %v2138
        %v2140 = vmul.f32 %v2139, %v2138
        %v2141 = vmul.f32 %v2140, %v2139
        %v2142 = vmul.f32 0.5, %v2141
        %v2143 = vsub.f32 1.5, %v2142
        %v2144 = vmul.f32 %v2139, %v2143
        %vm2145 = vweird.f32 %v2138
        %vm2146 = vweird.f32 %v2139
        %vm2147 = vmor %vm2145, %vm2146
        %v2148 = vsel %vm2147, %v2139, %v2144
        %v2149 = vmul.f32 %v2133, %v2148
        %s2150 = scalar_lea.vmem %s5, 1
        %v2151 = vld [vmem:[%s2150] sm:$0x1]
        %v2153 = vperm.slane %v2151, 0
        %v2155 = vmul.f32 %v2149, %v2153
        %s2156 = scalar_lea.vmem %s6, 1
        %v2157 = vld [vmem:[%s2156] sm:$0x1]
        %v2159 = vperm.slane %v2157, 0
        %v2161 = vadd.f32 %v2155, %v2159
        %v2162 = vpack.c.bf16 %v2161, %v2161
        %s2163 = scalar_lea.vmem [#allocation6], 128
        %v2164 = vld [vmem:[%s2163] sm:$0xff]
        %v2165 = vld [vmem:[%s2163 + $0x8] sm:$0xff]
        %v2166 = vld [vmem:[%s2163 + $0x10] sm:$0xff]
        %v2167 = vld [vmem:[%s2163 + $0x18] sm:$0xff]
        %v2168 = vld [vmem:[%s2163 + $0x20] sm:$0xff]
        %v2169 = vld [vmem:[%s2163 + $0x28] sm:$0xff]
        %v2170 = vld [vmem:[%s2163 + $0x30] sm:$0xff]
        %v2171 = vld [vmem:[%s2163 + $0x38] sm:$0xff]
        %v2172 = vld [vmem:[%s2163 + $0x40] sm:$0xff]
        %v2173 = vld [vmem:[%s2163 + $0x48] sm:$0xff]
        %v2174 = vld [vmem:[%s2163 + $0x50] sm:$0xff]
        %v2175 = vld [vmem:[%s2163 + $0x58] sm:$0xff]
        %v2176 = vld [vmem:[%s2163 + $0x60] sm:$0xff]
        %v2177 = vld [vmem:[%s2163 + $0x68] sm:$0xff]
        %v2178 = vld [vmem:[%s2163 + $0x70] sm:$0xff]
        %v2179 = vld [vmem:[%s2163 + $0x78] sm:$0xff]
        %s2180 = scalar_lea.vmem %s8, 2
        %v2181 = vld [vmem:[%s2180] sm:$0x3]
        %v2183 = vperm.slane %v2181, 0
        %v2184 = vperm.slane %v2181, 1
        %v2203 = vunpack.c.l.b16 %v2164
        %v2204 = vunpack.c.h.b16 %v2164
        %v2205 = vunpack.c.l.b16 %v2165
        %v2206 = vunpack.c.h.b16 %v2165
        %v2207 = vunpack.c.l.b16 %v2166
        %v2208 = vunpack.c.h.b16 %v2166
        %v2209 = vunpack.c.l.b16 %v2167
        %v2210 = vunpack.c.h.b16 %v2167
        %v2211 = vunpack.c.l.b16 %v2168
        %v2212 = vunpack.c.h.b16 %v2168
        %v2213 = vunpack.c.l.b16 %v2169
        %v2214 = vunpack.c.h.b16 %v2169
        %v2215 = vunpack.c.l.b16 %v2170
        %v2216 = vunpack.c.h.b16 %v2170
        %v2217 = vunpack.c.l.b16 %v2171
        %v2218 = vunpack.c.h.b16 %v2171
        %v2219 = vunpack.c.l.b16 %v2172
        %v2220 = vunpack.c.h.b16 %v2172
        %v2221 = vunpack.c.l.b16 %v2173
        %v2222 = vunpack.c.h.b16 %v2173
        %v2223 = vunpack.c.l.b16 %v2174
        %v2224 = vunpack.c.h.b16 %v2174
        %v2225 = vunpack.c.l.b16 %v2175
        %v2226 = vunpack.c.h.b16 %v2175
        %v2227 = vunpack.c.l.b16 %v2176
        %v2228 = vunpack.c.h.b16 %v2176
        %v2229 = vunpack.c.l.b16 %v2177
        %v2230 = vunpack.c.h.b16 %v2177
        %v2231 = vunpack.c.l.b16 %v2178
        %v2232 = vunpack.c.h.b16 %v2178
        %v2233 = vunpack.c.l.b16 %v2179
        %v2234 = vunpack.c.h.b16 %v2179
        %v2235 = vpack.c.b16 %v2205, %v2203
        %v2236 = vpack.c.b16 %v2206, %v2204
        %v2237 = vpack.c.b16 %v2209, %v2207
        %v2238 = vpack.c.b16 %v2210, %v2208
        %v2239 = vpack.c.b16 %v2213, %v2211
        %v2240 = vpack.c.b16 %v2214, %v2212
        %v2241 = vpack.c.b16 %v2217, %v2215
        %v2242 = vpack.c.b16 %v2218, %v2216
        %v2243 = vpack.c.b16 %v2221, %v2219
        %v2244 = vpack.c.b16 %v2222, %v2220
        %v2245 = vpack.c.b16 %v2225, %v2223
        %v2246 = vpack.c.b16 %v2226, %v2224
        %v2247 = vpack.c.b16 %v2229, %v2227
        %v2248 = vpack.c.b16 %v2230, %v2228
        %v2249 = vpack.c.b16 %v2233, %v2231
        %v2250 = vpack.c.b16 %v2234, %v2232
        %2267 = vmatpush.bf16.msra.mxu0 %v2249
        %2268 = vmatpush.bf16.msra.mxu0 %v2247
        %2269 = vmatpush.bf16.msra.mxu0 %v2245
        %2270 = vmatpush.bf16.msra.mxu0 %v2243
        %2271 = vmatpush.bf16.msra.mxu0 %v2241
        %2272 = vmatpush.bf16.msra.mxu0 %v2239
        %2273 = vmatpush.bf16.msra.mxu0 %v2237
        %2274 = vmatpush.bf16.msra.mxu0 %v2235
        %2275 = vmatmul.bf16.gmra.mxu0 %v2162
        %v2276 = vpop.f32.mrf.mxu0
        %v2277 = vadd.f32 %v2183, %v2276
        %v2278 = vpop.f32.mrf.mxu0
        %2279 = vdwg.mxu0
        %2280 = vmatpush.bf16.msra.mxu0 %v2250
        %2281 = vmatpush.bf16.msra.mxu0 %v2248
        %2282 = vmatpush.bf16.msra.mxu0 %v2246
        %2283 = vmatpush.bf16.msra.mxu0 %v2244
        %2284 = vmatpush.bf16.msra.mxu0 %v2242
        %2285 = vmatpush.bf16.msra.mxu0 %v2240
        %2286 = vmatpush.bf16.msra.mxu0 %v2238
        %2287 = vmatpush.bf16.msra.mxu0 %v2236
        %2288 = vmatmul.bf16.gmra.mxu0 %v2162
        %v2289 = vpop.f32.mrf.mxu0
        %v2290 = vadd.f32 %v2184, %v2289
        %v2291 = vpop.f32.mrf.mxu0
        %2292 = vdwg.mxu0
        %v2293 = vmax.f32 %v2277, 0.0
        %v2294 = vmax.f32 %v2290, 0.0
        %v2295 = vpack.c.bf16 %v2293, %v2293
        %v2296 = vpack.c.bf16 %v2294, %v2294
        %s2297 = scalar_lea.vmem [#allocation8], 128
        %v2298 = vld [vmem:[%s2297] sm:$0xf]
        %v2299 = vld [vmem:[%s2297 + $0x4] sm:$0xf]
        %v2300 = vld [vmem:[%s2297 + $0x8] sm:$0xf]
        %v2301 = vld [vmem:[%s2297 + $0xc] sm:$0xf]
        %v2302 = vld [vmem:[%s2297 + $0x10] sm:$0xf]
        %v2303 = vld [vmem:[%s2297 + $0x14] sm:$0xf]
        %v2304 = vld [vmem:[%s2297 + $0x18] sm:$0xf]
        %v2305 = vld [vmem:[%s2297 + $0x1c] sm:$0xf]
        %v2306 = vld [vmem:[%s2297 + $0x20] sm:$0xf]
        %v2307 = vld [vmem:[%s2297 + $0x24] sm:$0xf]
        %v2308 = vld [vmem:[%s2297 + $0x28] sm:$0xf]
        %v2309 = vld [vmem:[%s2297 + $0x2c] sm:$0xf]
        %v2310 = vld [vmem:[%s2297 + $0x30] sm:$0xf]
        %v2311 = vld [vmem:[%s2297 + $0x34] sm:$0xf]
        %v2312 = vld [vmem:[%s2297 + $0x38] sm:$0xf]
        %v2313 = vld [vmem:[%s2297 + $0x3c] sm:$0xf]
        %v2314 = vld [vmem:[%s2297 + $0x40] sm:$0xf]
        %v2315 = vld [vmem:[%s2297 + $0x44] sm:$0xf]
        %v2316 = vld [vmem:[%s2297 + $0x48] sm:$0xf]
        %v2317 = vld [vmem:[%s2297 + $0x4c] sm:$0xf]
        %v2318 = vld [vmem:[%s2297 + $0x50] sm:$0xf]
        %v2319 = vld [vmem:[%s2297 + $0x54] sm:$0xf]
        %v2320 = vld [vmem:[%s2297 + $0x58] sm:$0xf]
        %v2321 = vld [vmem:[%s2297 + $0x5c] sm:$0xf]
        %v2322 = vld [vmem:[%s2297 + $0x60] sm:$0xf]
        %v2323 = vld [vmem:[%s2297 + $0x64] sm:$0xf]
        %v2324 = vld [vmem:[%s2297 + $0x68] sm:$0xf]
        %v2325 = vld [vmem:[%s2297 + $0x6c] sm:$0xf]
        %v2326 = vld [vmem:[%s2297 + $0x70] sm:$0xf]
        %v2327 = vld [vmem:[%s2297 + $0x74] sm:$0xf]
        %v2328 = vld [vmem:[%s2297 + $0x78] sm:$0xf]
        %v2329 = vld [vmem:[%s2297 + $0x7c] sm:$0xf]
        %s2330 = scalar_lea.vmem %s10, 1
        %v2331 = vld [vmem:[%s2330] sm:$0x1]
        %v2333 = vperm.slane %v2331, 0
        %v2367 = vunpack.c.l.b16 %v2298
        %v2368 = vunpack.c.l.b16 %v2299
        %v2369 = vunpack.c.l.b16 %v2300
        %v2370 = vunpack.c.l.b16 %v2301
        %v2371 = vunpack.c.l.b16 %v2302
        %v2372 = vunpack.c.l.b16 %v2303
        %v2373 = vunpack.c.l.b16 %v2304
        %v2374 = vunpack.c.l.b16 %v2305
        %v2375 = vunpack.c.l.b16 %v2306
        %v2376 = vunpack.c.l.b16 %v2307
        %v2377 = vunpack.c.l.b16 %v2308
        %v2378 = vunpack.c.l.b16 %v2309
        %v2379 = vunpack.c.l.b16 %v2310
        %v2380 = vunpack.c.l.b16 %v2311
        %v2381 = vunpack.c.l.b16 %v2312
        %v2382 = vunpack.c.l.b16 %v2313
        %v2383 = vunpack.c.l.b16 %v2314
        %v2384 = vunpack.c.l.b16 %v2315
        %v2385 = vunpack.c.l.b16 %v2316
        %v2386 = vunpack.c.l.b16 %v2317
        %v2387 = vunpack.c.l.b16 %v2318
        %v2388 = vunpack.c.l.b16 %v2319
        %v2389 = vunpack.c.l.b16 %v2320
        %v2390 = vunpack.c.l.b16 %v2321
        %v2391 = vunpack.c.l.b16 %v2322
        %v2392 = vunpack.c.l.b16 %v2323
        %v2393 = vunpack.c.l.b16 %v2324
        %v2394 = vunpack.c.l.b16 %v2325
        %v2395 = vunpack.c.l.b16 %v2326
        %v2396 = vunpack.c.l.b16 %v2327
        %v2397 = vunpack.c.l.b16 %v2328
        %v2398 = vunpack.c.l.b16 %v2329
        %v2399 = vpack.c.b16 %v2368, %v2367
        %v2400 = vpack.c.b16 %v2370, %v2369
        %v2401 = vpack.c.b16 %v2372, %v2371
        %v2402 = vpack.c.b16 %v2374, %v2373
        %v2403 = vpack.c.b16 %v2376, %v2375
        %v2404 = vpack.c.b16 %v2378, %v2377
        %v2405 = vpack.c.b16 %v2380, %v2379
        %v2406 = vpack.c.b16 %v2382, %v2381
        %v2407 = vpack.c.b16 %v2384, %v2383
        %v2408 = vpack.c.b16 %v2386, %v2385
        %v2409 = vpack.c.b16 %v2388, %v2387
        %v2410 = vpack.c.b16 %v2390, %v2389
        %v2411 = vpack.c.b16 %v2392, %v2391
        %v2412 = vpack.c.b16 %v2394, %v2393
        %v2413 = vpack.c.b16 %v2396, %v2395
        %v2414 = vpack.c.b16 %v2398, %v2397
        %2431 = vmatpush.bf16.msra.mxu0 %v2406
        %2432 = vmatpush.bf16.msra.mxu0 %v2405
        %2433 = vmatpush.bf16.msra.mxu0 %v2404
        %2434 = vmatpush.bf16.msra.mxu0 %v2403
        %2435 = vmatpush.bf16.msra.mxu0 %v2402
        %2436 = vmatpush.bf16.msra.mxu0 %v2401
        %2437 = vmatpush.bf16.msra.mxu0 %v2400
        %2438 = vmatpush.bf16.msra.mxu0 %v2399
        %2439 = vmatmul.bf16.gmra.mxu0 %v2295
        %v2440 = vpop.f32.mrf.mxu0
        %v2441 = vadd.f32 %v2333, %v2440
        %v2442 = vpop.f32.mrf.mxu0
        %2443 = vdwg.mxu0
        %2444 = vmatpush.bf16.msra.mxu0 %v2414
        %2445 = vmatpush.bf16.msra.mxu0 %v2413
        %2446 = vmatpush.bf16.msra.mxu0 %v2412
        %2447 = vmatpush.bf16.msra.mxu0 %v2411
        %2448 = vmatpush.bf16.msra.mxu0 %v2410
        %2449 = vmatpush.bf16.msra.mxu0 %v2409
        %2450 = vmatpush.bf16.msra.mxu0 %v2408
        %2451 = vmatpush.bf16.msra.mxu0 %v2407
        %2452 = vmatmul.bf16.gmra.mxu0 %v2296
        %v2453 = vpop.f32.mrf.mxu0
        %v2454 = vadd.f32 %v2441, %v2453
        %v2455 = vpop.f32.mrf.mxu0
        %2456 = vdwg.mxu0
        %v2457 = vadd.f32 %v2454, %v2161
        %2458 = vadd.xlane.f32.xlu0 %v2457
        %v2459 = vpop.xlane.xlu0 %2458
        %v2460 = vmul.f32 %v2459, %v1209
        %v2461 = vsub.f32 %v2457, %v2460
        %v2462 = vmul.f32 %v2461, %v2461
        %2463 = vadd.xlane.f32.xlu0 %v2462
        %v2464 = vpop.xlane.xlu0 %2463
        %v2465 = vmul.f32 %v2464, %v1209
        %v2466 = vadd.f32 %v2465, 1e-05
        %v2467 = vrsqrt.pop %v2466
        %v2468 = vmul.f32 %v2467, %v2466
        %v2469 = vmul.f32 %v2468, %v2467
        %v2470 = vmul.f32 0.5, %v2469
        %v2471 = vsub.f32 1.5, %v2470
        %v2472 = vmul.f32 %v2467, %v2471
        %vm2473 = vweird.f32 %v2466
        %vm2474 = vweird.f32 %v2467
        %vm2475 = vmor %vm2473, %vm2474
        %v2476 = vsel %vm2475, %v2467, %v2472
        %v2477 = vmul.f32 %v2461, %v2476
        %s2478 = scalar_lea.vmem %s11, 1
        %v2479 = vld [vmem:[%s2478] sm:$0x1]
        %v2481 = vperm.slane %v2479, 0
        %v2483 = vmul.f32 %v2477, %v2481
        %s2484 = scalar_lea.vmem %s12, 1
        %v2485 = vld [vmem:[%s2484] sm:$0x1]
        %v2487 = vperm.slane %v2485, 0
        %v2489 = vadd.f32 %v2483, %v2487
        %v2490 = vrot.slane %v2489, 4
        %v2491 = vadd.f32 %v2489, %v2490
        %v2492 = vrot.slane %v2491, 2
        %v2493 = vadd.f32 %v2491, %v2492
        %v2494 = vrot.slane %v2493, 1
        %v2495 = vadd.f32 %v2493, %v2494
        %v2496 = vrcp.pop 8.0
        %v2497 = vmul.f32 8.0, %v2496
        %v2498 = vsub.f32 1.0, %v2497
        %v2499 = vmul.f32 %v2496, %v2498
        %v2500 = vadd.f32 %v2496, %v2499
        %vm2501 = vweird.f32 %v2496
        %v2502 = vsel %vm2501, %v2496, %v2500
        %v2503 = vmul.f32 %v2495, %v2502
        %v2504 = vpack.c.bf16 %v2503, %v2503
        %v2505 = vld [vmem:[#allocation9] sm:$0xff]
        %v2506 = vld [vmem:[#allocation9 + $0x8] sm:$0xff]
        %v2507 = vld [vmem:[#allocation9 + $0x10] sm:$0xff]
        %v2508 = vld [vmem:[#allocation9 + $0x18] sm:$0xff]
        %v2509 = vld [vmem:[#allocation9 + $0x20] sm:$0xff]
        %v2510 = vld [vmem:[#allocation9 + $0x28] sm:$0xff]
        %v2511 = vld [vmem:[#allocation9 + $0x30] sm:$0xff]
        %v2512 = vld [vmem:[#allocation9 + $0x38] sm:$0xff]
        %v2513 = vld [vmem:[#allocation9 + $0x40] sm:$0xff]
        %v2514 = vld [vmem:[#allocation9 + $0x48] sm:$0xff]
        %v2515 = vld [vmem:[#allocation9 + $0x50] sm:$0xff]
        %v2516 = vld [vmem:[#allocation9 + $0x58] sm:$0xff]
        %v2517 = vld [vmem:[#allocation9 + $0x60] sm:$0xff]
        %v2518 = vld [vmem:[#allocation9 + $0x68] sm:$0xff]
        %v2519 = vld [vmem:[#allocation9 + $0x70] sm:$0xff]
        %v2520 = vld [vmem:[#allocation9 + $0x78] sm:$0xff]
        %v2521 = vld [vmem:[#allocation9 + $0x80] sm:$0xff]
        %v2522 = vld [vmem:[#allocation9 + $0x88] sm:$0xff]
        %v2523 = vld [vmem:[#allocation9 + $0x90] sm:$0xff]
        %v2524 = vld [vmem:[#allocation9 + $0x98] sm:$0xff]
        %v2525 = vld [vmem:[#allocation9 + $0xa0] sm:$0xff]
        %v2526 = vld [vmem:[#allocation9 + $0xa8] sm:$0xff]
        %v2527 = vld [vmem:[#allocation9 + $0xb0] sm:$0xff]
        %v2528 = vld [vmem:[#allocation9 + $0xb8] sm:$0xff]
        %v2529 = vld [vmem:[#allocation9 + $0xc0] sm:$0xff]
        %v2530 = vld [vmem:[#allocation9 + $0xc8] sm:$0xff]
        %v2531 = vld [vmem:[#allocation9 + $0xd0] sm:$0xff]
        %v2532 = vld [vmem:[#allocation9 + $0xd8] sm:$0xff]
        %v2533 = vld [vmem:[#allocation9 + $0xe0] sm:$0xff]
        %v2534 = vld [vmem:[#allocation9 + $0xe8] sm:$0xff]
        %v2535 = vld [vmem:[#allocation9 + $0xf0] sm:$0xff]
        %v2536 = vld [vmem:[#allocation9 + $0xf8] sm:$0xff]
        %v2537 = vld [vmem:[#allocation9 + $0x100] sm:$0xff]
        %v2538 = vld [vmem:[#allocation9 + $0x108] sm:$0xff]
        %v2539 = vld [vmem:[#allocation9 + $0x110] sm:$0xff]
        %v2540 = vld [vmem:[#allocation9 + $0x118] sm:$0xff]
        %v2541 = vld [vmem:[#allocation9 + $0x120] sm:$0xff]
        %v2542 = vld [vmem:[#allocation9 + $0x128] sm:$0xff]
        %v2543 = vld [vmem:[#allocation9 + $0x130] sm:$0xff]
        %v2544 = vld [vmem:[#allocation9 + $0x138] sm:$0xff]
        %v2545 = vld [vmem:[#allocation9 + $0x140] sm:$0xff]
        %v2546 = vld [vmem:[#allocation9 + $0x148] sm:$0xff]
        %v2547 = vld [vmem:[#allocation9 + $0x150] sm:$0xff]
        %v2548 = vld [vmem:[#allocation9 + $0x158] sm:$0xff]
        %v2549 = vld [vmem:[#allocation9 + $0x160] sm:$0xff]
        %v2550 = vld [vmem:[#allocation9 + $0x168] sm:$0xff]
        %v2551 = vld [vmem:[#allocation9 + $0x170] sm:$0xff]
        %v2552 = vld [vmem:[#allocation9 + $0x178] sm:$0xff]
        %v2553 = vld [vmem:[#allocation9 + $0x180] sm:$0xff]
        %v2554 = vld [vmem:[#allocation9 + $0x188] sm:$0xff]
        %v2555 = vld [vmem:[#allocation9 + $0x190] sm:$0xff]
        %v2556 = vld [vmem:[#allocation9 + $0x198] sm:$0xff]
        %v2557 = vld [vmem:[#allocation9 + $0x1a0] sm:$0xff]
        %v2558 = vld [vmem:[#allocation9 + $0x1a8] sm:$0xff]
        %v2559 = vld [vmem:[#allocation9 + $0x1b0] sm:$0xff]
        %v2560 = vld [vmem:[#allocation9 + $0x1b8] sm:$0xff]
        %v2561 = vld [vmem:[#allocation9 + $0x1c0] sm:$0xff]
        %v2562 = vld [vmem:[#allocation9 + $0x1c8] sm:$0xff]
        %v2563 = vld [vmem:[#allocation9 + $0x1d0] sm:$0xff]
        %v2564 = vld [vmem:[#allocation9 + $0x1d8] sm:$0xff]
        %v2565 = vld [vmem:[#allocation9 + $0x1e0] sm:$0xff]
        %v2566 = vld [vmem:[#allocation9 + $0x1e8] sm:$0xff]
        %v2567 = vld [vmem:[#allocation9 + $0x1f0] sm:$0xff]
        %v2568 = vld [vmem:[#allocation9 + $0x1f8] sm:$0xff]
        %v2569 = vld [vmem:[%s14] sm:$0xff]
        %v2634 = vunpack.c.l.b16 %v2505
        %v2635 = vunpack.c.h.b16 %v2505
        %v2636 = vunpack.c.l.b16 %v2506
        %v2637 = vunpack.c.h.b16 %v2506
        %v2638 = vunpack.c.l.b16 %v2507
        %v2639 = vunpack.c.h.b16 %v2507
        %v2640 = vunpack.c.l.b16 %v2508
        %v2641 = vunpack.c.h.b16 %v2508
        %v2642 = vunpack.c.l.b16 %v2509
        %v2643 = vunpack.c.h.b16 %v2509
        %v2644 = vunpack.c.l.b16 %v2510
        %v2645 = vunpack.c.h.b16 %v2510
        %v2646 = vunpack.c.l.b16 %v2511
        %v2647 = vunpack.c.h.b16 %v2511
        %v2648 = vunpack.c.l.b16 %v2512
        %v2649 = vunpack.c.h.b16 %v2512
        %v2650 = vunpack.c.l.b16 %v2513
        %v2651 = vunpack.c.h.b16 %v2513
        %v2652 = vunpack.c.l.b16 %v2514
        %v2653 = vunpack.c.h.b16 %v2514
        %v2654 = vunpack.c.l.b16 %v2515
        %v2655 = vunpack.c.h.b16 %v2515
        %v2656 = vunpack.c.l.b16 %v2516
        %v2657 = vunpack.c.h.b16 %v2516
        %v2658 = vunpack.c.l.b16 %v2517
        %v2659 = vunpack.c.h.b16 %v2517
        %v2660 = vunpack.c.l.b16 %v2518
        %v2661 = vunpack.c.h.b16 %v2518
        %v2662 = vunpack.c.l.b16 %v2519
        %v2663 = vunpack.c.h.b16 %v2519
        %v2664 = vunpack.c.l.b16 %v2520
        %v2665 = vunpack.c.h.b16 %v2520
        %v2666 = vunpack.c.l.b16 %v2521
        %v2667 = vunpack.c.h.b16 %v2521
        %v2668 = vunpack.c.l.b16 %v2522
        %v2669 = vunpack.c.h.b16 %v2522
        %v2670 = vunpack.c.l.b16 %v2523
        %v2671 = vunpack.c.h.b16 %v2523
        %v2672 = vunpack.c.l.b16 %v2524
        %v2673 = vunpack.c.h.b16 %v2524
        %v2674 = vunpack.c.l.b16 %v2525
        %v2675 = vunpack.c.h.b16 %v2525
        %v2676 = vunpack.c.l.b16 %v2526
        %v2677 = vunpack.c.h.b16 %v2526
        %v2678 = vunpack.c.l.b16 %v2527
        %v2679 = vunpack.c.h.b16 %v2527
        %v2680 = vunpack.c.l.b16 %v2528
        %v2681 = vunpack.c.h.b16 %v2528
        %v2682 = vunpack.c.l.b16 %v2529
        %v2683 = vunpack.c.h.b16 %v2529
        %v2684 = vunpack.c.l.b16 %v2530
        %v2685 = vunpack.c.h.b16 %v2530
        %v2686 = vunpack.c.l.b16 %v2531
        %v2687 = vunpack.c.h.b16 %v2531
        %v2688 = vunpack.c.l.b16 %v2532
        %v2689 = vunpack.c.h.b16 %v2532
        %v2690 = vunpack.c.l.b16 %v2533
        %v2691 = vunpack.c.h.b16 %v2533
        %v2692 = vunpack.c.l.b16 %v2534
        %v2693 = vunpack.c.h.b16 %v2534
        %v2694 = vunpack.c.l.b16 %v2535
        %v2695 = vunpack.c.h.b16 %v2535
        %v2696 = vunpack.c.l.b16 %v2536
        %v2697 = vunpack.c.h.b16 %v2536
        %v2698 = vunpack.c.l.b16 %v2537
        %v2699 = vunpack.c.h.b16 %v2537
        %v2700 = vunpack.c.l.b16 %v2538
        %v2701 = vunpack.c.h.b16 %v2538
        %v2702 = vunpack.c.l.b16 %v2539
        %v2703 = vunpack.c.h.b16 %v2539
        %v2704 = vunpack.c.l.b16 %v2540
        %v2705 = vunpack.c.h.b16 %v2540
        %v2706 = vunpack.c.l.b16 %v2541
        %v2707 = vunpack.c.h.b16 %v2541
        %v2708 = vunpack.c.l.b16 %v2542
        %v2709 = vunpack.c.h.b16 %v2542
        %v2710 = vunpack.c.l.b16 %v2543
        %v2711 = vunpack.c.h.b16 %v2543
        %v2712 = vunpack.c.l.b16 %v2544
        %v2713 = vunpack.c.h.b16 %v2544
        %v2714 = vunpack.c.l.b16 %v2545
        %v2715 = vunpack.c.h.b16 %v2545
        %v2716 = vunpack.c.l.b16 %v2546
        %v2717 = vunpack.c.h.b16 %v2546
        %v2718 = vunpack.c.l.b16 %v2547
        %v2719 = vunpack.c.h.b16 %v2547
        %v2720 = vunpack.c.l.b16 %v2548
        %v2721 = vunpack.c.h.b16 %v2548
        %v2722 = vunpack.c.l.b16 %v2549
        %v2723 = vunpack.c.h.b16 %v2549
        %v2724 = vunpack.c.l.b16 %v2550
        %v2725 = vunpack.c.h.b16 %v2550
        %v2726 = vunpack.c.l.b16 %v2551
        %v2727 = vunpack.c.h.b16 %v2551
        %v2728 = vunpack.c.l.b16 %v2552
        %v2729 = vunpack.c.h.b16 %v2552
        %v2730 = vunpack.c.l.b16 %v2553
        %v2731 = vunpack.c.h.b16 %v2553
        %v2732 = vunpack.c.l.b16 %v2554
        %v2733 = vunpack.c.h.b16 %v2554
        %v2734 = vunpack.c.l.b16 %v2555
        %v2735 = vunpack.c.h.b16 %v2555
        %v2736 = vunpack.c.l.b16 %v2556
        %v2737 = vunpack.c.h.b16 %v2556
        %v2738 = vunpack.c.l.b16 %v2557
        %v2739 = vunpack.c.h.b16 %v2557
        %v2740 = vunpack.c.l.b16 %v2558
        %v2741 = vunpack.c.h.b16 %v2558
        %v2742 = vunpack.c.l.b16 %v2559
        %v2743 = vunpack.c.h.b16 %v2559
        %v2744 = vunpack.c.l.b16 %v2560
        %v2745 = vunpack.c.h.b16 %v2560
        %v2746 = vunpack.c.l.b16 %v2561
        %v2747 = vunpack.c.h.b16 %v2561
        %v2748 = vunpack.c.l.b16 %v2562
        %v2749 = vunpack.c.h.b16 %v2562
        %v2750 = vunpack.c.l.b16 %v2563
        %v2751 = vunpack.c.h.b16 %v2563
        %v2752 = vunpack.c.l.b16 %v2564
        %v2753 = vunpack.c.h.b16 %v2564
        %v2754 = vunpack.c.l.b16 %v2565
        %v2755 = vunpack.c.h.b16 %v2565
        %v2756 = vunpack.c.l.b16 %v2566
        %v2757 = vunpack.c.h.b16 %v2566
        %v2758 = vunpack.c.l.b16 %v2567
        %v2759 = vunpack.c.h.b16 %v2567
        %v2760 = vunpack.c.l.b16 %v2568
        %v2761 = vunpack.c.h.b16 %v2568
        %v2762 = vpack.c.b16 %v2642, %v2634
        %v2763 = vpack.c.b16 %v2643, %v2635
        %v2764 = vpack.c.b16 %v2644, %v2636
        %v2765 = vpack.c.b16 %v2645, %v2637
        %v2766 = vpack.c.b16 %v2646, %v2638
        %v2767 = vpack.c.b16 %v2647, %v2639
        %v2768 = vpack.c.b16 %v2648, %v2640
        %v2769 = vpack.c.b16 %v2649, %v2641
        %v2770 = vpack.c.b16 %v2658, %v2650
        %v2771 = vpack.c.b16 %v2659, %v2651
        %v2772 = vpack.c.b16 %v2660, %v2652
        %v2773 = vpack.c.b16 %v2661, %v2653
        %v2774 = vpack.c.b16 %v2662, %v2654
        %v2775 = vpack.c.b16 %v2663, %v2655
        %v2776 = vpack.c.b16 %v2664, %v2656
        %v2777 = vpack.c.b16 %v2665, %v2657
        %v2778 = vpack.c.b16 %v2674, %v2666
        %v2779 = vpack.c.b16 %v2675, %v2667
        %v2780 = vpack.c.b16 %v2676, %v2668
        %v2781 = vpack.c.b16 %v2677, %v2669
        %v2782 = vpack.c.b16 %v2678, %v2670
        %v2783 = vpack.c.b16 %v2679, %v2671
        %v2784 = vpack.c.b16 %v2680, %v2672
        %v2785 = vpack.c.b16 %v2681, %v2673
        %v2786 = vpack.c.b16 %v2690, %v2682
        %v2787 = vpack.c.b16 %v2691, %v2683
        %v2788 = vpack.c.b16 %v2692, %v2684
        %v2789 = vpack.c.b16 %v2693, %v2685
        %v2790 = vpack.c.b16 %v2694, %v2686
        %v2791 = vpack.c.b16 %v2695, %v2687
        %v2792 = vpack.c.b16 %v2696, %v2688
        %v2793 = vpack.c.b16 %v2697, %v2689
        %v2794 = vpack.c.b16 %v2706, %v2698
        %v2795 = vpack.c.b16 %v2707, %v2699
        %v2796 = vpack.c.b16 %v2708, %v2700
        %v2797 = vpack.c.b16 %v2709, %v2701
        %v2798 = vpack.c.b16 %v2710, %v2702
        %v2799 = vpack.c.b16 %v2711, %v2703
        %v2800 = vpack.c.b16 %v2712, %v2704
        %v2801 = vpack.c.b16 %v2713, %v2705
        %v2802 = vpack.c.b16 %v2722, %v2714
        %v2803 = vpack.c.b16 %v2723, %v2715
        %v2804 = vpack.c.b16 %v2724, %v2716
        %v2805 = vpack.c.b16 %v2725, %v2717
        %v2806 = vpack.c.b16 %v2726, %v2718
        %v2807 = vpack.c.b16 %v2727, %v2719
        %v2808 = vpack.c.b16 %v2728, %v2720
        %v2809 = vpack.c.b16 %v2729, %v2721
        %v2810 = vpack.c.b16 %v2738, %v2730
        %v2811 = vpack.c.b16 %v2739, %v2731
        %v2812 = vpack.c.b16 %v2740, %v2732
        %v2813 = vpack.c.b16 %v2741, %v2733
        %v2814 = vpack.c.b16 %v2742, %v2734
        %v2815 = vpack.c.b16 %v2743, %v2735
        %v2816 = vpack.c.b16 %v2744, %v2736
        %v2817 = vpack.c.b16 %v2745, %v2737
        %v2818 = vpack.c.b16 %v2754, %v2746
        %v2819 = vpack.c.b16 %v2755, %v2747
        %v2820 = vpack.c.b16 %v2756, %v2748
        %v2821 = vpack.c.b16 %v2757, %v2749
        %v2822 = vpack.c.b16 %v2758, %v2750
        %v2823 = vpack.c.b16 %v2759, %v2751
        %v2824 = vpack.c.b16 %v2760, %v2752
        %v2825 = vpack.c.b16 %v2761, %v2753
        %v2891 = vperm.slane %v2569, 0
        %v2892 = vperm.slane %v2569, 1
        %v2893 = vperm.slane %v2569, 2
        %v2894 = vperm.slane %v2569, 3
        %v2895 = vperm.slane %v2569, 4
        %v2896 = vperm.slane %v2569, 5
        %v2897 = vperm.slane %v2569, 6
        %v2898 = vperm.slane %v2569, 7
        %2907 = vmatpush.bf16.msra.mxu0 %v2818
        %2908 = vmatpush.bf16.msra.mxu0 %v2810
        %2909 = vmatpush.bf16.msra.mxu0 %v2802
        %2910 = vmatpush.bf16.msra.mxu0 %v2794
        %2911 = vmatpush.bf16.msra.mxu0 %v2786
        %2912 = vmatpush.bf16.msra.mxu0 %v2778
        %2913 = vmatpush.bf16.msra.mxu0 %v2770
        %2914 = vmatpush.bf16.msra.mxu0 %v2762
        %2915 = vmatmul.bf16.gmra.mxu0 %v2504
        %v2916 = vpop.f32.mrf.mxu0
        %v2917 = vadd.f32 %v2891, %v2916
        %v2918 = vpop.f32.mrf.mxu0
        %2919 = vdwg.mxu0
        %2920 = vmatpush.bf16.msra.mxu0 %v2819
        %2921 = vmatpush.bf16.msra.mxu0 %v2811
        %2922 = vmatpush.bf16.msra.mxu0 %v2803
        %2923 = vmatpush.bf16.msra.mxu0 %v2795
        %2924 = vmatpush.bf16.msra.mxu0 %v2787
        %2925 = vmatpush.bf16.msra.mxu0 %v2779
        %2926 = vmatpush.bf16.msra.mxu0 %v2771
        %2927 = vmatpush.bf16.msra.mxu0 %v2763
        %2928 = vmatmul.bf16.gmra.mxu0 %v2504
        %v2929 = vpop.f32.mrf.mxu0
        %v2930 = vadd.f32 %v2892, %v2929
        %v2931 = vpop.f32.mrf.mxu0
        %2932 = vdwg.mxu0
        %2933 = vmatpush.bf16.msra.mxu0 %v2820
        %2934 = vmatpush.bf16.msra.mxu0 %v2812
        %2935 = vmatpush.bf16.msra.mxu0 %v2804
        %2936 = vmatpush.bf16.msra.mxu0 %v2796
        %2937 = vmatpush.bf16.msra.mxu0 %v2788
        %2938 = vmatpush.bf16.msra.mxu0 %v2780
        %2939 = vmatpush.bf16.msra.mxu0 %v2772
        %2940 = vmatpush.bf16.msra.mxu0 %v2764
        %2941 = vmatmul.bf16.gmra.mxu0 %v2504
        %v2942 = vpop.f32.mrf.mxu0
        %v2943 = vadd.f32 %v2893, %v2942
        %v2944 = vpop.f32.mrf.mxu0
        %2945 = vdwg.mxu0
        %2946 = vmatpush.bf16.msra.mxu0 %v2821
        %2947 = vmatpush.bf16.msra.mxu0 %v2813
        %2948 = vmatpush.bf16.msra.mxu0 %v2805
        %2949 = vmatpush.bf16.msra.mxu0 %v2797
        %2950 = vmatpush.bf16.msra.mxu0 %v2789
        %2951 = vmatpush.bf16.msra.mxu0 %v2781
        %2952 = vmatpush.bf16.msra.mxu0 %v2773
        %2953 = vmatpush.bf16.msra.mxu0 %v2765
        %2954 = vmatmul.bf16.gmra.mxu0 %v2504
        %v2955 = vpop.f32.mrf.mxu0
        %v2956 = vadd.f32 %v2894, %v2955
        %v2957 = vpop.f32.mrf.mxu0
        %2958 = vdwg.mxu0
        %2959 = vmatpush.bf16.msra.mxu0 %v2822
        %2960 = vmatpush.bf16.msra.mxu0 %v2814
        %2961 = vmatpush.bf16.msra.mxu0 %v2806
        %2962 = vmatpush.bf16.msra.mxu0 %v2798
        %2963 = vmatpush.bf16.msra.mxu0 %v2790
        %2964 = vmatpush.bf16.msra.mxu0 %v2782
        %2965 = vmatpush.bf16.msra.mxu0 %v2774
        %2966 = vmatpush.bf16.msra.mxu0 %v2766
        %2967 = vmatmul.bf16.gmra.mxu0 %v2504
        %v2968 = vpop.f32.mrf.mxu0
        %v2969 = vadd.f32 %v2895, %v2968
        %v2970 = vpop.f32.mrf.mxu0
        %2971 = vdwg.mxu0
        %2972 = vmatpush.bf16.msra.mxu0 %v2823
        %2973 = vmatpush.bf16.msra.mxu0 %v2815
        %2974 = vmatpush.bf16.msra.mxu0 %v2807
        %2975 = vmatpush.bf16.msra.mxu0 %v2799
        %2976 = vmatpush.bf16.msra.mxu0 %v2791
        %2977 = vmatpush.bf16.msra.mxu0 %v2783
        %2978 = vmatpush.bf16.msra.mxu0 %v2775
        %2979 = vmatpush.bf16.msra.mxu0 %v2767
        %2980 = vmatmul.bf16.gmra.mxu0 %v2504
        %v2981 = vpop.f32.mrf.mxu0
        %v2982 = vadd.f32 %v2896, %v2981
        %v2983 = vpop.f32.mrf.mxu0
        %2984 = vdwg.mxu0
        %2985 = vmatpush.bf16.msra.mxu0 %v2824
        %2986 = vmatpush.bf16.msra.mxu0 %v2816
        %2987 = vmatpush.bf16.msra.mxu0 %v2808
        %2988 = vmatpush.bf16.msra.mxu0 %v2800
        %2989 = vmatpush.bf16.msra.mxu0 %v2792
        %2990 = vmatpush.bf16.msra.mxu0 %v2784
        %2991 = vmatpush.bf16.msra.mxu0 %v2776
        %2992 = vmatpush.bf16.msra.mxu0 %v2768
        %2993 = vmatmul.bf16.gmra.mxu0 %v2504
        %v2994 = vpop.f32.mrf.mxu0
        %v2995 = vadd.f32 %v2897, %v2994
        %v2996 = vpop.f32.mrf.mxu0
        %2997 = vdwg.mxu0
        %2998 = vmatpush.bf16.msra.mxu0 %v2825
        %2999 = vmatpush.bf16.msra.mxu0 %v2817
        %3000 = vmatpush.bf16.msra.mxu0 %v2809
        %3001 = vmatpush.bf16.msra.mxu0 %v2801
        %3002 = vmatpush.bf16.msra.mxu0 %v2793
        %3003 = vmatpush.bf16.msra.mxu0 %v2785
        %3004 = vmatpush.bf16.msra.mxu0 %v2777
        %3005 = vmatpush.bf16.msra.mxu0 %v2769
        %3006 = vmatmul.bf16.gmra.mxu0 %v2504
        %v3007 = vpop.f32.mrf.mxu0
        %v3008 = vadd.f32 %v2898, %v3007
        %v3009 = vpop.f32.mrf.mxu0
        %3010 = vdwg.mxu0
        %vm3011 = vcmp.ge.f32.partialorder %v2917, 0.0
        %vm3012 = vcmp.ge.f32.partialorder %v2930, 0.0
        %vm3013 = vcmp.ge.f32.partialorder %v2943, 0.0
        %vm3014 = vcmp.ge.f32.partialorder %v2956, 0.0
        %vm3015 = vcmp.ge.f32.partialorder %v2969, 0.0
        %vm3016 = vcmp.ge.f32.partialorder %v2982, 0.0
        %vm3017 = vcmp.ge.f32.partialorder %v2995, 0.0
        %vm3018 = vcmp.ge.f32.partialorder %v3008, 0.0
        %v3019 = vmul.f32 %v2917, 0.01
        %v3020 = vmul.f32 %v2930, 0.01
        %v3021 = vmul.f32 %v2943, 0.01
        %v3022 = vmul.f32 %v2956, 0.01
        %v3023 = vmul.f32 %v2969, 0.01
        %v3024 = vmul.f32 %v2982, 0.01
        %v3025 = vmul.f32 %v2995, 0.01
        %v3026 = vmul.f32 %v3008, 0.01
        %v3027 = vsel %vm3011, %v2917, %v3019
        %v3028 = vsel %vm3012, %v2930, %v3020
        %v3029 = vsel %vm3013, %v2943, %v3021
        %v3030 = vsel %vm3014, %v2956, %v3022
        %v3031 = vsel %vm3015, %v2969, %v3023
        %v3032 = vsel %vm3016, %v2982, %v3024
        %v3033 = vsel %vm3017, %v2995, %v3025
        %v3034 = vsel %vm3018, %v3008, %v3026
        %v3035 = vpack.c.bf16 %v3027, %v3027
        %v3036 = vpack.c.bf16 %v3028, %v3028
        %v3037 = vpack.c.bf16 %v3029, %v3029
        %v3038 = vpack.c.bf16 %v3030, %v3030
        %v3039 = vpack.c.bf16 %v3031, %v3031
        %v3040 = vpack.c.bf16 %v3032, %v3032
        %v3041 = vpack.c.bf16 %v3033, %v3033
        %v3042 = vpack.c.bf16 %v3034, %v3034
        %v3043 = vld [vmem:[#allocation11] sm:$0xf]
        %v3044 = vld [vmem:[#allocation11 + $0x4] sm:$0xf]
        %v3045 = vld [vmem:[#allocation11 + $0x8] sm:$0xf]
        %v3046 = vld [vmem:[#allocation11 + $0xc] sm:$0xf]
        %v3047 = vld [vmem:[#allocation11 + $0x10] sm:$0xf]
        %v3048 = vld [vmem:[#allocation11 + $0x14] sm:$0xf]
        %v3049 = vld [vmem:[#allocation11 + $0x18] sm:$0xf]
        %v3050 = vld [vmem:[#allocation11 + $0x1c] sm:$0xf]
        %v3051 = vld [vmem:[#allocation11 + $0x20] sm:$0xf]
        %v3052 = vld [vmem:[#allocation11 + $0x24] sm:$0xf]
        %v3053 = vld [vmem:[#allocation11 + $0x28] sm:$0xf]
        %v3054 = vld [vmem:[#allocation11 + $0x2c] sm:$0xf]
        %v3055 = vld [vmem:[#allocation11 + $0x30] sm:$0xf]
        %v3056 = vld [vmem:[#allocation11 + $0x34] sm:$0xf]
        %v3057 = vld [vmem:[#allocation11 + $0x38] sm:$0xf]
        %v3058 = vld [vmem:[#allocation11 + $0x3c] sm:$0xf]
        %v3059 = vld [vmem:[#allocation11 + $0x40] sm:$0xf]
        %v3060 = vld [vmem:[#allocation11 + $0x44] sm:$0xf]
        %v3061 = vld [vmem:[#allocation11 + $0x48] sm:$0xf]
        %v3062 = vld [vmem:[#allocation11 + $0x4c] sm:$0xf]
        %v3063 = vld [vmem:[#allocation11 + $0x50] sm:$0xf]
        %v3064 = vld [vmem:[#allocation11 + $0x54] sm:$0xf]
        %v3065 = vld [vmem:[#allocation11 + $0x58] sm:$0xf]
        %v3066 = vld [vmem:[#allocation11 + $0x5c] sm:$0xf]
        %v3067 = vld [vmem:[#allocation11 + $0x60] sm:$0xf]
        %v3068 = vld [vmem:[#allocation11 + $0x64] sm:$0xf]
        %v3069 = vld [vmem:[#allocation11 + $0x68] sm:$0xf]
        %v3070 = vld [vmem:[#allocation11 + $0x6c] sm:$0xf]
        %v3071 = vld [vmem:[#allocation11 + $0x70] sm:$0xf]
        %v3072 = vld [vmem:[#allocation11 + $0x74] sm:$0xf]
        %v3073 = vld [vmem:[#allocation11 + $0x78] sm:$0xf]
        %v3074 = vld [vmem:[#allocation11 + $0x7c] sm:$0xf]
        %v3075 = vld [vmem:[#allocation11 + $0x80] sm:$0xf]
        %v3076 = vld [vmem:[#allocation11 + $0x84] sm:$0xf]
        %v3077 = vld [vmem:[#allocation11 + $0x88] sm:$0xf]
        %v3078 = vld [vmem:[#allocation11 + $0x8c] sm:$0xf]
        %v3079 = vld [vmem:[#allocation11 + $0x90] sm:$0xf]
        %v3080 = vld [vmem:[#allocation11 + $0x94] sm:$0xf]
        %v3081 = vld [vmem:[#allocation11 + $0x98] sm:$0xf]
        %v3082 = vld [vmem:[#allocation11 + $0x9c] sm:$0xf]
        %v3083 = vld [vmem:[#allocation11 + $0xa0] sm:$0xf]
        %v3084 = vld [vmem:[#allocation11 + $0xa4] sm:$0xf]
        %v3085 = vld [vmem:[#allocation11 + $0xa8] sm:$0xf]
        %v3086 = vld [vmem:[#allocation11 + $0xac] sm:$0xf]
        %v3087 = vld [vmem:[#allocation11 + $0xb0] sm:$0xf]
        %v3088 = vld [vmem:[#allocation11 + $0xb4] sm:$0xf]
        %v3089 = vld [vmem:[#allocation11 + $0xb8] sm:$0xf]
        %v3090 = vld [vmem:[#allocation11 + $0xbc] sm:$0xf]
        %v3091 = vld [vmem:[#allocation11 + $0xc0] sm:$0xf]
        %v3092 = vld [vmem:[#allocation11 + $0xc4] sm:$0xf]
        %v3093 = vld [vmem:[#allocation11 + $0xc8] sm:$0xf]
        %v3094 = vld [vmem:[#allocation11 + $0xcc] sm:$0xf]
        %v3095 = vld [vmem:[#allocation11 + $0xd0] sm:$0xf]
        %v3096 = vld [vmem:[#allocation11 + $0xd4] sm:$0xf]
        %v3097 = vld [vmem:[#allocation11 + $0xd8] sm:$0xf]
        %v3098 = vld [vmem:[#allocation11 + $0xdc] sm:$0xf]
        %v3099 = vld [vmem:[#allocation11 + $0xe0] sm:$0xf]
        %v3100 = vld [vmem:[#allocation11 + $0xe4] sm:$0xf]
        %v3101 = vld [vmem:[#allocation11 + $0xe8] sm:$0xf]
        %v3102 = vld [vmem:[#allocation11 + $0xec] sm:$0xf]
        %v3103 = vld [vmem:[#allocation11 + $0xf0] sm:$0xf]
        %v3104 = vld [vmem:[#allocation11 + $0xf4] sm:$0xf]
        %v3105 = vld [vmem:[#allocation11 + $0xf8] sm:$0xf]
        %v3106 = vld [vmem:[#allocation11 + $0xfc] sm:$0xf]
        %v3107 = vld [vmem:[#allocation11 + $0x100] sm:$0xf]
        %v3108 = vld [vmem:[#allocation11 + $0x104] sm:$0xf]
        %v3109 = vld [vmem:[#allocation11 + $0x108] sm:$0xf]
        %v3110 = vld [vmem:[#allocation11 + $0x10c] sm:$0xf]
        %v3111 = vld [vmem:[#allocation11 + $0x110] sm:$0xf]
        %v3112 = vld [vmem:[#allocation11 + $0x114] sm:$0xf]
        %v3113 = vld [vmem:[#allocation11 + $0x118] sm:$0xf]
        %v3114 = vld [vmem:[#allocation11 + $0x11c] sm:$0xf]
        %v3115 = vld [vmem:[#allocation11 + $0x120] sm:$0xf]
        %v3116 = vld [vmem:[#allocation11 + $0x124] sm:$0xf]
        %v3117 = vld [vmem:[#allocation11 + $0x128] sm:$0xf]
        %v3118 = vld [vmem:[#allocation11 + $0x12c] sm:$0xf]
        %v3119 = vld [vmem:[#allocation11 + $0x130] sm:$0xf]
        %v3120 = vld [vmem:[#allocation11 + $0x134] sm:$0xf]
        %v3121 = vld [vmem:[#allocation11 + $0x138] sm:$0xf]
        %v3122 = vld [vmem:[#allocation11 + $0x13c] sm:$0xf]
        %v3123 = vld [vmem:[#allocation11 + $0x140] sm:$0xf]
        %v3124 = vld [vmem:[#allocation11 + $0x144] sm:$0xf]
        %v3125 = vld [vmem:[#allocation11 + $0x148] sm:$0xf]
        %v3126 = vld [vmem:[#allocation11 + $0x14c] sm:$0xf]
        %v3127 = vld [vmem:[#allocation11 + $0x150] sm:$0xf]
        %v3128 = vld [vmem:[#allocation11 + $0x154] sm:$0xf]
        %v3129 = vld [vmem:[#allocation11 + $0x158] sm:$0xf]
        %v3130 = vld [vmem:[#allocation11 + $0x15c] sm:$0xf]
        %v3131 = vld [vmem:[#allocation11 + $0x160] sm:$0xf]
        %v3132 = vld [vmem:[#allocation11 + $0x164] sm:$0xf]
        %v3133 = vld [vmem:[#allocation11 + $0x168] sm:$0xf]
        %v3134 = vld [vmem:[#allocation11 + $0x16c] sm:$0xf]
        %v3135 = vld [vmem:[#allocation11 + $0x170] sm:$0xf]
        %v3136 = vld [vmem:[#allocation11 + $0x174] sm:$0xf]
        %v3137 = vld [vmem:[#allocation11 + $0x178] sm:$0xf]
        %v3138 = vld [vmem:[#allocation11 + $0x17c] sm:$0xf]
        %v3139 = vld [vmem:[#allocation11 + $0x180] sm:$0xf]
        %v3140 = vld [vmem:[#allocation11 + $0x184] sm:$0xf]
        %v3141 = vld [vmem:[#allocation11 + $0x188] sm:$0xf]
        %v3142 = vld [vmem:[#allocation11 + $0x18c] sm:$0xf]
        %v3143 = vld [vmem:[#allocation11 + $0x190] sm:$0xf]
        %v3144 = vld [vmem:[#allocation11 + $0x194] sm:$0xf]
        %v3145 = vld [vmem:[#allocation11 + $0x198] sm:$0xf]
        %v3146 = vld [vmem:[#allocation11 + $0x19c] sm:$0xf]
        %v3147 = vld [vmem:[#allocation11 + $0x1a0] sm:$0xf]
        %v3148 = vld [vmem:[#allocation11 + $0x1a4] sm:$0xf]
        %v3149 = vld [vmem:[#allocation11 + $0x1a8] sm:$0xf]
        %v3150 = vld [vmem:[#allocation11 + $0x1ac] sm:$0xf]
        %v3151 = vld [vmem:[#allocation11 + $0x1b0] sm:$0xf]
        %v3152 = vld [vmem:[#allocation11 + $0x1b4] sm:$0xf]
        %v3153 = vld [vmem:[#allocation11 + $0x1b8] sm:$0xf]
        %v3154 = vld [vmem:[#allocation11 + $0x1bc] sm:$0xf]
        %v3155 = vld [vmem:[#allocation11 + $0x1c0] sm:$0xf]
        %v3156 = vld [vmem:[#allocation11 + $0x1c4] sm:$0xf]
        %v3157 = vld [vmem:[#allocation11 + $0x1c8] sm:$0xf]
        %v3158 = vld [vmem:[#allocation11 + $0x1cc] sm:$0xf]
        %v3159 = vld [vmem:[#allocation11 + $0x1d0] sm:$0xf]
        %v3160 = vld [vmem:[#allocation11 + $0x1d4] sm:$0xf]
        %v3161 = vld [vmem:[#allocation11 + $0x1d8] sm:$0xf]
        %v3162 = vld [vmem:[#allocation11 + $0x1dc] sm:$0xf]
        %v3163 = vld [vmem:[#allocation11 + $0x1e0] sm:$0xf]
        %v3164 = vld [vmem:[#allocation11 + $0x1e4] sm:$0xf]
        %v3165 = vld [vmem:[#allocation11 + $0x1e8] sm:$0xf]
        %v3166 = vld [vmem:[#allocation11 + $0x1ec] sm:$0xf]
        %v3167 = vld [vmem:[#allocation11 + $0x1f0] sm:$0xf]
        %v3168 = vld [vmem:[#allocation11 + $0x1f4] sm:$0xf]
        %v3169 = vld [vmem:[#allocation11 + $0x1f8] sm:$0xf]
        %v3170 = vld [vmem:[#allocation11 + $0x1fc] sm:$0xf]
        %v3171 = vld [vmem:[%s16] sm:$0x1]
        %v3300 = vunpack.c.l.b16 %v3043
        %v3301 = vunpack.c.l.b16 %v3044
        %v3302 = vunpack.c.l.b16 %v3045
        %v3303 = vunpack.c.l.b16 %v3046
        %v3304 = vunpack.c.l.b16 %v3047
        %v3305 = vunpack.c.l.b16 %v3048
        %v3306 = vunpack.c.l.b16 %v3049
        %v3307 = vunpack.c.l.b16 %v3050
        %v3308 = vunpack.c.l.b16 %v3051
        %v3309 = vunpack.c.l.b16 %v3052
        %v3310 = vunpack.c.l.b16 %v3053
        %v3311 = vunpack.c.l.b16 %v3054
        %v3312 = vunpack.c.l.b16 %v3055
        %v3313 = vunpack.c.l.b16 %v3056
        %v3314 = vunpack.c.l.b16 %v3057
        %v3315 = vunpack.c.l.b16 %v3058
        %v3316 = vunpack.c.l.b16 %v3059
        %v3317 = vunpack.c.l.b16 %v3060
        %v3318 = vunpack.c.l.b16 %v3061
        %v3319 = vunpack.c.l.b16 %v3062
        %v3320 = vunpack.c.l.b16 %v3063
        %v3321 = vunpack.c.l.b16 %v3064
        %v3322 = vunpack.c.l.b16 %v3065
        %v3323 = vunpack.c.l.b16 %v3066
        %v3324 = vunpack.c.l.b16 %v3067
        %v3325 = vunpack.c.l.b16 %v3068
        %v3326 = vunpack.c.l.b16 %v3069
        %v3327 = vunpack.c.l.b16 %v3070
        %v3328 = vunpack.c.l.b16 %v3071
        %v3329 = vunpack.c.l.b16 %v3072
        %v3330 = vunpack.c.l.b16 %v3073
        %v3331 = vunpack.c.l.b16 %v3074
        %v3332 = vunpack.c.l.b16 %v3075
        %v3333 = vunpack.c.l.b16 %v3076
        %v3334 = vunpack.c.l.b16 %v3077
        %v3335 = vunpack.c.l.b16 %v3078
        %v3336 = vunpack.c.l.b16 %v3079
        %v3337 = vunpack.c.l.b16 %v3080
        %v3338 = vunpack.c.l.b16 %v3081
        %v3339 = vunpack.c.l.b16 %v3082
        %v3340 = vunpack.c.l.b16 %v3083
        %v3341 = vunpack.c.l.b16 %v3084
        %v3342 = vunpack.c.l.b16 %v3085
        %v3343 = vunpack.c.l.b16 %v3086
        %v3344 = vunpack.c.l.b16 %v3087
        %v3345 = vunpack.c.l.b16 %v3088
        %v3346 = vunpack.c.l.b16 %v3089
        %v3347 = vunpack.c.l.b16 %v3090
        %v3348 = vunpack.c.l.b16 %v3091
        %v3349 = vunpack.c.l.b16 %v3092
        %v3350 = vunpack.c.l.b16 %v3093
        %v3351 = vunpack.c.l.b16 %v3094
        %v3352 = vunpack.c.l.b16 %v3095
        %v3353 = vunpack.c.l.b16 %v3096
        %v3354 = vunpack.c.l.b16 %v3097
        %v3355 = vunpack.c.l.b16 %v3098
        %v3356 = vunpack.c.l.b16 %v3099
        %v3357 = vunpack.c.l.b16 %v3100
        %v3358 = vunpack.c.l.b16 %v3101
        %v3359 = vunpack.c.l.b16 %v3102
        %v3360 = vunpack.c.l.b16 %v3103
        %v3361 = vunpack.c.l.b16 %v3104
        %v3362 = vunpack.c.l.b16 %v3105
        %v3363 = vunpack.c.l.b16 %v3106
        %v3364 = vunpack.c.l.b16 %v3107
        %v3365 = vunpack.c.l.b16 %v3108
        %v3366 = vunpack.c.l.b16 %v3109
        %v3367 = vunpack.c.l.b16 %v3110
        %v3368 = vunpack.c.l.b16 %v3111
        %v3369 = vunpack.c.l.b16 %v3112
        %v3370 = vunpack.c.l.b16 %v3113
        %v3371 = vunpack.c.l.b16 %v3114
        %v3372 = vunpack.c.l.b16 %v3115
        %v3373 = vunpack.c.l.b16 %v3116
        %v3374 = vunpack.c.l.b16 %v3117
        %v3375 = vunpack.c.l.b16 %v3118
        %v3376 = vunpack.c.l.b16 %v3119
        %v3377 = vunpack.c.l.b16 %v3120
        %v3378 = vunpack.c.l.b16 %v3121
        %v3379 = vunpack.c.l.b16 %v3122
        %v3380 = vunpack.c.l.b16 %v3123
        %v3381 = vunpack.c.l.b16 %v3124
        %v3382 = vunpack.c.l.b16 %v3125
        %v3383 = vunpack.c.l.b16 %v3126
        %v3384 = vunpack.c.l.b16 %v3127
        %v3385 = vunpack.c.l.b16 %v3128
        %v3386 = vunpack.c.l.b16 %v3129
        %v3387 = vunpack.c.l.b16 %v3130
        %v3388 = vunpack.c.l.b16 %v3131
        %v3389 = vunpack.c.l.b16 %v3132
        %v3390 = vunpack.c.l.b16 %v3133
        %v3391 = vunpack.c.l.b16 %v3134
        %v3392 = vunpack.c.l.b16 %v3135
        %v3393 = vunpack.c.l.b16 %v3136
        %v3394 = vunpack.c.l.b16 %v3137
        %v3395 = vunpack.c.l.b16 %v3138
        %v3396 = vunpack.c.l.b16 %v3139
        %v3397 = vunpack.c.l.b16 %v3140
        %v3398 = vunpack.c.l.b16 %v3141
        %v3399 = vunpack.c.l.b16 %v3142
        %v3400 = vunpack.c.l.b16 %v3143
        %v3401 = vunpack.c.l.b16 %v3144
        %v3402 = vunpack.c.l.b16 %v3145
        %v3403 = vunpack.c.l.b16 %v3146
        %v3404 = vunpack.c.l.b16 %v3147
        %v3405 = vunpack.c.l.b16 %v3148
        %v3406 = vunpack.c.l.b16 %v3149
        %v3407 = vunpack.c.l.b16 %v3150
        %v3408 = vunpack.c.l.b16 %v3151
        %v3409 = vunpack.c.l.b16 %v3152
        %v3410 = vunpack.c.l.b16 %v3153
        %v3411 = vunpack.c.l.b16 %v3154
        %v3412 = vunpack.c.l.b16 %v3155
        %v3413 = vunpack.c.l.b16 %v3156
        %v3414 = vunpack.c.l.b16 %v3157
        %v3415 = vunpack.c.l.b16 %v3158
        %v3416 = vunpack.c.l.b16 %v3159
        %v3417 = vunpack.c.l.b16 %v3160
        %v3418 = vunpack.c.l.b16 %v3161
        %v3419 = vunpack.c.l.b16 %v3162
        %v3420 = vunpack.c.l.b16 %v3163
        %v3421 = vunpack.c.l.b16 %v3164
        %v3422 = vunpack.c.l.b16 %v3165
        %v3423 = vunpack.c.l.b16 %v3166
        %v3424 = vunpack.c.l.b16 %v3167
        %v3425 = vunpack.c.l.b16 %v3168
        %v3426 = vunpack.c.l.b16 %v3169
        %v3427 = vunpack.c.l.b16 %v3170
        %v3428 = vpack.c.b16 %v3301, %v3300
        %v3429 = vpack.c.b16 %v3303, %v3302
        %v3430 = vpack.c.b16 %v3305, %v3304
        %v3431 = vpack.c.b16 %v3307, %v3306
        %v3432 = vpack.c.b16 %v3309, %v3308
        %v3433 = vpack.c.b16 %v3311, %v3310
        %v3434 = vpack.c.b16 %v3313, %v3312
        %v3435 = vpack.c.b16 %v3315, %v3314
        %v3436 = vpack.c.b16 %v3317, %v3316
        %v3437 = vpack.c.b16 %v3319, %v3318
        %v3438 = vpack.c.b16 %v3321, %v3320
        %v3439 = vpack.c.b16 %v3323, %v3322
        %v3440 = vpack.c.b16 %v3325, %v3324
        %v3441 = vpack.c.b16 %v3327, %v3326
        %v3442 = vpack.c.b16 %v3329, %v3328
        %v3443 = vpack.c.b16 %v3331, %v3330
        %v3444 = vpack.c.b16 %v3333, %v3332
        %v3445 = vpack.c.b16 %v3335, %v3334
        %v3446 = vpack.c.b16 %v3337, %v3336
        %v3447 = vpack.c.b16 %v3339, %v3338
        %v3448 = vpack.c.b16 %v3341, %v3340
        %v3449 = vpack.c.b16 %v3343, %v3342
        %v3450 = vpack.c.b16 %v3345, %v3344
        %v3451 = vpack.c.b16 %v3347, %v3346
        %v3452 = vpack.c.b16 %v3349, %v3348
        %v3453 = vpack.c.b16 %v3351, %v3350
        %v3454 = vpack.c.b16 %v3353, %v3352
        %v3455 = vpack.c.b16 %v3355, %v3354
        %v3456 = vpack.c.b16 %v3357, %v3356
        %v3457 = vpack.c.b16 %v3359, %v3358
        %v3458 = vpack.c.b16 %v3361, %v3360
        %v3459 = vpack.c.b16 %v3363, %v3362
        %v3460 = vpack.c.b16 %v3365, %v3364
        %v3461 = vpack.c.b16 %v3367, %v3366
        %v3462 = vpack.c.b16 %v3369, %v3368
        %v3463 = vpack.c.b16 %v3371, %v3370
        %v3464 = vpack.c.b16 %v3373, %v3372
        %v3465 = vpack.c.b16 %v3375, %v3374
        %v3466 = vpack.c.b16 %v3377, %v3376
        %v3467 = vpack.c.b16 %v3379, %v3378
        %v3468 = vpack.c.b16 %v3381, %v3380
        %v3469 = vpack.c.b16 %v3383, %v3382
        %v3470 = vpack.c.b16 %v3385, %v3384
        %v3471 = vpack.c.b16 %v3387, %v3386
        %v3472 = vpack.c.b16 %v3389, %v3388
        %v3473 = vpack.c.b16 %v3391, %v3390
        %v3474 = vpack.c.b16 %v3393, %v3392
        %v3475 = vpack.c.b16 %v3395, %v3394
        %v3476 = vpack.c.b16 %v3397, %v3396
        %v3477 = vpack.c.b16 %v3399, %v3398
        %v3478 = vpack.c.b16 %v3401, %v3400
        %v3479 = vpack.c.b16 %v3403, %v3402
        %v3480 = vpack.c.b16 %v3405, %v3404
        %v3481 = vpack.c.b16 %v3407, %v3406
        %v3482 = vpack.c.b16 %v3409, %v3408
        %v3483 = vpack.c.b16 %v3411, %v3410
        %v3484 = vpack.c.b16 %v3413, %v3412
        %v3485 = vpack.c.b16 %v3415, %v3414
        %v3486 = vpack.c.b16 %v3417, %v3416
        %v3487 = vpack.c.b16 %v3419, %v3418
        %v3488 = vpack.c.b16 %v3421, %v3420
        %v3489 = vpack.c.b16 %v3423, %v3422
        %v3490 = vpack.c.b16 %v3425, %v3424
        %v3491 = vpack.c.b16 %v3427, %v3426
        %3556 = vmatpush.bf16.msra.mxu0 %v3435
        %3557 = vmatpush.bf16.msra.mxu0 %v3434
        %3558 = vmatpush.bf16.msra.mxu0 %v3433
        %3559 = vmatpush.bf16.msra.mxu0 %v3432
        %3560 = vmatpush.bf16.msra.mxu0 %v3431
        %3561 = vmatpush.bf16.msra.mxu0 %v3430
        %3562 = vmatpush.bf16.msra.mxu0 %v3429
        %3563 = vmatpush.bf16.msra.mxu0 %v3428
        %3564 = vmatmul.bf16.gmra.mxu0 %v3035
        %v3565 = vpop.f32.mrf.mxu0
        %v3566 = vadd.f32 %v3171, %v3565
        %v3567 = vpop.f32.mrf.mxu0
        %3568 = vdwg.mxu0
        %3569 = vmatpush.bf16.msra.mxu0 %v3443
        %3570 = vmatpush.bf16.msra.mxu0 %v3442
        %3571 = vmatpush.bf16.msra.mxu0 %v3441
        %3572 = vmatpush.bf16.msra.mxu0 %v3440
        %3573 = vmatpush.bf16.msra.mxu0 %v3439
        %3574 = vmatpush.bf16.msra.mxu0 %v3438
        %3575 = vmatpush.bf16.msra.mxu0 %v3437
        %3576 = vmatpush.bf16.msra.mxu0 %v3436
        %3577 = vmatmul.bf16.gmra.mxu0 %v3036
        %v3578 = vpop.f32.mrf.mxu0
        %v3579 = vadd.f32 %v3566, %v3578
        %v3580 = vpop.f32.mrf.mxu0
        %3581 = vdwg.mxu0
        %3582 = vmatpush.bf16.msra.mxu0 %v3451
        %3583 = vmatpush.bf16.msra.mxu0 %v3450
        %3584 = vmatpush.bf16.msra.mxu0 %v3449
        %3585 = vmatpush.bf16.msra.mxu0 %v3448
        %3586 = vmatpush.bf16.msra.mxu0 %v3447
        %3587 = vmatpush.bf16.msra.mxu0 %v3446
        %3588 = vmatpush.bf16.msra.mxu0 %v3445
        %3589 = vmatpush.bf16.msra.mxu0 %v3444
        %3590 = vmatmul.bf16.gmra.mxu0 %v3037
        %v3591 = vpop.f32.mrf.mxu0
        %v3592 = vadd.f32 %v3579, %v3591
        %v3593 = vpop.f32.mrf.mxu0
        %3594 = vdwg.mxu0
        %3595 = vmatpush.bf16.msra.mxu0 %v3459
        %3596 = vmatpush.bf16.msra.mxu0 %v3458
        %3597 = vmatpush.bf16.msra.mxu0 %v3457
        %3598 = vmatpush.bf16.msra.mxu0 %v3456
        %3599 = vmatpush.bf16.msra.mxu0 %v3455
        %3600 = vmatpush.bf16.msra.mxu0 %v3454
        %3601 = vmatpush.bf16.msra.mxu0 %v3453
        %3602 = vmatpush.bf16.msra.mxu0 %v3452
        %3603 = vmatmul.bf16.gmra.mxu0 %v3038
        %v3604 = vpop.f32.mrf.mxu0
        %v3605 = vadd.f32 %v3592, %v3604
        %v3606 = vpop.f32.mrf.mxu0
        %3607 = vdwg.mxu0
        %3608 = vmatpush.bf16.msra.mxu0 %v3467
        %3609 = vmatpush.bf16.msra.mxu0 %v3466
        %3610 = vmatpush.bf16.msra.mxu0 %v3465
        %3611 = vmatpush.bf16.msra.mxu0 %v3464
        %3612 = vmatpush.bf16.msra.mxu0 %v3463
        %3613 = vmatpush.bf16.msra.mxu0 %v3462
        %3614 = vmatpush.bf16.msra.mxu0 %v3461
        %3615 = vmatpush.bf16.msra.mxu0 %v3460
        %3616 = vmatmul.bf16.gmra.mxu0 %v3039
        %v3617 = vpop.f32.mrf.mxu0
        %v3618 = vadd.f32 %v3605, %v3617
        %v3619 = vpop.f32.mrf.mxu0
        %3620 = vdwg.mxu0
        %3621 = vmatpush.bf16.msra.mxu0 %v3475
        %3622 = vmatpush.bf16.msra.mxu0 %v3474
        %3623 = vmatpush.bf16.msra.mxu0 %v3473
        %3624 = vmatpush.bf16.msra.mxu0 %v3472
        %3625 = vmatpush.bf16.msra.mxu0 %v3471
        %3626 = vmatpush.bf16.msra.mxu0 %v3470
        %3627 = vmatpush.bf16.msra.mxu0 %v3469
        %3628 = vmatpush.bf16.msra.mxu0 %v3468
        %3629 = vmatmul.bf16.gmra.mxu0 %v3040
        %v3630 = vpop.f32.mrf.mxu0
        %v3631 = vadd.f32 %v3618, %v3630
        %v3632 = vpop.f32.mrf.mxu0
        %3633 = vdwg.mxu0
        %3634 = vmatpush.bf16.msra.mxu0 %v3483
        %3635 = vmatpush.bf16.msra.mxu0 %v3482
        %3636 = vmatpush.bf16.msra.mxu0 %v3481
        %3637 = vmatpush.bf16.msra.mxu0 %v3480
        %3638 = vmatpush.bf16.msra.mxu0 %v3479
        %3639 = vmatpush.bf16.msra.mxu0 %v3478
        %3640 = vmatpush.bf16.msra.mxu0 %v3477
        %3641 = vmatpush.bf16.msra.mxu0 %v3476
        %3642 = vmatmul.bf16.gmra.mxu0 %v3041
        %v3643 = vpop.f32.mrf.mxu0
        %v3644 = vadd.f32 %v3631, %v3643
        %v3645 = vpop.f32.mrf.mxu0
        %3646 = vdwg.mxu0
        %3647 = vmatpush.bf16.msra.mxu0 %v3491
        %3648 = vmatpush.bf16.msra.mxu0 %v3490
        %3649 = vmatpush.bf16.msra.mxu0 %v3489
        %3650 = vmatpush.bf16.msra.mxu0 %v3488
        %3651 = vmatpush.bf16.msra.mxu0 %v3487
        %3652 = vmatpush.bf16.msra.mxu0 %v3486
        %3653 = vmatpush.bf16.msra.mxu0 %v3485
        %3654 = vmatpush.bf16.msra.mxu0 %v3484
        %3655 = vmatmul.bf16.gmra.mxu0 %v3042
        %v3656 = vpop.f32.mrf.mxu0
        %v3657 = vadd.f32 %v3644, %v3656
        %v3658 = vpop.f32.mrf.mxu0
        %3659 = vdwg.mxu0
        %v3660 = vperm.slane %v3657, 0
        %3661 = vst [vmem:[%s626] sm:$0xff] %v3660
        %p3662 = scmp.lt.s32.totalorder %s31, 1
        %s3663 = scalar_select %p3662, %s31, 1
        %s3664 = smul.addr %s3663, 8
        %s3665 = scalar_lea.vmem %s17, %s3664
        // Predicated region
        $region109: #{transformer_model_forward.1} parent=87 // pred_check
          %p3666 = pneg %p411
        $region110: #{transformer_model_forward.1} parent=87 // pred_check_branch
          %3668 = sbr.rel (%p3666) target = $region112
        $region111: #{transformer_model_forward.1} parent=87 // pred_region
          _
        $region112: #{transformer_model_forward.1} parent=87 // pred_fallthru
          _
      $region88: #{transformer_model_forward.1} parent=5 // pred_fallthru
        _
      %p3669 = scmp.le.s32.totalorder 2, %s26
      // Predicated region
      $region113: #{transformer_model_forward.1} parent=5 // pred_check
        %p3670 = pneg %p3669
      $region114: #{transformer_model_forward.1} parent=5 // pred_check_branch
        %3672 = sbr.rel (%p3670) target = $region116
      $region115: #{transformer_model_forward.1} parent=5 // pred_region
        %s3673 = ssub.s32 %s26, 2
        // Predicated region
        $region117: #{transformer_model_forward.1} parent=115 // pred_check
          %p3674 = pneg %p417
        $region118: #{transformer_model_forward.1} parent=115 // pred_check_branch
          %3676 = sbr.rel (%p3674) target = $region120
        $region119: #{transformer_model_forward.1} parent=115 // pred_region
          %p3677 = scmp.lt.s32.totalorder %s32, 1
          %s3678 = scalar_select %p3677, %s32, 1
          %s3679 = smul.addr %s3678, 8
          %s3680 = scalar_lea.vmem %s17, %s3679
        $region120: #{transformer_model_forward.1} parent=115 // pred_fallthru
          _
      $region116: #{transformer_model_forward.1} parent=5 // pred_fallthru
        _
    $region6: #{transformer_model_forward.1} parent=1 // loop_footer
      %s30 = sadd.s32 1, %s26
    $region7: #{transformer_model_forward.1} parent=1 // loop_footer_branch
      %25 = sbr.rel target = $region3
    $region8: #{transformer_model_forward.1} parent=1 // loop_exit
      _
    %3681 = vsyncpa [#allocation5], 1
    %s3682 = scalar_lea.sflag [#allocation5], 1
    %3683 = vsyncpa %s3682, 1
    %3684 = vsyncpa [#allocation7], 1
    %3685 = vsyncpa [#allocation10], 1

</llo_original>
